<compile_context>
chip_gen: v7x
topology: tpu7x:2x2x1
jax: 0.10.0
libtpu: 0.0.40
codegen_flags: <defaults>
</compile_context>

<pallas_src>
import jax
import jax.numpy as jnp
from jax.experimental import pallas as pl
from jax.experimental.pallas import tpu as pltpu

# ---- problem sizes (small, consistent with the module) ----
B = 2          # batch
N = 8          # sequence length (tokens)
C = 32         # embedding dim
NUM_HEADS = 8
HEAD_DIM = C // NUM_HEADS
SCALE = HEAD_DIM ** (-0.5)


def prepare_qkv_weight(w_qkv):
    """Offline parameter preparation (done ONCE, not per call): fold the
    attention scale into the q output columns of the QKV weight and cast the
    weight to bf16 (MXU operand dtype; halves weight DMA/VMEM footprint)."""
    return (w_qkv.at[:, :C].multiply(SCALE)).astype(jnp.bfloat16)


def prepare_proj_weight(w_proj):
    """Offline cast of the output-projection weight to bf16."""
    return w_proj.astype(jnp.bfloat16)


def _attention_kernel(x_ref, wqkv_ref, wproj_ref, bproj_ref, o_ref):
    # Single kernel step: whole problem resident in VMEM.
    x = x_ref[...]                                               # (B*N, C) f32

    # Fused QKV projection for all batches/tokens at once (qkv_bias=False).
    # bf16 MXU operands, f32 accumulation. SCALE already folded into q cols.
    qkv = jnp.dot(x.astype(jnp.bfloat16), wqkv_ref[...],
                  preferred_element_type=jnp.float32)            # (B*N, 3C) f32

    def split_heads(mat):
        # (B*N, C) -> (B*H, N, D); single reshape/transpose/reshape per tensor.
        return (mat.reshape(B, N, NUM_HEADS, HEAD_DIM)
                   .transpose(0, 2, 1, 3)
                   .reshape(B * NUM_HEADS, N, HEAD_DIM))

    q = split_heads(qkv[:, 0 * C:1 * C])
    k = split_heads(qkv[:, 1 * C:2 * C])
    v = split_heads(qkv[:, 2 * C:3 * C])

    # Attention scores: one (B*H)-batched dot_general, bf16 operands / f32 acc.
    s = jnp.einsum('znd,zmd->znm',
                   q.astype(jnp.bfloat16), k.astype(jnp.bfloat16),
                   preferred_element_type=jnp.float32)           # (B*H, N, N)

    # Numerically stable softmax, kept entirely in f32 (VPU/EUP);
    # reciprocal on the EUP slot (approx).
    p = jnp.exp(s - jnp.max(s, axis=-1, keepdims=True))
    p = p * pl.reciprocal(jnp.sum(p, axis=-1, keepdims=True), approx=True)
    # TODO(synk): attn_drop / proj_drop are p=0.0 (eval) -> identity, omitted.

    # Weighted sum of values: one (B*H)-batched dot_general.
    o = jnp.einsum('znm,zmd->znd',
                   p.astype(jnp.bfloat16), v.astype(jnp.bfloat16),
                   preferred_element_type=jnp.float32)           # (B*H, N, D)

    # (B*H, N, D) -> (B*N, C): single reshape/transpose/reshape.
    out = (o.reshape(B, NUM_HEADS, N, HEAD_DIM)
             .transpose(0, 2, 1, 3)
             .reshape(B * N, C))

    # Output projection with bias; single slab store of the whole result.
    y = jnp.dot(out.astype(jnp.bfloat16), wproj_ref[...],
                preferred_element_type=jnp.float32) + bproj_ref[...]
    o_ref[...] = y.astype(o_ref.dtype)


def attention(x, w_qkv_prepped, w_proj_prepped, b_proj):
    """x: (B, N, C) float32. Weights MUST come from prepare_qkv_weight /
    prepare_proj_weight. Returns (B, N, C) float32."""
    x2 = x.reshape(B * N, C)   # metadata-only reshape in the wrapper (no compute)
    y2 = pl.pallas_call(
        _attention_kernel,
        out_shape=jax.ShapeDtypeStruct((B * N, C), jnp.float32),
        in_specs=[
            pl.BlockSpec(memory_space=pltpu.MemorySpace.VMEM),   # x      (B*N, C)  f32
            pl.BlockSpec(memory_space=pltpu.MemorySpace.VMEM),   # w_qkv  (C, 3C)   bf16
            pl.BlockSpec(memory_space=pltpu.MemorySpace.VMEM),   # w_proj (C, C)    bf16
            pl.BlockSpec(memory_space=pltpu.MemorySpace.VMEM),   # b_proj (1, C)    f32
        ],
        out_specs=pl.BlockSpec(memory_space=pltpu.MemorySpace.VMEM),
    )(x2, w_qkv_prepped, w_proj_prepped, b_proj)
    return y2.reshape(B, N, C)


def attention_ref(x, w_qkv, w_proj, b_proj):
    """Pure-JAX f32 reference matching the PyTorch forward (eval mode); uses
    the ORIGINAL (unscaled, f32) weights and applies SCALE explicitly."""
    qkv = x @ w_qkv                                              # (B, N, 3C)
    qkv = qkv.reshape(B, N, 3, NUM_HEADS, HEAD_DIM).transpose(2, 0, 3, 1, 4)
    q, k, v = qkv[0], qkv[1], qkv[2]                             # (B, H, N, D)
    attn = (q @ k.transpose(0, 1, 3, 2)) * SCALE
    attn = jax.nn.softmax(attn, axis=-1)
    out = (attn @ v).transpose(0, 2, 1, 3).reshape(B, N, C)
    return out @ w_proj + b_proj[0]


if __name__ == "__main__":
    key = jax.random.PRNGKey(0)
    kx, kw1, kw2, kb = jax.random.split(key, 4)

    x = jax.random.normal(kx, (B, N, C), dtype=jnp.float32)
    # Deterministic parameter init (synthetic; shapes per nn.Linear in __init__).
    w_qkv = jax.random.normal(kw1, (C, 3 * C), dtype=jnp.float32) * 0.05
    w_proj = jax.random.normal(kw2, (C, C), dtype=jnp.float32) * 0.05
    b_proj = jax.random.normal(kb, (1, C), dtype=jnp.float32) * 0.05

    # Offline parameter preparation (once): fold SCALE into q cols, cast bf16.
    w_qkv_prepped = prepare_qkv_weight(w_qkv)
    w_proj_prepped = prepare_proj_weight(w_proj)

    out = attention(x, w_qkv_prepped, w_proj_prepped, b_proj)
    out = jax.block_until_ready(out)

    ref = attention_ref(x, w_qkv, w_proj, b_proj)
    # Tolerance covers bf16 MXU operands (f32 accumulation) and the approx
    # (EUP) reciprocal in the softmax normalization.
    assert jnp.allclose(out, ref, atol=1e-2, rtol=1e-2), "mismatch vs reference"

    print("KERNEL_OK")
</pallas_src>

<mosaic_0001>
module attributes {stable_mosaic.version = 11 : i64} {
  func.func @_attention_kernel(%arg0: memref<16x32xf32, #tpu.memory_space<vmem>>, %arg1: memref<32x96xbf16, #tpu.memory_space<vmem>>, %arg2: memref<32x32xbf16, #tpu.memory_space<vmem>>, %arg3: memref<1x32xf32, #tpu.memory_space<vmem>>, %arg4: memref<16x32xf32, #tpu.memory_space<vmem>>) attributes {dimension_semantics = [], scalar_prefetch = 0 : i64, scratch_operands = 0 : i64, tpu.core_type = #tpu.core_type<tc>} {
    %c0 = arith.constant 0 : index
    %c0_0 = arith.constant 0 : index
    %0 = vector.load %arg0[%c0, %c0_0] : memref<16x32xf32, #tpu.memory_space<vmem>>, vector<16x32xf32>
    %1 = arith.truncf %0 : vector<16x32xf32> to vector<16x32xbf16>
    %c0_1 = arith.constant 0 : index
    %c0_2 = arith.constant 0 : index
    %2 = vector.load %arg1[%c0_1, %c0_2] : memref<32x96xbf16, #tpu.memory_space<vmem>>, vector<32x96xbf16>
    %cst = arith.constant dense<0.000000e+00> : vector<16x96xf32>
    %3 = tpu.matmul %1, %2, %cst {dimension_numbers = #tpu.dot_dimension_numbers<[1], [0], [0], [1], [0, 0, 1, 1], [], []>} : vector<16x32xbf16>, vector<32x96xbf16>, vector<16x96xf32> -> vector<16x96xf32>
    %4 = vector.extract_strided_slice %3 {offsets = [0, 0], sizes = [16, 32], strides = [1, 1]} : vector<16x96xf32> to vector<16x32xf32>
    %5 = vector.shape_cast %4 : vector<16x32xf32> to vector<2x8x8x4xf32>
    %6 = tpu.transpose %5, [0, 2, 1, 3] : vector<2x8x8x4xf32> -> vector<2x8x8x4xf32>
    %7 = vector.shape_cast %6 : vector<2x8x8x4xf32> to vector<16x8x4xf32>
    %8 = vector.extract_strided_slice %3 {offsets = [0, 32], sizes = [16, 32], strides = [1, 1]} : vector<16x96xf32> to vector<16x32xf32>
    %9 = vector.shape_cast %8 : vector<16x32xf32> to vector<2x8x8x4xf32>
    %10 = tpu.transpose %9, [0, 2, 1, 3] : vector<2x8x8x4xf32> -> vector<2x8x8x4xf32>
    %11 = vector.shape_cast %10 : vector<2x8x8x4xf32> to vector<16x8x4xf32>
    %12 = vector.extract_strided_slice %3 {offsets = [0, 64], sizes = [16, 32], strides = [1, 1]} : vector<16x96xf32> to vector<16x32xf32>
    %13 = vector.shape_cast %12 : vector<16x32xf32> to vector<2x8x8x4xf32>
    %14 = tpu.transpose %13, [0, 2, 1, 3] : vector<2x8x8x4xf32> -> vector<2x8x8x4xf32>
    %15 = vector.shape_cast %14 : vector<2x8x8x4xf32> to vector<16x8x4xf32>
    %16 = arith.truncf %7 : vector<16x8x4xf32> to vector<16x8x4xbf16>
    %17 = arith.truncf %11 : vector<16x8x4xf32> to vector<16x8x4xbf16>
    "tpu.trace_start"() <{level = 10 : i32, message = "znd,zmd->znm"}> : () -> ()
    %cst_3 = arith.constant dense<0.000000e+00> : vector<16x8x8xf32>
    %18 = tpu.matmul %16, %17, %cst_3 {dimension_numbers = #tpu.dot_dimension_numbers<[2], [2], [1], [1], [0, 0, 0, 1, 1, 1], [0], [0]>} : vector<16x8x4xbf16>, vector<16x8x4xbf16>, vector<16x8x8xf32> -> vector<16x8x8xf32>
    "tpu.trace_stop"() : () -> ()
    %cst_4 = arith.constant dense<0xFF800000> : vector<16x8xf32>
    %19 = vector.multi_reduction <maximumf>, %18, %cst_4 [2] : vector<16x8x8xf32> to vector<16x8xf32>
    %20 = vector.shape_cast %19 : vector<16x8xf32> to vector<16x8x1xf32>
    %21 = vector.broadcast %20 : vector<16x8x1xf32> to vector<16x8x8xf32>
    %22 = arith.subf %18, %21 : vector<16x8x8xf32>
    %23 = math.exp %22 : vector<16x8x8xf32>
    %cst_5 = arith.constant dense<0.000000e+00> : vector<16x8xf32>
    %24 = vector.multi_reduction <add>, %23, %cst_5 [2] : vector<16x8x8xf32> to vector<16x8xf32>
    %25 = vector.shape_cast %24 : vector<16x8xf32> to vector<16x8x1xf32>
    %26 = tpu.reciprocal %25 {approx = true} : vector<16x8x1xf32> -> vector<16x8x1xf32>
    %27 = vector.broadcast %26 : vector<16x8x1xf32> to vector<16x8x8xf32>
    %28 = arith.mulf %23, %27 : vector<16x8x8xf32>
    %29 = arith.truncf %28 : vector<16x8x8xf32> to vector<16x8x8xbf16>
    %30 = arith.truncf %15 : vector<16x8x4xf32> to vector<16x8x4xbf16>
    "tpu.trace_start"() <{level = 10 : i32, message = "znm,zmd->znd"}> : () -> ()
    %cst_6 = arith.constant dense<0.000000e+00> : vector<16x8x4xf32>
    %31 = tpu.matmul %29, %30, %cst_6 {dimension_numbers = #tpu.dot_dimension_numbers<[2], [1], [1], [2], [0, 0, 0, 1, 1, 2], [0], [0]>} : vector<16x8x8xbf16>, vector<16x8x4xbf16>, vector<16x8x4xf32> -> vector<16x8x4xf32>
    "tpu.trace_stop"() : () -> ()
    %32 = vector.shape_cast %31 : vector<16x8x4xf32> to vector<2x8x8x4xf32>
    %33 = tpu.transpose %32, [0, 2, 1, 3] : vector<2x8x8x4xf32> -> vector<2x8x8x4xf32>
    %34 = vector.shape_cast %33 : vector<2x8x8x4xf32> to vector<16x32xf32>
    %35 = arith.truncf %34 : vector<16x32xf32> to vector<16x32xbf16>
    %c0_7 = arith.constant 0 : index
    %c0_8 = arith.constant 0 : index
    %36 = vector.load %arg2[%c0_7, %c0_8] : memref<32x32xbf16, #tpu.memory_space<vmem>>, vector<32x32xbf16>
    %cst_9 = arith.constant dense<0.000000e+00> : vector<16x32xf32>
    %37 = tpu.matmul %35, %36, %cst_9 {dimension_numbers = #tpu.dot_dimension_numbers<[1], [0], [0], [1], [0, 0, 1, 1], [], []>} : vector<16x32xbf16>, vector<32x32xbf16>, vector<16x32xf32> -> vector<16x32xf32>
    %c0_10 = arith.constant 0 : index
    %c0_11 = arith.constant 0 : index
    %38 = vector.load %arg3[%c0_10, %c0_11] : memref<1x32xf32, #tpu.memory_space<vmem>>, vector<1x32xf32>
    %39 = vector.broadcast %38 : vector<1x32xf32> to vector<16x32xf32>
    %40 = arith.addf %37, %39 : vector<16x32xf32>
    %c0_12 = arith.constant 0 : index
    %c0_13 = arith.constant 0 : index
    %41 = vector.load %arg4[%c0_12, %c0_13] : memref<16x32xf32, #tpu.memory_space<vmem>>, vector<16x32xf32>
    tpu.vector_store %arg4[%c0_12, %c0_13], %40 {strides = array<i32>} : memref<16x32xf32, #tpu.memory_space<vmem>>, vector<16x32xf32>,
    return
  }
}

</mosaic_0001>

<llo_original>
// kernel: tpu_custom_call.1
$region0: #{tpu_custom_call.1}
  #allocation0 [shape = 'u32[]', space=smem, size = 0x4, offset = 0x4, fixed_abs, tag = 'smem constant byte address 0x4 - core index']
  #allocation1 [shape = 'u32[144,128]{1,0:T(1,128)}', space=vmem, size = 0x12000, scoped, tag = 'internal scratch']
  %s0 = inlined_call_operand.hbm [shape: f32[16,32], index: 0, kind: input, shape index: {}]
  %s1 = inlined_call_operand.hbm [shape: bf16[32,96], index: 1, kind: input, shape index: {}]
  %s2 = inlined_call_operand.hbm [shape: bf16[32,32], index: 2, kind: input, shape index: {}]
  %s3 = inlined_call_operand.vmem [shape: f32[1,32], index: 3, kind: input, shape index: {}]
  %s4 = inlined_call_operand.hbm [shape: f32[16,32], index: 4, kind: output, shape index: {}]
  %s5 = sld [smem:[#allocation0]]
  $region38: #{tpu_custom_call.1} parent=0
    _
  %s7 = ssub.s32 1, %s5
  %s8 = scalar_select 0, %s7, %s5
  $region1: #{tpu_custom_call.1} parent=0
    #allocation2 [shape = 'u8[8192]{0}', space=vmem, size = 0x2000, scoped, tag = 'input window, operand 0, single buffered']
    #allocation3 [shape = 's32[1]{0}', space=sflag, size = 0x4, scoped, tag = 'scoped memory for tpu_custom_call.1']
    #allocation4 [shape = 's32[1]{0}', space=sflag, size = 0x4, scoped, tag = 'scoped memory for tpu_custom_call.1']
    #allocation5 [shape = 'u8[8192]{0}', space=vmem, size = 0x2000, scoped, tag = 'input window, operand 1, single buffered']
    #allocation6 [shape = 's32[1]{0}', space=sflag, size = 0x4, scoped, tag = 'scoped memory for tpu_custom_call.1']
    #allocation7 [shape = 'u8[8192]{0}', space=vmem, size = 0x2000, scoped, tag = 'input window, operand 2, single buffered']
    #allocation8 [shape = 'u8[8192]{0}', space=vmem, size = 0x2000, scoped, tag = 'output window, operand 0, single buffered']
    %9 = vsyncpa [#allocation3], 0
    %10 = vsyncpa [#allocation6], 0
    %11 = vsyncpa [#allocation4], 0
    // Predicated region
    $region2: #{tpu_custom_call.1} parent=1 // pred_check
      _
    $region3: #{tpu_custom_call.1} parent=1 // pred_check_branch
      %13 = sbr.rel (0) target = $region5
    $region4: #{tpu_custom_call.1} parent=1 // pred_region
      %s15 = ssub.s32 256, 256
      %16 = vsyncadd [#allocation3], %s15
      %s17 = sshll.u32 [#allocation2], 4
      %s18 = int_to_ptr.vmem [resolvable:$true] %s17
      %23 = dma.hbm_to_vmem [thread:$0]  %s0, 256, %s18, [#allocation3], 128, 128, 8
    $region5: #{tpu_custom_call.1} parent=1 // pred_fallthru
      _
    // Predicated region
    $region6: #{tpu_custom_call.1} parent=1 // pred_check
      _
    $region7: #{tpu_custom_call.1} parent=1 // pred_check_branch
      %25 = sbr.rel (0) target = $region9
    $region8: #{tpu_custom_call.1} parent=1 // pred_region
      %s27 = ssub.s32 256, 256
      %28 = vsyncadd [#allocation6], %s27
      %s29 = sshll.u32 [#allocation5], 4
      %s30 = int_to_ptr.vmem [resolvable:$true] %s29
      %35 = dma.hbm_to_vmem [thread:$0]  %s1, 256, %s30, [#allocation6], 64, 64, 4
    $region9: #{tpu_custom_call.1} parent=1 // pred_fallthru
      _
    // Predicated region
    $region10: #{tpu_custom_call.1} parent=1 // pred_check
      _
    $region11: #{tpu_custom_call.1} parent=1 // pred_check_branch
      %37 = sbr.rel (0) target = $region13
    $region12: #{tpu_custom_call.1} parent=1 // pred_region
      %s39 = ssub.s32 256, 256
      %40 = vsyncadd [#allocation6], %s39
      %s41 = sshll.u32 [#allocation7], 4
      %s42 = int_to_ptr.vmem [resolvable:$true] %s41
      %47 = dma.hbm_to_vmem [thread:$0]  %s2, 256, %s42, [#allocation6], 64, 64, 4
    $region13: #{tpu_custom_call.1} parent=1 // pred_fallthru
      _
    // Predicated region
    $region14: #{tpu_custom_call.1} parent=1 // pred_check
      _
    $region15: #{tpu_custom_call.1} parent=1 // pred_check_branch
      %49 = sbr.rel (0) target = $region17
    $region16: #{tpu_custom_call.1} parent=1 // pred_region
      _
    $region17: #{tpu_custom_call.1} parent=1 // pred_fallthru
      _
    // Predicated region
    $region18: #{tpu_custom_call.1} parent=1 // pred_check
      _
    $region19: #{tpu_custom_call.1} parent=1 // pred_check_branch
      %51 = sbr.rel (0) target = $region21
    $region20: #{tpu_custom_call.1} parent=1 // pred_region
      %52 = dma.done [#allocation3], 256
    $region21: #{tpu_custom_call.1} parent=1 // pred_fallthru
      _
    // Predicated region
    $region22: #{tpu_custom_call.1} parent=1 // pred_check
      _
    $region23: #{tpu_custom_call.1} parent=1 // pred_check_branch
      %54 = sbr.rel (0) target = $region25
    $region24: #{tpu_custom_call.1} parent=1 // pred_region
      %55 = dma.done [#allocation6], 256
    $region25: #{tpu_custom_call.1} parent=1 // pred_fallthru
      _
    // Predicated region
    $region26: #{tpu_custom_call.1} parent=1 // pred_check
      _
    $region27: #{tpu_custom_call.1} parent=1 // pred_check_branch
      %57 = sbr.rel (0) target = $region29
    $region28: #{tpu_custom_call.1} parent=1 // pred_region
      %58 = dma.done [#allocation6], 256
    $region29: #{tpu_custom_call.1} parent=1 // pred_fallthru
      _
    %v60 = vld [vmem:[#allocation2] sm:$0xff]
    %v61 = vld [vmem:[#allocation2 + $0x8] sm:$0xff]
    %v62 = vpack.c.bf16 %v61, %v60
    %v63 = vld [vmem:[#allocation5] sm:$0xf]
    %v64 = vld [vmem:[#allocation5 + $0x4] sm:$0xf]
    %v65 = vld [vmem:[#allocation5 + $0x8] sm:$0xf]
    %v66 = vld [vmem:[#allocation5 + $0xc] sm:$0xf]
    %v71 = vunpack.c.l.b16 %v63
    %v72 = vunpack.c.l.b16 %v64
    %v73 = vunpack.c.l.b16 %v65
    %v74 = vunpack.c.l.b16 %v66
    %v75 = vpack.c.b16 %v72, %v71
    %v76 = vpack.c.b16 %v74, %v73
    %vm79 = vcmask 261120
    %v81 = vsel %vm79, %v62, 0
    %83 = vmatprep.subr.bf16.mxu0 0
    %84 = vmatpush1.bf16.msra.mxu0 %v75
    %85 = vmatprep.subr.bf16.mxu0 0
    %86 = vmatpush1.bf16.msra.mxu0 %v76
    %87 = vmatprep.subr.bf16.mxu0 0
    %88 = vmatpush1.bf16.msra.mxu0 0
    %89 = vmatprep.subr.bf16.mxu0 0
    %90 = vmatpush1.bf16.msra.mxu0 0
    %91 = vmatprep.subr.bf16.mxu0 0
    %92 = vmatpush1.bf16.msra.mxu0 0
    %93 = vmatprep.subr.bf16.mxu0 0
    %94 = vmatpush1.bf16.msra.mxu0 0
    %95 = vmatprep.subr.bf16.mxu0 0
    %96 = vmatpush1.bf16.msra.mxu0 0
    %97 = vmatprep.subr.bf16.mxu0 0
    %98 = vmatpush1.bf16.msra.mxu0 0
    %99 = vmatprep.subr.bf16.mxu0 0
    %100 = vmatpush1.bf16.msra.mxu0 0
    %101 = vmatprep.subr.bf16.mxu0 0
    %102 = vmatpush1.bf16.msra.mxu0 0
    %103 = vmatprep.subr.bf16.mxu0 0
    %104 = vmatpush1.bf16.msra.mxu0 0
    %105 = vmatprep.subr.bf16.mxu0 0
    %106 = vmatpush1.bf16.msra.mxu0 0
    %107 = vmatprep.subr.bf16.mxu0 0
    %108 = vmatpush1.bf16.msra.mxu0 0
    %109 = vmatprep.subr.bf16.mxu0 0
    %110 = vmatpush1.bf16.msra.mxu0 0
    %111 = vmatprep.subr.bf16.mxu0 0
    %112 = vmatpush1.bf16.msra.mxu0 0
    %113 = vmatprep.subr.bf16.mxu0 0
    %114 = vmatpush1.bf16.msra.mxu0 0
    %115 = vmatprep.mubr.bf16.mxu0 0
    %116 = vmatmul.mubr.bf16.gmra.mrb[0].mxu0 %v81
    %v117 = vpop.f32.mrb[0].mxu0
    %v118 = vadd.f32 0.0, %v117
    %v119 = vpop.f32.mrb[0].mxu0
    %v120 = vpop.f32.mrb[0].mxu0
    %v121 = vadd.f32 0.0, %v120
    %v122 = vpop.f32.mrb[0].mxu0
    %123 = vdwg.mxu0
    %126 = vrot.lane.b32.xlu0 %v118, 124
    %v127 = vpop.permute.xlu0 %126
    %128 = vrot.lane.b32.xlu0 %v121, 124
    %v129 = vpop.permute.xlu0 %128
    %132 = vrot.lane.b32.xlu0 %v118, 120
    %v133 = vpop.permute.xlu0 %132
    %134 = vrot.lane.b32.xlu0 %v121, 120
    %v135 = vpop.permute.xlu0 %134
    %138 = vrot.lane.b32.xlu0 %v118, 116
    %v139 = vpop.permute.xlu0 %138
    %140 = vrot.lane.b32.xlu0 %v121, 116
    %v141 = vpop.permute.xlu0 %140
    %144 = vrot.lane.b32.xlu0 %v118, 112
    %v145 = vpop.permute.xlu0 %144
    %146 = vrot.lane.b32.xlu0 %v121, 112
    %v147 = vpop.permute.xlu0 %146
    %150 = vrot.lane.b32.xlu0 %v118, 108
    %v151 = vpop.permute.xlu0 %150
    %152 = vrot.lane.b32.xlu0 %v121, 108
    %v153 = vpop.permute.xlu0 %152
    %156 = vrot.lane.b32.xlu0 %v118, 104
    %v157 = vpop.permute.xlu0 %156
    %158 = vrot.lane.b32.xlu0 %v121, 104
    %v159 = vpop.permute.xlu0 %158
    %162 = vrot.lane.b32.xlu0 %v118, 100
    %v163 = vpop.permute.xlu0 %162
    %164 = vrot.lane.b32.xlu0 %v121, 100
    %v165 = vpop.permute.xlu0 %164
    %v168 = vcombine.low %v118, %v133
    %v169 = vcombine.high %v118, %v133
    %v171 = vunpack.c.l.s4 1983009808
    %v172 = vunpack.c.0.s8 %v171
    %v173 = vlaneseq
    %v174 = vshrl.u32 %v173, 7
    %v175 = vsub.s32 %v172, %v174
    %v176 = vrot.slane %v168, %v175
    %v178 = vunpack.c.l.s4 1983009808
    %v179 = vunpack.c.0.s8 %v178
    %v180 = vlaneseq
    %v181 = vshrl.u32 %v180, 7
    %v182 = vsub.s32 %v179, %v181
    %v183 = vrot.slane %v169, %v182
    %v184 = vcombine.low %v127, %v139
    %v185 = vcombine.high %v127, %v139
    %v187 = vunpack.c.l.s4 1983009808
    %v188 = vunpack.c.0.s8 %v187
    %v189 = vlaneseq
    %v190 = vshrl.u32 %v189, 7
    %v191 = vsub.s32 %v188, %v190
    %v192 = vrot.slane %v184, %v191
    %v194 = vunpack.c.l.s4 1983009808
    %v195 = vunpack.c.0.s8 %v194
    %v196 = vlaneseq
    %v197 = vshrl.u32 %v196, 7
    %v198 = vsub.s32 %v195, %v197
    %v199 = vrot.slane %v185, %v198
    %v200 = vcombine.low %v145, %v157
    %v201 = vcombine.high %v145, %v157
    %v203 = vunpack.c.l.s4 1983009808
    %v204 = vunpack.c.0.s8 %v203
    %v205 = vlaneseq
    %v206 = vshrl.u32 %v205, 7
    %v207 = vsub.s32 %v204, %v206
    %v208 = vrot.slane %v200, %v207
    %v210 = vunpack.c.l.s4 1983009808
    %v211 = vunpack.c.0.s8 %v210
    %v212 = vlaneseq
    %v213 = vshrl.u32 %v212, 7
    %v214 = vsub.s32 %v211, %v213
    %v215 = vrot.slane %v201, %v214
    %v216 = vcombine.low %v151, %v163
    %v217 = vcombine.high %v151, %v163
    %v219 = vunpack.c.l.s4 1983009808
    %v220 = vunpack.c.0.s8 %v219
    %v221 = vlaneseq
    %v222 = vshrl.u32 %v221, 7
    %v223 = vsub.s32 %v220, %v222
    %v224 = vrot.slane %v216, %v223
    %v226 = vunpack.c.l.s4 1983009808
    %v227 = vunpack.c.0.s8 %v226
    %v228 = vlaneseq
    %v229 = vshrl.u32 %v228, 7
    %v230 = vsub.s32 %v227, %v229
    %v231 = vrot.slane %v217, %v230
    %v232 = vcombine.low %v176, %v192
    %v233 = vcombine.high %v176, %v192
    %v235 = vunpack.c.l.s4 1934713408
    %v236 = vunpack.c.0.s8 %v235
    %v237 = vlaneseq
    %v238 = vshrl.u32 %v237, 7
    %v239 = vsub.s32 %v236, %v238
    %v240 = vrot.slane %v232, %v239
    %v242 = vunpack.c.l.s4 1934713408
    %v243 = vunpack.c.0.s8 %v242
    %v244 = vlaneseq
    %v245 = vshrl.u32 %v244, 7
    %v246 = vsub.s32 %v243, %v245
    %v247 = vrot.slane %v233, %v246
    %v248 = vcombine.low %v183, %v199
    %v249 = vcombine.high %v183, %v199
    %v251 = vunpack.c.l.s4 1934713408
    %v252 = vunpack.c.0.s8 %v251
    %v253 = vlaneseq
    %v254 = vshrl.u32 %v253, 7
    %v255 = vsub.s32 %v252, %v254
    %v256 = vrot.slane %v248, %v255
    %v258 = vunpack.c.l.s4 1934713408
    %v259 = vunpack.c.0.s8 %v258
    %v260 = vlaneseq
    %v261 = vshrl.u32 %v260, 7
    %v262 = vsub.s32 %v259, %v261
    %v263 = vrot.slane %v249, %v262
    %v264 = vcombine.low %v208, %v224
    %v265 = vcombine.high %v208, %v224
    %v267 = vunpack.c.l.s4 1934713408
    %v268 = vunpack.c.0.s8 %v267
    %v269 = vlaneseq
    %v270 = vshrl.u32 %v269, 7
    %v271 = vsub.s32 %v268, %v270
    %v272 = vrot.slane %v264, %v271
    %v274 = vunpack.c.l.s4 1934713408
    %v275 = vunpack.c.0.s8 %v274
    %v276 = vlaneseq
    %v277 = vshrl.u32 %v276, 7
    %v278 = vsub.s32 %v275, %v277
    %v279 = vrot.slane %v265, %v278
    %v280 = vcombine.low %v215, %v231
    %v281 = vcombine.high %v215, %v231
    %v283 = vunpack.c.l.s4 1934713408
    %v284 = vunpack.c.0.s8 %v283
    %v285 = vlaneseq
    %v286 = vshrl.u32 %v285, 7
    %v287 = vsub.s32 %v284, %v286
    %v288 = vrot.slane %v280, %v287
    %v290 = vunpack.c.l.s4 1934713408
    %v291 = vunpack.c.0.s8 %v290
    %v292 = vlaneseq
    %v293 = vshrl.u32 %v292, 7
    %v294 = vsub.s32 %v291, %v293
    %v295 = vrot.slane %v281, %v294
    %v296 = vcombine.low %v240, %v272
    %v297 = vcombine.high %v240, %v272
    %v298 = vcombine.low %v247, %v279
    %v299 = vcombine.high %v247, %v279
    %v300 = vcombine.low %v256, %v288
    %v301 = vcombine.high %v256, %v288
    %v302 = vcombine.low %v263, %v295
    %v303 = vcombine.high %v263, %v295
    %v304 = vcombine.low %v121, %v135
    %v305 = vcombine.high %v121, %v135
    %v307 = vunpack.c.l.s4 1983009808
    %v308 = vunpack.c.0.s8 %v307
    %v309 = vlaneseq
    %v310 = vshrl.u32 %v309, 7
    %v311 = vsub.s32 %v308, %v310
    %v312 = vrot.slane %v304, %v311
    %v314 = vunpack.c.l.s4 1983009808
    %v315 = vunpack.c.0.s8 %v314
    %v316 = vlaneseq
    %v317 = vshrl.u32 %v316, 7
    %v318 = vsub.s32 %v315, %v317
    %v319 = vrot.slane %v305, %v318
    %v320 = vcombine.low %v129, %v141
    %v321 = vcombine.high %v129, %v141
    %v323 = vunpack.c.l.s4 1983009808
    %v324 = vunpack.c.0.s8 %v323
    %v325 = vlaneseq
    %v326 = vshrl.u32 %v325, 7
    %v327 = vsub.s32 %v324, %v326
    %v328 = vrot.slane %v320, %v327
    %v330 = vunpack.c.l.s4 1983009808
    %v331 = vunpack.c.0.s8 %v330
    %v332 = vlaneseq
    %v333 = vshrl.u32 %v332, 7
    %v334 = vsub.s32 %v331, %v333
    %v335 = vrot.slane %v321, %v334
    %v336 = vcombine.low %v147, %v159
    %v337 = vcombine.high %v147, %v159
    %v339 = vunpack.c.l.s4 1983009808
    %v340 = vunpack.c.0.s8 %v339
    %v341 = vlaneseq
    %v342 = vshrl.u32 %v341, 7
    %v343 = vsub.s32 %v340, %v342
    %v344 = vrot.slane %v336, %v343
    %v346 = vunpack.c.l.s4 1983009808
    %v347 = vunpack.c.0.s8 %v346
    %v348 = vlaneseq
    %v349 = vshrl.u32 %v348, 7
    %v350 = vsub.s32 %v347, %v349
    %v351 = vrot.slane %v337, %v350
    %v352 = vcombine.low %v153, %v165
    %v353 = vcombine.high %v153, %v165
    %v355 = vunpack.c.l.s4 1983009808
    %v356 = vunpack.c.0.s8 %v355
    %v357 = vlaneseq
    %v358 = vshrl.u32 %v357, 7
    %v359 = vsub.s32 %v356, %v358
    %v360 = vrot.slane %v352, %v359
    %v362 = vunpack.c.l.s4 1983009808
    %v363 = vunpack.c.0.s8 %v362
    %v364 = vlaneseq
    %v365 = vshrl.u32 %v364, 7
    %v366 = vsub.s32 %v363, %v365
    %v367 = vrot.slane %v353, %v366
    %v368 = vcombine.low %v312, %v328
    %v369 = vcombine.high %v312, %v328
    %v371 = vunpack.c.l.s4 1934713408
    %v372 = vunpack.c.0.s8 %v371
    %v373 = vlaneseq
    %v374 = vshrl.u32 %v373, 7
    %v375 = vsub.s32 %v372, %v374
    %v376 = vrot.slane %v368, %v375
    %v378 = vunpack.c.l.s4 1934713408
    %v379 = vunpack.c.0.s8 %v378
    %v380 = vlaneseq
    %v381 = vshrl.u32 %v380, 7
    %v382 = vsub.s32 %v379, %v381
    %v383 = vrot.slane %v369, %v382
    %v384 = vcombine.low %v319, %v335
    %v385 = vcombine.high %v319, %v335
    %v387 = vunpack.c.l.s4 1934713408
    %v388 = vunpack.c.0.s8 %v387
    %v389 = vlaneseq
    %v390 = vshrl.u32 %v389, 7
    %v391 = vsub.s32 %v388, %v390
    %v392 = vrot.slane %v384, %v391
    %v394 = vunpack.c.l.s4 1934713408
    %v395 = vunpack.c.0.s8 %v394
    %v396 = vlaneseq
    %v397 = vshrl.u32 %v396, 7
    %v398 = vsub.s32 %v395, %v397
    %v399 = vrot.slane %v385, %v398
    %v400 = vcombine.low %v344, %v360
    %v401 = vcombine.high %v344, %v360
    %v403 = vunpack.c.l.s4 1934713408
    %v404 = vunpack.c.0.s8 %v403
    %v405 = vlaneseq
    %v406 = vshrl.u32 %v405, 7
    %v407 = vsub.s32 %v404, %v406
    %v408 = vrot.slane %v400, %v407
    %v410 = vunpack.c.l.s4 1934713408
    %v411 = vunpack.c.0.s8 %v410
    %v412 = vlaneseq
    %v413 = vshrl.u32 %v412, 7
    %v414 = vsub.s32 %v411, %v413
    %v415 = vrot.slane %v401, %v414
    %v416 = vcombine.low %v351, %v367
    %v417 = vcombine.high %v351, %v367
    %v419 = vunpack.c.l.s4 1934713408
    %v420 = vunpack.c.0.s8 %v419
    %v421 = vlaneseq
    %v422 = vshrl.u32 %v421, 7
    %v423 = vsub.s32 %v420, %v422
    %v424 = vrot.slane %v416, %v423
    %v426 = vunpack.c.l.s4 1934713408
    %v427 = vunpack.c.0.s8 %v426
    %v428 = vlaneseq
    %v429 = vshrl.u32 %v428, 7
    %v430 = vsub.s32 %v427, %v429
    %v431 = vrot.slane %v417, %v430
    %v432 = vcombine.low %v376, %v408
    %v433 = vcombine.high %v376, %v408
    %v434 = vcombine.low %v383, %v415
    %v435 = vcombine.high %v383, %v415
    %v436 = vcombine.low %v392, %v424
    %v437 = vcombine.high %v392, %v424
    %v438 = vcombine.low %v399, %v431
    %v439 = vcombine.high %v399, %v431
    %v440 = vcombine.low %v296, %v298
    %v441 = vcombine.high %v296, %v298
    %v443 = vunpack.c.l.s4 1983009808
    %v444 = vunpack.c.0.s8 %v443
    %v445 = vlaneseq
    %v446 = vshrl.u32 %v445, 7
    %v447 = vsub.s32 %v444, %v446
    %v448 = vrot.slane %v440, %v447
    %v450 = vunpack.c.l.s4 1983009808
    %v451 = vunpack.c.0.s8 %v450
    %v452 = vlaneseq
    %v453 = vshrl.u32 %v452, 7
    %v454 = vsub.s32 %v451, %v453
    %v455 = vrot.slane %v441, %v454
    %v456 = vcombine.low %v297, %v299
    %v457 = vcombine.high %v297, %v299
    %v459 = vunpack.c.l.s4 1983009808
    %v460 = vunpack.c.0.s8 %v459
    %v461 = vlaneseq
    %v462 = vshrl.u32 %v461, 7
    %v463 = vsub.s32 %v460, %v462
    %v464 = vrot.slane %v456, %v463
    %v466 = vunpack.c.l.s4 1983009808
    %v467 = vunpack.c.0.s8 %v466
    %v468 = vlaneseq
    %v469 = vshrl.u32 %v468, 7
    %v470 = vsub.s32 %v467, %v469
    %v471 = vrot.slane %v457, %v470
    %v472 = vcombine.low %v300, %v302
    %v473 = vcombine.high %v300, %v302
    %v475 = vunpack.c.l.s4 1983009808
    %v476 = vunpack.c.0.s8 %v475
    %v477 = vlaneseq
    %v478 = vshrl.u32 %v477, 7
    %v479 = vsub.s32 %v476, %v478
    %v480 = vrot.slane %v472, %v479
    %v482 = vunpack.c.l.s4 1983009808
    %v483 = vunpack.c.0.s8 %v482
    %v484 = vlaneseq
    %v485 = vshrl.u32 %v484, 7
    %v486 = vsub.s32 %v483, %v485
    %v487 = vrot.slane %v473, %v486
    %v488 = vcombine.low %v301, %v303
    %v489 = vcombine.high %v301, %v303
    %v491 = vunpack.c.l.s4 1983009808
    %v492 = vunpack.c.0.s8 %v491
    %v493 = vlaneseq
    %v494 = vshrl.u32 %v493, 7
    %v495 = vsub.s32 %v492, %v494
    %v496 = vrot.slane %v488, %v495
    %v498 = vunpack.c.l.s4 1983009808
    %v499 = vunpack.c.0.s8 %v498
    %v500 = vlaneseq
    %v501 = vshrl.u32 %v500, 7
    %v502 = vsub.s32 %v499, %v501
    %v503 = vrot.slane %v489, %v502
    %v504 = vcombine.low %v448, %v464
    %v505 = vcombine.high %v448, %v464
    %v507 = vunpack.c.l.s4 1934713408
    %v508 = vunpack.c.0.s8 %v507
    %v509 = vlaneseq
    %v510 = vshrl.u32 %v509, 7
    %v511 = vsub.s32 %v508, %v510
    %v512 = vrot.slane %v504, %v511
    %v514 = vunpack.c.l.s4 1934713408
    %v515 = vunpack.c.0.s8 %v514
    %v516 = vlaneseq
    %v517 = vshrl.u32 %v516, 7
    %v518 = vsub.s32 %v515, %v517
    %v519 = vrot.slane %v505, %v518
    %v520 = vcombine.low %v455, %v471
    %v521 = vcombine.high %v455, %v471
    %v523 = vunpack.c.l.s4 1934713408
    %v524 = vunpack.c.0.s8 %v523
    %v525 = vlaneseq
    %v526 = vshrl.u32 %v525, 7
    %v527 = vsub.s32 %v524, %v526
    %v528 = vrot.slane %v520, %v527
    %v530 = vunpack.c.l.s4 1934713408
    %v531 = vunpack.c.0.s8 %v530
    %v532 = vlaneseq
    %v533 = vshrl.u32 %v532, 7
    %v534 = vsub.s32 %v531, %v533
    %v535 = vrot.slane %v521, %v534
    %v536 = vcombine.low %v480, %v496
    %v537 = vcombine.high %v480, %v496
    %v539 = vunpack.c.l.s4 1934713408
    %v540 = vunpack.c.0.s8 %v539
    %v541 = vlaneseq
    %v542 = vshrl.u32 %v541, 7
    %v543 = vsub.s32 %v540, %v542
    %v544 = vrot.slane %v536, %v543
    %v546 = vunpack.c.l.s4 1934713408
    %v547 = vunpack.c.0.s8 %v546
    %v548 = vlaneseq
    %v549 = vshrl.u32 %v548, 7
    %v550 = vsub.s32 %v547, %v549
    %v551 = vrot.slane %v537, %v550
    %v552 = vcombine.low %v487, %v503
    %v553 = vcombine.high %v487, %v503
    %v555 = vunpack.c.l.s4 1934713408
    %v556 = vunpack.c.0.s8 %v555
    %v557 = vlaneseq
    %v558 = vshrl.u32 %v557, 7
    %v559 = vsub.s32 %v556, %v558
    %v560 = vrot.slane %v552, %v559
    %v562 = vunpack.c.l.s4 1934713408
    %v563 = vunpack.c.0.s8 %v562
    %v564 = vlaneseq
    %v565 = vshrl.u32 %v564, 7
    %v566 = vsub.s32 %v563, %v565
    %v567 = vrot.slane %v553, %v566
    %v568 = vcombine.low %v512, %v544
    %v569 = vcombine.high %v512, %v544
    %v570 = vcombine.low %v519, %v551
    %v571 = vcombine.high %v519, %v551
    %v572 = vcombine.low %v528, %v560
    %v573 = vcombine.high %v528, %v560
    %v574 = vcombine.low %v535, %v567
    %v575 = vcombine.high %v535, %v567
    %v576 = vcombine.low %v432, %v434
    %v577 = vcombine.high %v432, %v434
    %v579 = vunpack.c.l.s4 1983009808
    %v580 = vunpack.c.0.s8 %v579
    %v581 = vlaneseq
    %v582 = vshrl.u32 %v581, 7
    %v583 = vsub.s32 %v580, %v582
    %v584 = vrot.slane %v576, %v583
    %v586 = vunpack.c.l.s4 1983009808
    %v587 = vunpack.c.0.s8 %v586
    %v588 = vlaneseq
    %v589 = vshrl.u32 %v588, 7
    %v590 = vsub.s32 %v587, %v589
    %v591 = vrot.slane %v577, %v590
    %v592 = vcombine.low %v433, %v435
    %v593 = vcombine.high %v433, %v435
    %v595 = vunpack.c.l.s4 1983009808
    %v596 = vunpack.c.0.s8 %v595
    %v597 = vlaneseq
    %v598 = vshrl.u32 %v597, 7
    %v599 = vsub.s32 %v596, %v598
    %v600 = vrot.slane %v592, %v599
    %v602 = vunpack.c.l.s4 1983009808
    %v603 = vunpack.c.0.s8 %v602
    %v604 = vlaneseq
    %v605 = vshrl.u32 %v604, 7
    %v606 = vsub.s32 %v603, %v605
    %v607 = vrot.slane %v593, %v606
    %v608 = vcombine.low %v436, %v438
    %v609 = vcombine.high %v436, %v438
    %v611 = vunpack.c.l.s4 1983009808
    %v612 = vunpack.c.0.s8 %v611
    %v613 = vlaneseq
    %v614 = vshrl.u32 %v613, 7
    %v615 = vsub.s32 %v612, %v614
    %v616 = vrot.slane %v608, %v615
    %v618 = vunpack.c.l.s4 1983009808
    %v619 = vunpack.c.0.s8 %v618
    %v620 = vlaneseq
    %v621 = vshrl.u32 %v620, 7
    %v622 = vsub.s32 %v619, %v621
    %v623 = vrot.slane %v609, %v622
    %v624 = vcombine.low %v437, %v439
    %v625 = vcombine.high %v437, %v439
    %v627 = vunpack.c.l.s4 1983009808
    %v628 = vunpack.c.0.s8 %v627
    %v629 = vlaneseq
    %v630 = vshrl.u32 %v629, 7
    %v631 = vsub.s32 %v628, %v630
    %v632 = vrot.slane %v624, %v631
    %v634 = vunpack.c.l.s4 1983009808
    %v635 = vunpack.c.0.s8 %v634
    %v636 = vlaneseq
    %v637 = vshrl.u32 %v636, 7
    %v638 = vsub.s32 %v635, %v637
    %v639 = vrot.slane %v625, %v638
    %v640 = vcombine.low %v584, %v600
    %v641 = vcombine.high %v584, %v600
    %v643 = vunpack.c.l.s4 1934713408
    %v644 = vunpack.c.0.s8 %v643
    %v645 = vlaneseq
    %v646 = vshrl.u32 %v645, 7
    %v647 = vsub.s32 %v644, %v646
    %v648 = vrot.slane %v640, %v647
    %v650 = vunpack.c.l.s4 1934713408
    %v651 = vunpack.c.0.s8 %v650
    %v652 = vlaneseq
    %v653 = vshrl.u32 %v652, 7
    %v654 = vsub.s32 %v651, %v653
    %v655 = vrot.slane %v641, %v654
    %v656 = vcombine.low %v591, %v607
    %v657 = vcombine.high %v591, %v607
    %v659 = vunpack.c.l.s4 1934713408
    %v660 = vunpack.c.0.s8 %v659
    %v661 = vlaneseq
    %v662 = vshrl.u32 %v661, 7
    %v663 = vsub.s32 %v660, %v662
    %v664 = vrot.slane %v656, %v663
    %v666 = vunpack.c.l.s4 1934713408
    %v667 = vunpack.c.0.s8 %v666
    %v668 = vlaneseq
    %v669 = vshrl.u32 %v668, 7
    %v670 = vsub.s32 %v667, %v669
    %v671 = vrot.slane %v657, %v670
    %v672 = vcombine.low %v616, %v632
    %v673 = vcombine.high %v616, %v632
    %v675 = vunpack.c.l.s4 1934713408
    %v676 = vunpack.c.0.s8 %v675
    %v677 = vlaneseq
    %v678 = vshrl.u32 %v677, 7
    %v679 = vsub.s32 %v676, %v678
    %v680 = vrot.slane %v672, %v679
    %v682 = vunpack.c.l.s4 1934713408
    %v683 = vunpack.c.0.s8 %v682
    %v684 = vlaneseq
    %v685 = vshrl.u32 %v684, 7
    %v686 = vsub.s32 %v683, %v685
    %v687 = vrot.slane %v673, %v686
    %v688 = vcombine.low %v623, %v639
    %v689 = vcombine.high %v623, %v639
    %v691 = vunpack.c.l.s4 1934713408
    %v692 = vunpack.c.0.s8 %v691
    %v693 = vlaneseq
    %v694 = vshrl.u32 %v693, 7
    %v695 = vsub.s32 %v692, %v694
    %v696 = vrot.slane %v688, %v695
    %v698 = vunpack.c.l.s4 1934713408
    %v699 = vunpack.c.0.s8 %v698
    %v700 = vlaneseq
    %v701 = vshrl.u32 %v700, 7
    %v702 = vsub.s32 %v699, %v701
    %v703 = vrot.slane %v689, %v702
    %v704 = vcombine.low %v648, %v680
    %v705 = vcombine.high %v648, %v680
    %v706 = vcombine.low %v655, %v687
    %v707 = vcombine.high %v655, %v687
    %v708 = vcombine.low %v664, %v696
    %v709 = vcombine.high %v664, %v696
    %v710 = vcombine.low %v671, %v703
    %v711 = vcombine.high %v671, %v703
    %712 = vrot.lane.b32.xlu0 %v118, 96
    %v713 = vpop.permute.xlu0 %712
    %714 = vrot.lane.b32.xlu0 %v121, 96
    %v715 = vpop.permute.xlu0 %714
    %716 = vrot.lane.b32.xlu0 %v127, 96
    %v717 = vpop.permute.xlu0 %716
    %718 = vrot.lane.b32.xlu0 %v129, 96
    %v719 = vpop.permute.xlu0 %718
    %720 = vrot.lane.b32.xlu0 %v133, 96
    %v721 = vpop.permute.xlu0 %720
    %722 = vrot.lane.b32.xlu0 %v135, 96
    %v723 = vpop.permute.xlu0 %722
    %724 = vrot.lane.b32.xlu0 %v139, 96
    %v725 = vpop.permute.xlu0 %724
    %726 = vrot.lane.b32.xlu0 %v141, 96
    %v727 = vpop.permute.xlu0 %726
    %728 = vrot.lane.b32.xlu0 %v145, 96
    %v729 = vpop.permute.xlu0 %728
    %730 = vrot.lane.b32.xlu0 %v147, 96
    %v731 = vpop.permute.xlu0 %730
    %732 = vrot.lane.b32.xlu0 %v151, 96
    %v733 = vpop.permute.xlu0 %732
    %734 = vrot.lane.b32.xlu0 %v153, 96
    %v735 = vpop.permute.xlu0 %734
    %736 = vrot.lane.b32.xlu0 %v157, 96
    %v737 = vpop.permute.xlu0 %736
    %738 = vrot.lane.b32.xlu0 %v159, 96
    %v739 = vpop.permute.xlu0 %738
    %740 = vrot.lane.b32.xlu0 %v163, 96
    %v741 = vpop.permute.xlu0 %740
    %742 = vrot.lane.b32.xlu0 %v165, 96
    %v743 = vpop.permute.xlu0 %742
    %v760 = vcombine.low %v713, %v721
    %v761 = vcombine.high %v713, %v721
    %v763 = vunpack.c.l.s4 1983009808
    %v764 = vunpack.c.0.s8 %v763
    %v765 = vlaneseq
    %v766 = vshrl.u32 %v765, 7
    %v767 = vsub.s32 %v764, %v766
    %v768 = vrot.slane %v760, %v767
    %v770 = vunpack.c.l.s4 1983009808
    %v771 = vunpack.c.0.s8 %v770
    %v772 = vlaneseq
    %v773 = vshrl.u32 %v772, 7
    %v774 = vsub.s32 %v771, %v773
    %v775 = vrot.slane %v761, %v774
    %v776 = vcombine.low %v717, %v725
    %v777 = vcombine.high %v717, %v725
    %v779 = vunpack.c.l.s4 1983009808
    %v780 = vunpack.c.0.s8 %v779
    %v781 = vlaneseq
    %v782 = vshrl.u32 %v781, 7
    %v783 = vsub.s32 %v780, %v782
    %v784 = vrot.slane %v776, %v783
    %v786 = vunpack.c.l.s4 1983009808
    %v787 = vunpack.c.0.s8 %v786
    %v788 = vlaneseq
    %v789 = vshrl.u32 %v788, 7
    %v790 = vsub.s32 %v787, %v789
    %v791 = vrot.slane %v777, %v790
    %v792 = vcombine.low %v729, %v737
    %v793 = vcombine.high %v729, %v737
    %v795 = vunpack.c.l.s4 1983009808
    %v796 = vunpack.c.0.s8 %v795
    %v797 = vlaneseq
    %v798 = vshrl.u32 %v797, 7
    %v799 = vsub.s32 %v796, %v798
    %v800 = vrot.slane %v792, %v799
    %v802 = vunpack.c.l.s4 1983009808
    %v803 = vunpack.c.0.s8 %v802
    %v804 = vlaneseq
    %v805 = vshrl.u32 %v804, 7
    %v806 = vsub.s32 %v803, %v805
    %v807 = vrot.slane %v793, %v806
    %v808 = vcombine.low %v733, %v741
    %v809 = vcombine.high %v733, %v741
    %v811 = vunpack.c.l.s4 1983009808
    %v812 = vunpack.c.0.s8 %v811
    %v813 = vlaneseq
    %v814 = vshrl.u32 %v813, 7
    %v815 = vsub.s32 %v812, %v814
    %v816 = vrot.slane %v808, %v815
    %v818 = vunpack.c.l.s4 1983009808
    %v819 = vunpack.c.0.s8 %v818
    %v820 = vlaneseq
    %v821 = vshrl.u32 %v820, 7
    %v822 = vsub.s32 %v819, %v821
    %v823 = vrot.slane %v809, %v822
    %v824 = vcombine.low %v768, %v784
    %v825 = vcombine.high %v768, %v784
    %v827 = vunpack.c.l.s4 1934713408
    %v828 = vunpack.c.0.s8 %v827
    %v829 = vlaneseq
    %v830 = vshrl.u32 %v829, 7
    %v831 = vsub.s32 %v828, %v830
    %v832 = vrot.slane %v824, %v831
    %v834 = vunpack.c.l.s4 1934713408
    %v835 = vunpack.c.0.s8 %v834
    %v836 = vlaneseq
    %v837 = vshrl.u32 %v836, 7
    %v838 = vsub.s32 %v835, %v837
    %v839 = vrot.slane %v825, %v838
    %v840 = vcombine.low %v775, %v791
    %v841 = vcombine.high %v775, %v791
    %v843 = vunpack.c.l.s4 1934713408
    %v844 = vunpack.c.0.s8 %v843
    %v845 = vlaneseq
    %v846 = vshrl.u32 %v845, 7
    %v847 = vsub.s32 %v844, %v846
    %v848 = vrot.slane %v840, %v847
    %v850 = vunpack.c.l.s4 1934713408
    %v851 = vunpack.c.0.s8 %v850
    %v852 = vlaneseq
    %v853 = vshrl.u32 %v852, 7
    %v854 = vsub.s32 %v851, %v853
    %v855 = vrot.slane %v841, %v854
    %v856 = vcombine.low %v800, %v816
    %v857 = vcombine.high %v800, %v816
    %v859 = vunpack.c.l.s4 1934713408
    %v860 = vunpack.c.0.s8 %v859
    %v861 = vlaneseq
    %v862 = vshrl.u32 %v861, 7
    %v863 = vsub.s32 %v860, %v862
    %v864 = vrot.slane %v856, %v863
    %v866 = vunpack.c.l.s4 1934713408
    %v867 = vunpack.c.0.s8 %v866
    %v868 = vlaneseq
    %v869 = vshrl.u32 %v868, 7
    %v870 = vsub.s32 %v867, %v869
    %v871 = vrot.slane %v857, %v870
    %v872 = vcombine.low %v807, %v823
    %v873 = vcombine.high %v807, %v823
    %v875 = vunpack.c.l.s4 1934713408
    %v876 = vunpack.c.0.s8 %v875
    %v877 = vlaneseq
    %v878 = vshrl.u32 %v877, 7
    %v879 = vsub.s32 %v876, %v878
    %v880 = vrot.slane %v872, %v879
    %v882 = vunpack.c.l.s4 1934713408
    %v883 = vunpack.c.0.s8 %v882
    %v884 = vlaneseq
    %v885 = vshrl.u32 %v884, 7
    %v886 = vsub.s32 %v883, %v885
    %v887 = vrot.slane %v873, %v886
    %v888 = vcombine.low %v832, %v864
    %v889 = vcombine.high %v832, %v864
    %v890 = vcombine.low %v839, %v871
    %v891 = vcombine.high %v839, %v871
    %v892 = vcombine.low %v848, %v880
    %v893 = vcombine.high %v848, %v880
    %v894 = vcombine.low %v855, %v887
    %v895 = vcombine.high %v855, %v887
    %v896 = vcombine.low %v715, %v723
    %v897 = vcombine.high %v715, %v723
    %v899 = vunpack.c.l.s4 1983009808
    %v900 = vunpack.c.0.s8 %v899
    %v901 = vlaneseq
    %v902 = vshrl.u32 %v901, 7
    %v903 = vsub.s32 %v900, %v902
    %v904 = vrot.slane %v896, %v903
    %v906 = vunpack.c.l.s4 1983009808
    %v907 = vunpack.c.0.s8 %v906
    %v908 = vlaneseq
    %v909 = vshrl.u32 %v908, 7
    %v910 = vsub.s32 %v907, %v909
    %v911 = vrot.slane %v897, %v910
    %v912 = vcombine.low %v719, %v727
    %v913 = vcombine.high %v719, %v727
    %v915 = vunpack.c.l.s4 1983009808
    %v916 = vunpack.c.0.s8 %v915
    %v917 = vlaneseq
    %v918 = vshrl.u32 %v917, 7
    %v919 = vsub.s32 %v916, %v918
    %v920 = vrot.slane %v912, %v919
    %v922 = vunpack.c.l.s4 1983009808
    %v923 = vunpack.c.0.s8 %v922
    %v924 = vlaneseq
    %v925 = vshrl.u32 %v924, 7
    %v926 = vsub.s32 %v923, %v925
    %v927 = vrot.slane %v913, %v926
    %v928 = vcombine.low %v731, %v739
    %v929 = vcombine.high %v731, %v739
    %v931 = vunpack.c.l.s4 1983009808
    %v932 = vunpack.c.0.s8 %v931
    %v933 = vlaneseq
    %v934 = vshrl.u32 %v933, 7
    %v935 = vsub.s32 %v932, %v934
    %v936 = vrot.slane %v928, %v935
    %v938 = vunpack.c.l.s4 1983009808
    %v939 = vunpack.c.0.s8 %v938
    %v940 = vlaneseq
    %v941 = vshrl.u32 %v940, 7
    %v942 = vsub.s32 %v939, %v941
    %v943 = vrot.slane %v929, %v942
    %v944 = vcombine.low %v735, %v743
    %v945 = vcombine.high %v735, %v743
    %v947 = vunpack.c.l.s4 1983009808
    %v948 = vunpack.c.0.s8 %v947
    %v949 = vlaneseq
    %v950 = vshrl.u32 %v949, 7
    %v951 = vsub.s32 %v948, %v950
    %v952 = vrot.slane %v944, %v951
    %v954 = vunpack.c.l.s4 1983009808
    %v955 = vunpack.c.0.s8 %v954
    %v956 = vlaneseq
    %v957 = vshrl.u32 %v956, 7
    %v958 = vsub.s32 %v955, %v957
    %v959 = vrot.slane %v945, %v958
    %v960 = vcombine.low %v904, %v920
    %v961 = vcombine.high %v904, %v920
    %v963 = vunpack.c.l.s4 1934713408
    %v964 = vunpack.c.0.s8 %v963
    %v965 = vlaneseq
    %v966 = vshrl.u32 %v965, 7
    %v967 = vsub.s32 %v964, %v966
    %v968 = vrot.slane %v960, %v967
    %v970 = vunpack.c.l.s4 1934713408
    %v971 = vunpack.c.0.s8 %v970
    %v972 = vlaneseq
    %v973 = vshrl.u32 %v972, 7
    %v974 = vsub.s32 %v971, %v973
    %v975 = vrot.slane %v961, %v974
    %v976 = vcombine.low %v911, %v927
    %v977 = vcombine.high %v911, %v927
    %v979 = vunpack.c.l.s4 1934713408
    %v980 = vunpack.c.0.s8 %v979
    %v981 = vlaneseq
    %v982 = vshrl.u32 %v981, 7
    %v983 = vsub.s32 %v980, %v982
    %v984 = vrot.slane %v976, %v983
    %v986 = vunpack.c.l.s4 1934713408
    %v987 = vunpack.c.0.s8 %v986
    %v988 = vlaneseq
    %v989 = vshrl.u32 %v988, 7
    %v990 = vsub.s32 %v987, %v989
    %v991 = vrot.slane %v977, %v990
    %v992 = vcombine.low %v936, %v952
    %v993 = vcombine.high %v936, %v952
    %v995 = vunpack.c.l.s4 1934713408
    %v996 = vunpack.c.0.s8 %v995
    %v997 = vlaneseq
    %v998 = vshrl.u32 %v997, 7
    %v999 = vsub.s32 %v996, %v998
    %v1000 = vrot.slane %v992, %v999
    %v1002 = vunpack.c.l.s4 1934713408
    %v1003 = vunpack.c.0.s8 %v1002
    %v1004 = vlaneseq
    %v1005 = vshrl.u32 %v1004, 7
    %v1006 = vsub.s32 %v1003, %v1005
    %v1007 = vrot.slane %v993, %v1006
    %v1008 = vcombine.low %v943, %v959
    %v1009 = vcombine.high %v943, %v959
    %v1011 = vunpack.c.l.s4 1934713408
    %v1012 = vunpack.c.0.s8 %v1011
    %v1013 = vlaneseq
    %v1014 = vshrl.u32 %v1013, 7
    %v1015 = vsub.s32 %v1012, %v1014
    %v1016 = vrot.slane %v1008, %v1015
    %v1018 = vunpack.c.l.s4 1934713408
    %v1019 = vunpack.c.0.s8 %v1018
    %v1020 = vlaneseq
    %v1021 = vshrl.u32 %v1020, 7
    %v1022 = vsub.s32 %v1019, %v1021
    %v1023 = vrot.slane %v1009, %v1022
    %v1024 = vcombine.low %v968, %v1000
    %v1025 = vcombine.high %v968, %v1000
    %v1026 = vcombine.low %v975, %v1007
    %v1027 = vcombine.high %v975, %v1007
    %v1028 = vcombine.low %v984, %v1016
    %v1029 = vcombine.high %v984, %v1016
    %v1030 = vcombine.low %v991, %v1023
    %v1031 = vcombine.high %v991, %v1023
    %v1032 = vcombine.low %v888, %v890
    %v1033 = vcombine.high %v888, %v890
    %v1035 = vunpack.c.l.s4 1983009808
    %v1036 = vunpack.c.0.s8 %v1035
    %v1037 = vlaneseq
    %v1038 = vshrl.u32 %v1037, 7
    %v1039 = vsub.s32 %v1036, %v1038
    %v1040 = vrot.slane %v1032, %v1039
    %v1042 = vunpack.c.l.s4 1983009808
    %v1043 = vunpack.c.0.s8 %v1042
    %v1044 = vlaneseq
    %v1045 = vshrl.u32 %v1044, 7
    %v1046 = vsub.s32 %v1043, %v1045
    %v1047 = vrot.slane %v1033, %v1046
    %v1048 = vcombine.low %v889, %v891
    %v1049 = vcombine.high %v889, %v891
    %v1051 = vunpack.c.l.s4 1983009808
    %v1052 = vunpack.c.0.s8 %v1051
    %v1053 = vlaneseq
    %v1054 = vshrl.u32 %v1053, 7
    %v1055 = vsub.s32 %v1052, %v1054
    %v1056 = vrot.slane %v1048, %v1055
    %v1058 = vunpack.c.l.s4 1983009808
    %v1059 = vunpack.c.0.s8 %v1058
    %v1060 = vlaneseq
    %v1061 = vshrl.u32 %v1060, 7
    %v1062 = vsub.s32 %v1059, %v1061
    %v1063 = vrot.slane %v1049, %v1062
    %v1064 = vcombine.low %v892, %v894
    %v1065 = vcombine.high %v892, %v894
    %v1067 = vunpack.c.l.s4 1983009808
    %v1068 = vunpack.c.0.s8 %v1067
    %v1069 = vlaneseq
    %v1070 = vshrl.u32 %v1069, 7
    %v1071 = vsub.s32 %v1068, %v1070
    %v1072 = vrot.slane %v1064, %v1071
    %v1074 = vunpack.c.l.s4 1983009808
    %v1075 = vunpack.c.0.s8 %v1074
    %v1076 = vlaneseq
    %v1077 = vshrl.u32 %v1076, 7
    %v1078 = vsub.s32 %v1075, %v1077
    %v1079 = vrot.slane %v1065, %v1078
    %v1080 = vcombine.low %v893, %v895
    %v1081 = vcombine.high %v893, %v895
    %v1083 = vunpack.c.l.s4 1983009808
    %v1084 = vunpack.c.0.s8 %v1083
    %v1085 = vlaneseq
    %v1086 = vshrl.u32 %v1085, 7
    %v1087 = vsub.s32 %v1084, %v1086
    %v1088 = vrot.slane %v1080, %v1087
    %v1090 = vunpack.c.l.s4 1983009808
    %v1091 = vunpack.c.0.s8 %v1090
    %v1092 = vlaneseq
    %v1093 = vshrl.u32 %v1092, 7
    %v1094 = vsub.s32 %v1091, %v1093
    %v1095 = vrot.slane %v1081, %v1094
    %v1096 = vcombine.low %v1040, %v1056
    %v1097 = vcombine.high %v1040, %v1056
    %v1099 = vunpack.c.l.s4 1934713408
    %v1100 = vunpack.c.0.s8 %v1099
    %v1101 = vlaneseq
    %v1102 = vshrl.u32 %v1101, 7
    %v1103 = vsub.s32 %v1100, %v1102
    %v1104 = vrot.slane %v1096, %v1103
    %v1106 = vunpack.c.l.s4 1934713408
    %v1107 = vunpack.c.0.s8 %v1106
    %v1108 = vlaneseq
    %v1109 = vshrl.u32 %v1108, 7
    %v1110 = vsub.s32 %v1107, %v1109
    %v1111 = vrot.slane %v1097, %v1110
    %v1112 = vcombine.low %v1047, %v1063
    %v1113 = vcombine.high %v1047, %v1063
    %v1115 = vunpack.c.l.s4 1934713408
    %v1116 = vunpack.c.0.s8 %v1115
    %v1117 = vlaneseq
    %v1118 = vshrl.u32 %v1117, 7
    %v1119 = vsub.s32 %v1116, %v1118
    %v1120 = vrot.slane %v1112, %v1119
    %v1122 = vunpack.c.l.s4 1934713408
    %v1123 = vunpack.c.0.s8 %v1122
    %v1124 = vlaneseq
    %v1125 = vshrl.u32 %v1124, 7
    %v1126 = vsub.s32 %v1123, %v1125
    %v1127 = vrot.slane %v1113, %v1126
    %v1128 = vcombine.low %v1072, %v1088
    %v1129 = vcombine.high %v1072, %v1088
    %v1131 = vunpack.c.l.s4 1934713408
    %v1132 = vunpack.c.0.s8 %v1131
    %v1133 = vlaneseq
    %v1134 = vshrl.u32 %v1133, 7
    %v1135 = vsub.s32 %v1132, %v1134
    %v1136 = vrot.slane %v1128, %v1135
    %v1138 = vunpack.c.l.s4 1934713408
    %v1139 = vunpack.c.0.s8 %v1138
    %v1140 = vlaneseq
    %v1141 = vshrl.u32 %v1140, 7
    %v1142 = vsub.s32 %v1139, %v1141
    %v1143 = vrot.slane %v1129, %v1142
    %v1144 = vcombine.low %v1079, %v1095
    %v1145 = vcombine.high %v1079, %v1095
    %v1147 = vunpack.c.l.s4 1934713408
    %v1148 = vunpack.c.0.s8 %v1147
    %v1149 = vlaneseq
    %v1150 = vshrl.u32 %v1149, 7
    %v1151 = vsub.s32 %v1148, %v1150
    %v1152 = vrot.slane %v1144, %v1151
    %v1154 = vunpack.c.l.s4 1934713408
    %v1155 = vunpack.c.0.s8 %v1154
    %v1156 = vlaneseq
    %v1157 = vshrl.u32 %v1156, 7
    %v1158 = vsub.s32 %v1155, %v1157
    %v1159 = vrot.slane %v1145, %v1158
    %v1160 = vcombine.low %v1104, %v1136
    %v1161 = vcombine.high %v1104, %v1136
    %v1162 = vcombine.low %v1111, %v1143
    %v1163 = vcombine.high %v1111, %v1143
    %v1164 = vcombine.low %v1120, %v1152
    %v1165 = vcombine.high %v1120, %v1152
    %v1166 = vcombine.low %v1127, %v1159
    %v1167 = vcombine.high %v1127, %v1159
    %v1168 = vcombine.low %v1024, %v1026
    %v1169 = vcombine.high %v1024, %v1026
    %v1171 = vunpack.c.l.s4 1983009808
    %v1172 = vunpack.c.0.s8 %v1171
    %v1173 = vlaneseq
    %v1174 = vshrl.u32 %v1173, 7
    %v1175 = vsub.s32 %v1172, %v1174
    %v1176 = vrot.slane %v1168, %v1175
    %v1178 = vunpack.c.l.s4 1983009808
    %v1179 = vunpack.c.0.s8 %v1178
    %v1180 = vlaneseq
    %v1181 = vshrl.u32 %v1180, 7
    %v1182 = vsub.s32 %v1179, %v1181
    %v1183 = vrot.slane %v1169, %v1182
    %v1184 = vcombine.low %v1025, %v1027
    %v1185 = vcombine.high %v1025, %v1027
    %v1187 = vunpack.c.l.s4 1983009808
    %v1188 = vunpack.c.0.s8 %v1187
    %v1189 = vlaneseq
    %v1190 = vshrl.u32 %v1189, 7
    %v1191 = vsub.s32 %v1188, %v1190
    %v1192 = vrot.slane %v1184, %v1191
    %v1194 = vunpack.c.l.s4 1983009808
    %v1195 = vunpack.c.0.s8 %v1194
    %v1196 = vlaneseq
    %v1197 = vshrl.u32 %v1196, 7
    %v1198 = vsub.s32 %v1195, %v1197
    %v1199 = vrot.slane %v1185, %v1198
    %v1200 = vcombine.low %v1028, %v1030
    %v1201 = vcombine.high %v1028, %v1030
    %v1203 = vunpack.c.l.s4 1983009808
    %v1204 = vunpack.c.0.s8 %v1203
    %v1205 = vlaneseq
    %v1206 = vshrl.u32 %v1205, 7
    %v1207 = vsub.s32 %v1204, %v1206
    %v1208 = vrot.slane %v1200, %v1207
    %v1210 = vunpack.c.l.s4 1983009808
    %v1211 = vunpack.c.0.s8 %v1210
    %v1212 = vlaneseq
    %v1213 = vshrl.u32 %v1212, 7
    %v1214 = vsub.s32 %v1211, %v1213
    %v1215 = vrot.slane %v1201, %v1214
    %v1216 = vcombine.low %v1029, %v1031
    %v1217 = vcombine.high %v1029, %v1031
    %v1219 = vunpack.c.l.s4 1983009808
    %v1220 = vunpack.c.0.s8 %v1219
    %v1221 = vlaneseq
    %v1222 = vshrl.u32 %v1221, 7
    %v1223 = vsub.s32 %v1220, %v1222
    %v1224 = vrot.slane %v1216, %v1223
    %v1226 = vunpack.c.l.s4 1983009808
    %v1227 = vunpack.c.0.s8 %v1226
    %v1228 = vlaneseq
    %v1229 = vshrl.u32 %v1228, 7
    %v1230 = vsub.s32 %v1227, %v1229
    %v1231 = vrot.slane %v1217, %v1230
    %v1232 = vcombine.low %v1176, %v1192
    %v1233 = vcombine.high %v1176, %v1192
    %v1235 = vunpack.c.l.s4 1934713408
    %v1236 = vunpack.c.0.s8 %v1235
    %v1237 = vlaneseq
    %v1238 = vshrl.u32 %v1237, 7
    %v1239 = vsub.s32 %v1236, %v1238
    %v1240 = vrot.slane %v1232, %v1239
    %v1242 = vunpack.c.l.s4 1934713408
    %v1243 = vunpack.c.0.s8 %v1242
    %v1244 = vlaneseq
    %v1245 = vshrl.u32 %v1244, 7
    %v1246 = vsub.s32 %v1243, %v1245
    %v1247 = vrot.slane %v1233, %v1246
    %v1248 = vcombine.low %v1183, %v1199
    %v1249 = vcombine.high %v1183, %v1199
    %v1251 = vunpack.c.l.s4 1934713408
    %v1252 = vunpack.c.0.s8 %v1251
    %v1253 = vlaneseq
    %v1254 = vshrl.u32 %v1253, 7
    %v1255 = vsub.s32 %v1252, %v1254
    %v1256 = vrot.slane %v1248, %v1255
    %v1258 = vunpack.c.l.s4 1934713408
    %v1259 = vunpack.c.0.s8 %v1258
    %v1260 = vlaneseq
    %v1261 = vshrl.u32 %v1260, 7
    %v1262 = vsub.s32 %v1259, %v1261
    %v1263 = vrot.slane %v1249, %v1262
    %v1264 = vcombine.low %v1208, %v1224
    %v1265 = vcombine.high %v1208, %v1224
    %v1267 = vunpack.c.l.s4 1934713408
    %v1268 = vunpack.c.0.s8 %v1267
    %v1269 = vlaneseq
    %v1270 = vshrl.u32 %v1269, 7
    %v1271 = vsub.s32 %v1268, %v1270
    %v1272 = vrot.slane %v1264, %v1271
    %v1274 = vunpack.c.l.s4 1934713408
    %v1275 = vunpack.c.0.s8 %v1274
    %v1276 = vlaneseq
    %v1277 = vshrl.u32 %v1276, 7
    %v1278 = vsub.s32 %v1275, %v1277
    %v1279 = vrot.slane %v1265, %v1278
    %v1280 = vcombine.low %v1215, %v1231
    %v1281 = vcombine.high %v1215, %v1231
    %v1283 = vunpack.c.l.s4 1934713408
    %v1284 = vunpack.c.0.s8 %v1283
    %v1285 = vlaneseq
    %v1286 = vshrl.u32 %v1285, 7
    %v1287 = vsub.s32 %v1284, %v1286
    %v1288 = vrot.slane %v1280, %v1287
    %v1290 = vunpack.c.l.s4 1934713408
    %v1291 = vunpack.c.0.s8 %v1290
    %v1292 = vlaneseq
    %v1293 = vshrl.u32 %v1292, 7
    %v1294 = vsub.s32 %v1291, %v1293
    %v1295 = vrot.slane %v1281, %v1294
    %v1296 = vcombine.low %v1240, %v1272
    %v1297 = vcombine.high %v1240, %v1272
    %v1298 = vcombine.low %v1247, %v1279
    %v1299 = vcombine.high %v1247, %v1279
    %v1300 = vcombine.low %v1256, %v1288
    %v1301 = vcombine.high %v1256, %v1288
    %v1302 = vcombine.low %v1263, %v1295
    %v1303 = vcombine.high %v1263, %v1295
    %1304 = vrot.lane.b32.xlu0 %v118, 64
    %v1305 = vpop.permute.xlu0 %1304
    %1306 = vrot.lane.b32.xlu0 %v121, 64
    %v1307 = vpop.permute.xlu0 %1306
    %1308 = vrot.lane.b32.xlu0 %v127, 64
    %v1309 = vpop.permute.xlu0 %1308
    %1310 = vrot.lane.b32.xlu0 %v129, 64
    %v1311 = vpop.permute.xlu0 %1310
    %1312 = vrot.lane.b32.xlu0 %v133, 64
    %v1313 = vpop.permute.xlu0 %1312
    %1314 = vrot.lane.b32.xlu0 %v135, 64
    %v1315 = vpop.permute.xlu0 %1314
    %1316 = vrot.lane.b32.xlu0 %v139, 64
    %v1317 = vpop.permute.xlu0 %1316
    %1318 = vrot.lane.b32.xlu0 %v141, 64
    %v1319 = vpop.permute.xlu0 %1318
    %1320 = vrot.lane.b32.xlu0 %v145, 64
    %v1321 = vpop.permute.xlu0 %1320
    %1322 = vrot.lane.b32.xlu0 %v147, 64
    %v1323 = vpop.permute.xlu0 %1322
    %1324 = vrot.lane.b32.xlu0 %v151, 64
    %v1325 = vpop.permute.xlu0 %1324
    %1326 = vrot.lane.b32.xlu0 %v153, 64
    %v1327 = vpop.permute.xlu0 %1326
    %1328 = vrot.lane.b32.xlu0 %v157, 64
    %v1329 = vpop.permute.xlu0 %1328
    %1330 = vrot.lane.b32.xlu0 %v159, 64
    %v1331 = vpop.permute.xlu0 %1330
    %1332 = vrot.lane.b32.xlu0 %v163, 64
    %v1333 = vpop.permute.xlu0 %1332
    %1334 = vrot.lane.b32.xlu0 %v165, 64
    %v1335 = vpop.permute.xlu0 %1334
    %v1352 = vcombine.low %v1305, %v1313
    %v1353 = vcombine.high %v1305, %v1313
    %v1355 = vunpack.c.l.s4 1983009808
    %v1356 = vunpack.c.0.s8 %v1355
    %v1357 = vlaneseq
    %v1358 = vshrl.u32 %v1357, 7
    %v1359 = vsub.s32 %v1356, %v1358
    %v1360 = vrot.slane %v1352, %v1359
    %v1362 = vunpack.c.l.s4 1983009808
    %v1363 = vunpack.c.0.s8 %v1362
    %v1364 = vlaneseq
    %v1365 = vshrl.u32 %v1364, 7
    %v1366 = vsub.s32 %v1363, %v1365
    %v1367 = vrot.slane %v1353, %v1366
    %v1368 = vcombine.low %v1309, %v1317
    %v1369 = vcombine.high %v1309, %v1317
    %v1371 = vunpack.c.l.s4 1983009808
    %v1372 = vunpack.c.0.s8 %v1371
    %v1373 = vlaneseq
    %v1374 = vshrl.u32 %v1373, 7
    %v1375 = vsub.s32 %v1372, %v1374
    %v1376 = vrot.slane %v1368, %v1375
    %v1378 = vunpack.c.l.s4 1983009808
    %v1379 = vunpack.c.0.s8 %v1378
    %v1380 = vlaneseq
    %v1381 = vshrl.u32 %v1380, 7
    %v1382 = vsub.s32 %v1379, %v1381
    %v1383 = vrot.slane %v1369, %v1382
    %v1384 = vcombine.low %v1321, %v1329
    %v1385 = vcombine.high %v1321, %v1329
    %v1387 = vunpack.c.l.s4 1983009808
    %v1388 = vunpack.c.0.s8 %v1387
    %v1389 = vlaneseq
    %v1390 = vshrl.u32 %v1389, 7
    %v1391 = vsub.s32 %v1388, %v1390
    %v1392 = vrot.slane %v1384, %v1391
    %v1394 = vunpack.c.l.s4 1983009808
    %v1395 = vunpack.c.0.s8 %v1394
    %v1396 = vlaneseq
    %v1397 = vshrl.u32 %v1396, 7
    %v1398 = vsub.s32 %v1395, %v1397
    %v1399 = vrot.slane %v1385, %v1398
    %v1400 = vcombine.low %v1325, %v1333
    %v1401 = vcombine.high %v1325, %v1333
    %v1403 = vunpack.c.l.s4 1983009808
    %v1404 = vunpack.c.0.s8 %v1403
    %v1405 = vlaneseq
    %v1406 = vshrl.u32 %v1405, 7
    %v1407 = vsub.s32 %v1404, %v1406
    %v1408 = vrot.slane %v1400, %v1407
    %v1410 = vunpack.c.l.s4 1983009808
    %v1411 = vunpack.c.0.s8 %v1410
    %v1412 = vlaneseq
    %v1413 = vshrl.u32 %v1412, 7
    %v1414 = vsub.s32 %v1411, %v1413
    %v1415 = vrot.slane %v1401, %v1414
    %v1416 = vcombine.low %v1360, %v1376
    %v1417 = vcombine.high %v1360, %v1376
    %v1419 = vunpack.c.l.s4 1934713408
    %v1420 = vunpack.c.0.s8 %v1419
    %v1421 = vlaneseq
    %v1422 = vshrl.u32 %v1421, 7
    %v1423 = vsub.s32 %v1420, %v1422
    %v1424 = vrot.slane %v1416, %v1423
    %v1426 = vunpack.c.l.s4 1934713408
    %v1427 = vunpack.c.0.s8 %v1426
    %v1428 = vlaneseq
    %v1429 = vshrl.u32 %v1428, 7
    %v1430 = vsub.s32 %v1427, %v1429
    %v1431 = vrot.slane %v1417, %v1430
    %v1432 = vcombine.low %v1367, %v1383
    %v1433 = vcombine.high %v1367, %v1383
    %v1435 = vunpack.c.l.s4 1934713408
    %v1436 = vunpack.c.0.s8 %v1435
    %v1437 = vlaneseq
    %v1438 = vshrl.u32 %v1437, 7
    %v1439 = vsub.s32 %v1436, %v1438
    %v1440 = vrot.slane %v1432, %v1439
    %v1442 = vunpack.c.l.s4 1934713408
    %v1443 = vunpack.c.0.s8 %v1442
    %v1444 = vlaneseq
    %v1445 = vshrl.u32 %v1444, 7
    %v1446 = vsub.s32 %v1443, %v1445
    %v1447 = vrot.slane %v1433, %v1446
    %v1448 = vcombine.low %v1392, %v1408
    %v1449 = vcombine.high %v1392, %v1408
    %v1451 = vunpack.c.l.s4 1934713408
    %v1452 = vunpack.c.0.s8 %v1451
    %v1453 = vlaneseq
    %v1454 = vshrl.u32 %v1453, 7
    %v1455 = vsub.s32 %v1452, %v1454
    %v1456 = vrot.slane %v1448, %v1455
    %v1458 = vunpack.c.l.s4 1934713408
    %v1459 = vunpack.c.0.s8 %v1458
    %v1460 = vlaneseq
    %v1461 = vshrl.u32 %v1460, 7
    %v1462 = vsub.s32 %v1459, %v1461
    %v1463 = vrot.slane %v1449, %v1462
    %v1464 = vcombine.low %v1399, %v1415
    %v1465 = vcombine.high %v1399, %v1415
    %v1467 = vunpack.c.l.s4 1934713408
    %v1468 = vunpack.c.0.s8 %v1467
    %v1469 = vlaneseq
    %v1470 = vshrl.u32 %v1469, 7
    %v1471 = vsub.s32 %v1468, %v1470
    %v1472 = vrot.slane %v1464, %v1471
    %v1474 = vunpack.c.l.s4 1934713408
    %v1475 = vunpack.c.0.s8 %v1474
    %v1476 = vlaneseq
    %v1477 = vshrl.u32 %v1476, 7
    %v1478 = vsub.s32 %v1475, %v1477
    %v1479 = vrot.slane %v1465, %v1478
    %v1480 = vcombine.low %v1424, %v1456
    %v1481 = vcombine.high %v1424, %v1456
    %v1482 = vcombine.low %v1431, %v1463
    %v1483 = vcombine.high %v1431, %v1463
    %v1484 = vcombine.low %v1440, %v1472
    %v1485 = vcombine.high %v1440, %v1472
    %v1486 = vcombine.low %v1447, %v1479
    %v1487 = vcombine.high %v1447, %v1479
    %v1488 = vcombine.low %v1307, %v1315
    %v1489 = vcombine.high %v1307, %v1315
    %v1491 = vunpack.c.l.s4 1983009808
    %v1492 = vunpack.c.0.s8 %v1491
    %v1493 = vlaneseq
    %v1494 = vshrl.u32 %v1493, 7
    %v1495 = vsub.s32 %v1492, %v1494
    %v1496 = vrot.slane %v1488, %v1495
    %v1498 = vunpack.c.l.s4 1983009808
    %v1499 = vunpack.c.0.s8 %v1498
    %v1500 = vlaneseq
    %v1501 = vshrl.u32 %v1500, 7
    %v1502 = vsub.s32 %v1499, %v1501
    %v1503 = vrot.slane %v1489, %v1502
    %v1504 = vcombine.low %v1311, %v1319
    %v1505 = vcombine.high %v1311, %v1319
    %v1507 = vunpack.c.l.s4 1983009808
    %v1508 = vunpack.c.0.s8 %v1507
    %v1509 = vlaneseq
    %v1510 = vshrl.u32 %v1509, 7
    %v1511 = vsub.s32 %v1508, %v1510
    %v1512 = vrot.slane %v1504, %v1511
    %v1514 = vunpack.c.l.s4 1983009808
    %v1515 = vunpack.c.0.s8 %v1514
    %v1516 = vlaneseq
    %v1517 = vshrl.u32 %v1516, 7
    %v1518 = vsub.s32 %v1515, %v1517
    %v1519 = vrot.slane %v1505, %v1518
    %v1520 = vcombine.low %v1323, %v1331
    %v1521 = vcombine.high %v1323, %v1331
    %v1523 = vunpack.c.l.s4 1983009808
    %v1524 = vunpack.c.0.s8 %v1523
    %v1525 = vlaneseq
    %v1526 = vshrl.u32 %v1525, 7
    %v1527 = vsub.s32 %v1524, %v1526
    %v1528 = vrot.slane %v1520, %v1527
    %v1530 = vunpack.c.l.s4 1983009808
    %v1531 = vunpack.c.0.s8 %v1530
    %v1532 = vlaneseq
    %v1533 = vshrl.u32 %v1532, 7
    %v1534 = vsub.s32 %v1531, %v1533
    %v1535 = vrot.slane %v1521, %v1534
    %v1536 = vcombine.low %v1327, %v1335
    %v1537 = vcombine.high %v1327, %v1335
    %v1539 = vunpack.c.l.s4 1983009808
    %v1540 = vunpack.c.0.s8 %v1539
    %v1541 = vlaneseq
    %v1542 = vshrl.u32 %v1541, 7
    %v1543 = vsub.s32 %v1540, %v1542
    %v1544 = vrot.slane %v1536, %v1543
    %v1546 = vunpack.c.l.s4 1983009808
    %v1547 = vunpack.c.0.s8 %v1546
    %v1548 = vlaneseq
    %v1549 = vshrl.u32 %v1548, 7
    %v1550 = vsub.s32 %v1547, %v1549
    %v1551 = vrot.slane %v1537, %v1550
    %v1552 = vcombine.low %v1496, %v1512
    %v1553 = vcombine.high %v1496, %v1512
    %v1555 = vunpack.c.l.s4 1934713408
    %v1556 = vunpack.c.0.s8 %v1555
    %v1557 = vlaneseq
    %v1558 = vshrl.u32 %v1557, 7
    %v1559 = vsub.s32 %v1556, %v1558
    %v1560 = vrot.slane %v1552, %v1559
    %v1562 = vunpack.c.l.s4 1934713408
    %v1563 = vunpack.c.0.s8 %v1562
    %v1564 = vlaneseq
    %v1565 = vshrl.u32 %v1564, 7
    %v1566 = vsub.s32 %v1563, %v1565
    %v1567 = vrot.slane %v1553, %v1566
    %v1568 = vcombine.low %v1503, %v1519
    %v1569 = vcombine.high %v1503, %v1519
    %v1571 = vunpack.c.l.s4 1934713408
    %v1572 = vunpack.c.0.s8 %v1571
    %v1573 = vlaneseq
    %v1574 = vshrl.u32 %v1573, 7
    %v1575 = vsub.s32 %v1572, %v1574
    %v1576 = vrot.slane %v1568, %v1575
    %v1578 = vunpack.c.l.s4 1934713408
    %v1579 = vunpack.c.0.s8 %v1578
    %v1580 = vlaneseq
    %v1581 = vshrl.u32 %v1580, 7
    %v1582 = vsub.s32 %v1579, %v1581
    %v1583 = vrot.slane %v1569, %v1582
    %v1584 = vcombine.low %v1528, %v1544
    %v1585 = vcombine.high %v1528, %v1544
    %v1587 = vunpack.c.l.s4 1934713408
    %v1588 = vunpack.c.0.s8 %v1587
    %v1589 = vlaneseq
    %v1590 = vshrl.u32 %v1589, 7
    %v1591 = vsub.s32 %v1588, %v1590
    %v1592 = vrot.slane %v1584, %v1591
    %v1594 = vunpack.c.l.s4 1934713408
    %v1595 = vunpack.c.0.s8 %v1594
    %v1596 = vlaneseq
    %v1597 = vshrl.u32 %v1596, 7
    %v1598 = vsub.s32 %v1595, %v1597
    %v1599 = vrot.slane %v1585, %v1598
    %v1600 = vcombine.low %v1535, %v1551
    %v1601 = vcombine.high %v1535, %v1551
    %v1603 = vunpack.c.l.s4 1934713408
    %v1604 = vunpack.c.0.s8 %v1603
    %v1605 = vlaneseq
    %v1606 = vshrl.u32 %v1605, 7
    %v1607 = vsub.s32 %v1604, %v1606
    %v1608 = vrot.slane %v1600, %v1607
    %v1610 = vunpack.c.l.s4 1934713408
    %v1611 = vunpack.c.0.s8 %v1610
    %v1612 = vlaneseq
    %v1613 = vshrl.u32 %v1612, 7
    %v1614 = vsub.s32 %v1611, %v1613
    %v1615 = vrot.slane %v1601, %v1614
    %v1616 = vcombine.low %v1560, %v1592
    %v1617 = vcombine.high %v1560, %v1592
    %v1618 = vcombine.low %v1567, %v1599
    %v1619 = vcombine.high %v1567, %v1599
    %v1620 = vcombine.low %v1576, %v1608
    %v1621 = vcombine.high %v1576, %v1608
    %v1622 = vcombine.low %v1583, %v1615
    %v1623 = vcombine.high %v1583, %v1615
    %v1624 = vcombine.low %v1480, %v1482
    %v1625 = vcombine.high %v1480, %v1482
    %v1627 = vunpack.c.l.s4 1983009808
    %v1628 = vunpack.c.0.s8 %v1627
    %v1629 = vlaneseq
    %v1630 = vshrl.u32 %v1629, 7
    %v1631 = vsub.s32 %v1628, %v1630
    %v1632 = vrot.slane %v1624, %v1631
    %v1634 = vunpack.c.l.s4 1983009808
    %v1635 = vunpack.c.0.s8 %v1634
    %v1636 = vlaneseq
    %v1637 = vshrl.u32 %v1636, 7
    %v1638 = vsub.s32 %v1635, %v1637
    %v1639 = vrot.slane %v1625, %v1638
    %v1640 = vcombine.low %v1481, %v1483
    %v1641 = vcombine.high %v1481, %v1483
    %v1643 = vunpack.c.l.s4 1983009808
    %v1644 = vunpack.c.0.s8 %v1643
    %v1645 = vlaneseq
    %v1646 = vshrl.u32 %v1645, 7
    %v1647 = vsub.s32 %v1644, %v1646
    %v1648 = vrot.slane %v1640, %v1647
    %v1650 = vunpack.c.l.s4 1983009808
    %v1651 = vunpack.c.0.s8 %v1650
    %v1652 = vlaneseq
    %v1653 = vshrl.u32 %v1652, 7
    %v1654 = vsub.s32 %v1651, %v1653
    %v1655 = vrot.slane %v1641, %v1654
    %v1656 = vcombine.low %v1484, %v1486
    %v1657 = vcombine.high %v1484, %v1486
    %v1659 = vunpack.c.l.s4 1983009808
    %v1660 = vunpack.c.0.s8 %v1659
    %v1661 = vlaneseq
    %v1662 = vshrl.u32 %v1661, 7
    %v1663 = vsub.s32 %v1660, %v1662
    %v1664 = vrot.slane %v1656, %v1663
    %v1666 = vunpack.c.l.s4 1983009808
    %v1667 = vunpack.c.0.s8 %v1666
    %v1668 = vlaneseq
    %v1669 = vshrl.u32 %v1668, 7
    %v1670 = vsub.s32 %v1667, %v1669
    %v1671 = vrot.slane %v1657, %v1670
    %v1672 = vcombine.low %v1485, %v1487
    %v1673 = vcombine.high %v1485, %v1487
    %v1675 = vunpack.c.l.s4 1983009808
    %v1676 = vunpack.c.0.s8 %v1675
    %v1677 = vlaneseq
    %v1678 = vshrl.u32 %v1677, 7
    %v1679 = vsub.s32 %v1676, %v1678
    %v1680 = vrot.slane %v1672, %v1679
    %v1682 = vunpack.c.l.s4 1983009808
    %v1683 = vunpack.c.0.s8 %v1682
    %v1684 = vlaneseq
    %v1685 = vshrl.u32 %v1684, 7
    %v1686 = vsub.s32 %v1683, %v1685
    %v1687 = vrot.slane %v1673, %v1686
    %v1688 = vcombine.low %v1632, %v1648
    %v1689 = vcombine.high %v1632, %v1648
    %v1691 = vunpack.c.l.s4 1934713408
    %v1692 = vunpack.c.0.s8 %v1691
    %v1693 = vlaneseq
    %v1694 = vshrl.u32 %v1693, 7
    %v1695 = vsub.s32 %v1692, %v1694
    %v1696 = vrot.slane %v1688, %v1695
    %v1698 = vunpack.c.l.s4 1934713408
    %v1699 = vunpack.c.0.s8 %v1698
    %v1700 = vlaneseq
    %v1701 = vshrl.u32 %v1700, 7
    %v1702 = vsub.s32 %v1699, %v1701
    %v1703 = vrot.slane %v1689, %v1702
    %v1704 = vcombine.low %v1639, %v1655
    %v1705 = vcombine.high %v1639, %v1655
    %v1707 = vunpack.c.l.s4 1934713408
    %v1708 = vunpack.c.0.s8 %v1707
    %v1709 = vlaneseq
    %v1710 = vshrl.u32 %v1709, 7
    %v1711 = vsub.s32 %v1708, %v1710
    %v1712 = vrot.slane %v1704, %v1711
    %v1714 = vunpack.c.l.s4 1934713408
    %v1715 = vunpack.c.0.s8 %v1714
    %v1716 = vlaneseq
    %v1717 = vshrl.u32 %v1716, 7
    %v1718 = vsub.s32 %v1715, %v1717
    %v1719 = vrot.slane %v1705, %v1718
    %v1720 = vcombine.low %v1664, %v1680
    %v1721 = vcombine.high %v1664, %v1680
    %v1723 = vunpack.c.l.s4 1934713408
    %v1724 = vunpack.c.0.s8 %v1723
    %v1725 = vlaneseq
    %v1726 = vshrl.u32 %v1725, 7
    %v1727 = vsub.s32 %v1724, %v1726
    %v1728 = vrot.slane %v1720, %v1727
    %v1730 = vunpack.c.l.s4 1934713408
    %v1731 = vunpack.c.0.s8 %v1730
    %v1732 = vlaneseq
    %v1733 = vshrl.u32 %v1732, 7
    %v1734 = vsub.s32 %v1731, %v1733
    %v1735 = vrot.slane %v1721, %v1734
    %v1736 = vcombine.low %v1671, %v1687
    %v1737 = vcombine.high %v1671, %v1687
    %v1739 = vunpack.c.l.s4 1934713408
    %v1740 = vunpack.c.0.s8 %v1739
    %v1741 = vlaneseq
    %v1742 = vshrl.u32 %v1741, 7
    %v1743 = vsub.s32 %v1740, %v1742
    %v1744 = vrot.slane %v1736, %v1743
    %v1746 = vunpack.c.l.s4 1934713408
    %v1747 = vunpack.c.0.s8 %v1746
    %v1748 = vlaneseq
    %v1749 = vshrl.u32 %v1748, 7
    %v1750 = vsub.s32 %v1747, %v1749
    %v1751 = vrot.slane %v1737, %v1750
    %v1752 = vcombine.low %v1696, %v1728
    %v1753 = vcombine.high %v1696, %v1728
    %v1754 = vcombine.low %v1703, %v1735
    %v1755 = vcombine.high %v1703, %v1735
    %v1756 = vcombine.low %v1712, %v1744
    %v1757 = vcombine.high %v1712, %v1744
    %v1758 = vcombine.low %v1719, %v1751
    %v1759 = vcombine.high %v1719, %v1751
    %v1760 = vcombine.low %v1616, %v1618
    %v1761 = vcombine.high %v1616, %v1618
    %v1763 = vunpack.c.l.s4 1983009808
    %v1764 = vunpack.c.0.s8 %v1763
    %v1765 = vlaneseq
    %v1766 = vshrl.u32 %v1765, 7
    %v1767 = vsub.s32 %v1764, %v1766
    %v1768 = vrot.slane %v1760, %v1767
    %v1770 = vunpack.c.l.s4 1983009808
    %v1771 = vunpack.c.0.s8 %v1770
    %v1772 = vlaneseq
    %v1773 = vshrl.u32 %v1772, 7
    %v1774 = vsub.s32 %v1771, %v1773
    %v1775 = vrot.slane %v1761, %v1774
    %v1776 = vcombine.low %v1617, %v1619
    %v1777 = vcombine.high %v1617, %v1619
    %v1779 = vunpack.c.l.s4 1983009808
    %v1780 = vunpack.c.0.s8 %v1779
    %v1781 = vlaneseq
    %v1782 = vshrl.u32 %v1781, 7
    %v1783 = vsub.s32 %v1780, %v1782
    %v1784 = vrot.slane %v1776, %v1783
    %v1786 = vunpack.c.l.s4 1983009808
    %v1787 = vunpack.c.0.s8 %v1786
    %v1788 = vlaneseq
    %v1789 = vshrl.u32 %v1788, 7
    %v1790 = vsub.s32 %v1787, %v1789
    %v1791 = vrot.slane %v1777, %v1790
    %v1792 = vcombine.low %v1620, %v1622
    %v1793 = vcombine.high %v1620, %v1622
    %v1795 = vunpack.c.l.s4 1983009808
    %v1796 = vunpack.c.0.s8 %v1795
    %v1797 = vlaneseq
    %v1798 = vshrl.u32 %v1797, 7
    %v1799 = vsub.s32 %v1796, %v1798
    %v1800 = vrot.slane %v1792, %v1799
    %v1802 = vunpack.c.l.s4 1983009808
    %v1803 = vunpack.c.0.s8 %v1802
    %v1804 = vlaneseq
    %v1805 = vshrl.u32 %v1804, 7
    %v1806 = vsub.s32 %v1803, %v1805
    %v1807 = vrot.slane %v1793, %v1806
    %v1808 = vcombine.low %v1621, %v1623
    %v1809 = vcombine.high %v1621, %v1623
    %v1811 = vunpack.c.l.s4 1983009808
    %v1812 = vunpack.c.0.s8 %v1811
    %v1813 = vlaneseq
    %v1814 = vshrl.u32 %v1813, 7
    %v1815 = vsub.s32 %v1812, %v1814
    %v1816 = vrot.slane %v1808, %v1815
    %v1818 = vunpack.c.l.s4 1983009808
    %v1819 = vunpack.c.0.s8 %v1818
    %v1820 = vlaneseq
    %v1821 = vshrl.u32 %v1820, 7
    %v1822 = vsub.s32 %v1819, %v1821
    %v1823 = vrot.slane %v1809, %v1822
    %v1824 = vcombine.low %v1768, %v1784
    %v1825 = vcombine.high %v1768, %v1784
    %v1827 = vunpack.c.l.s4 1934713408
    %v1828 = vunpack.c.0.s8 %v1827
    %v1829 = vlaneseq
    %v1830 = vshrl.u32 %v1829, 7
    %v1831 = vsub.s32 %v1828, %v1830
    %v1832 = vrot.slane %v1824, %v1831
    %v1834 = vunpack.c.l.s4 1934713408
    %v1835 = vunpack.c.0.s8 %v1834
    %v1836 = vlaneseq
    %v1837 = vshrl.u32 %v1836, 7
    %v1838 = vsub.s32 %v1835, %v1837
    %v1839 = vrot.slane %v1825, %v1838
    %v1840 = vcombine.low %v1775, %v1791
    %v1841 = vcombine.high %v1775, %v1791
    %v1843 = vunpack.c.l.s4 1934713408
    %v1844 = vunpack.c.0.s8 %v1843
    %v1845 = vlaneseq
    %v1846 = vshrl.u32 %v1845, 7
    %v1847 = vsub.s32 %v1844, %v1846
    %v1848 = vrot.slane %v1840, %v1847
    %v1850 = vunpack.c.l.s4 1934713408
    %v1851 = vunpack.c.0.s8 %v1850
    %v1852 = vlaneseq
    %v1853 = vshrl.u32 %v1852, 7
    %v1854 = vsub.s32 %v1851, %v1853
    %v1855 = vrot.slane %v1841, %v1854
    %v1856 = vcombine.low %v1800, %v1816
    %v1857 = vcombine.high %v1800, %v1816
    %v1859 = vunpack.c.l.s4 1934713408
    %v1860 = vunpack.c.0.s8 %v1859
    %v1861 = vlaneseq
    %v1862 = vshrl.u32 %v1861, 7
    %v1863 = vsub.s32 %v1860, %v1862
    %v1864 = vrot.slane %v1856, %v1863
    %v1866 = vunpack.c.l.s4 1934713408
    %v1867 = vunpack.c.0.s8 %v1866
    %v1868 = vlaneseq
    %v1869 = vshrl.u32 %v1868, 7
    %v1870 = vsub.s32 %v1867, %v1869
    %v1871 = vrot.slane %v1857, %v1870
    %v1872 = vcombine.low %v1807, %v1823
    %v1873 = vcombine.high %v1807, %v1823
    %v1875 = vunpack.c.l.s4 1934713408
    %v1876 = vunpack.c.0.s8 %v1875
    %v1877 = vlaneseq
    %v1878 = vshrl.u32 %v1877, 7
    %v1879 = vsub.s32 %v1876, %v1878
    %v1880 = vrot.slane %v1872, %v1879
    %v1882 = vunpack.c.l.s4 1934713408
    %v1883 = vunpack.c.0.s8 %v1882
    %v1884 = vlaneseq
    %v1885 = vshrl.u32 %v1884, 7
    %v1886 = vsub.s32 %v1883, %v1885
    %v1887 = vrot.slane %v1873, %v1886
    %v1888 = vcombine.low %v1832, %v1864
    %v1889 = vcombine.high %v1832, %v1864
    %v1890 = vcombine.low %v1839, %v1871
    %v1891 = vcombine.high %v1839, %v1871
    %v1892 = vcombine.low %v1848, %v1880
    %v1893 = vcombine.high %v1848, %v1880
    %v1894 = vcombine.low %v1855, %v1887
    %v1895 = vcombine.high %v1855, %v1887
    %v1896 = vpack.c.bf16 %v568, %v568
    %v1897 = vpack.c.bf16 %v569, %v569
    %v1898 = vpack.c.bf16 %v570, %v570
    %v1899 = vpack.c.bf16 %v571, %v571
    %v1900 = vpack.c.bf16 %v572, %v572
    %v1901 = vpack.c.bf16 %v573, %v573
    %v1902 = vpack.c.bf16 %v574, %v574
    %v1903 = vpack.c.bf16 %v575, %v575
    %v1904 = vpack.c.bf16 %v704, %v704
    %v1905 = vpack.c.bf16 %v705, %v705
    %v1906 = vpack.c.bf16 %v706, %v706
    %v1907 = vpack.c.bf16 %v707, %v707
    %v1908 = vpack.c.bf16 %v708, %v708
    %v1909 = vpack.c.bf16 %v709, %v709
    %v1910 = vpack.c.bf16 %v710, %v710
    %v1911 = vpack.c.bf16 %v711, %v711
    %v1912 = vpack.c.bf16 %v1160, %v1160
    %v1913 = vpack.c.bf16 %v1161, %v1161
    %v1914 = vpack.c.bf16 %v1162, %v1162
    %v1915 = vpack.c.bf16 %v1163, %v1163
    %v1916 = vpack.c.bf16 %v1164, %v1164
    %v1917 = vpack.c.bf16 %v1165, %v1165
    %v1918 = vpack.c.bf16 %v1166, %v1166
    %v1919 = vpack.c.bf16 %v1167, %v1167
    %v1920 = vpack.c.bf16 %v1296, %v1296
    %v1921 = vpack.c.bf16 %v1297, %v1297
    %v1922 = vpack.c.bf16 %v1298, %v1298
    %v1923 = vpack.c.bf16 %v1299, %v1299
    %v1924 = vpack.c.bf16 %v1300, %v1300
    %v1925 = vpack.c.bf16 %v1301, %v1301
    %v1926 = vpack.c.bf16 %v1302, %v1302
    %v1927 = vpack.c.bf16 %v1303, %v1303
    %vm1928 = vcmask 31744
    %v1930 = vsel %vm1928, %v1896, 0
    %v1933 = vsel %vm1928, %v1912, 0
    %1935 = vmatprep.subr.bf16.mxu0 0
    %1936 = vmatpush1.bf16.xpose.msra.mxu0 %v1933
    %1937 = vmatprep.subr.bf16.mxu0 0
    %1938 = vmatpush1.bf16.xpose.msra.mxu0 0
    %1939 = vmatprep.subr.bf16.mxu0 0
    %1940 = vmatpush1.bf16.xpose.msra.mxu0 0
    %1941 = vmatprep.subr.bf16.mxu0 0
    %1942 = vmatpush1.bf16.xpose.msra.mxu0 0
    %1943 = vmatprep.subr.bf16.mxu0 0
    %1944 = vmatpush1.bf16.xpose.msra.mxu0 0
    %1945 = vmatprep.subr.bf16.mxu0 0
    %1946 = vmatpush1.bf16.xpose.msra.mxu0 0
    %1947 = vmatprep.subr.bf16.mxu0 0
    %1948 = vmatpush1.bf16.xpose.msra.mxu0 0
    %1949 = vmatprep.subr.bf16.mxu0 0
    %1950 = vmatpush1.bf16.xpose.msra.mxu0 0
    %1951 = vmatprep.subr.bf16.mxu0 0
    %1952 = vmatpush1.bf16.xpose.msra.mxu0 0
    %1953 = vmatprep.subr.bf16.mxu0 0
    %1954 = vmatpush1.bf16.xpose.msra.mxu0 0
    %1955 = vmatprep.subr.bf16.mxu0 0
    %1956 = vmatpush1.bf16.xpose.msra.mxu0 0
    %1957 = vmatprep.subr.bf16.mxu0 0
    %1958 = vmatpush1.bf16.xpose.msra.mxu0 0
    %1959 = vmatprep.subr.bf16.mxu0 0
    %1960 = vmatpush1.bf16.xpose.msra.mxu0 0
    %1961 = vmatprep.subr.bf16.mxu0 0
    %1962 = vmatpush1.bf16.xpose.msra.mxu0 0
    %1963 = vmatprep.subr.bf16.mxu0 0
    %1964 = vmatpush1.bf16.xpose.msra.mxu0 0
    %1965 = vmatprep.subr.bf16.mxu0 0
    %1966 = vmatpush1.bf16.xpose.msra.mxu0 0
    %1967 = vmatprep.mubr.bf16.mxu0 0
    %1968 = vmatmul.mubr.bf16.gmra.mrb[0].mxu0 %v1930
    %v1969 = vpop.f32.mrb[0].mxu0
    %v1970 = vadd.f32 0.0, %v1969
    %v1971 = vpop.f32.mrb[0].mxu0
    %v1972 = vpop.f32.mrb[0].mxu0
    %v1973 = vpop.f32.mrb[0].mxu0
    %1974 = vdwg.mxu0
    %v1976 = vsel %vm1928, %v1897, 0
    %v1979 = vsel %vm1928, %v1913, 0
    %1981 = vmatprep.subr.bf16.mxu0 0
    %1982 = vmatpush1.bf16.xpose.msra.mxu0 %v1979
    %1983 = vmatprep.subr.bf16.mxu0 0
    %1984 = vmatpush1.bf16.xpose.msra.mxu0 0
    %1985 = vmatprep.subr.bf16.mxu0 0
    %1986 = vmatpush1.bf16.xpose.msra.mxu0 0
    %1987 = vmatprep.subr.bf16.mxu0 0
    %1988 = vmatpush1.bf16.xpose.msra.mxu0 0
    %1989 = vmatprep.subr.bf16.mxu0 0
    %1990 = vmatpush1.bf16.xpose.msra.mxu0 0
    %1991 = vmatprep.subr.bf16.mxu0 0
    %1992 = vmatpush1.bf16.xpose.msra.mxu0 0
    %1993 = vmatprep.subr.bf16.mxu0 0
    %1994 = vmatpush1.bf16.xpose.msra.mxu0 0
    %1995 = vmatprep.subr.bf16.mxu0 0
    %1996 = vmatpush1.bf16.xpose.msra.mxu0 0
    %1997 = vmatprep.subr.bf16.mxu0 0
    %1998 = vmatpush1.bf16.xpose.msra.mxu0 0
    %1999 = vmatprep.subr.bf16.mxu0 0
    %2000 = vmatpush1.bf16.xpose.msra.mxu0 0
    %2001 = vmatprep.subr.bf16.mxu0 0
    %2002 = vmatpush1.bf16.xpose.msra.mxu0 0
    %2003 = vmatprep.subr.bf16.mxu0 0
    %2004 = vmatpush1.bf16.xpose.msra.mxu0 0
    %2005 = vmatprep.subr.bf16.mxu0 0
    %2006 = vmatpush1.bf16.xpose.msra.mxu0 0
    %2007 = vmatprep.subr.bf16.mxu0 0
    %2008 = vmatpush1.bf16.xpose.msra.mxu0 0
    %2009 = vmatprep.subr.bf16.mxu0 0
    %2010 = vmatpush1.bf16.xpose.msra.mxu0 0
    %2011 = vmatprep.subr.bf16.mxu0 0
    %2012 = vmatpush1.bf16.xpose.msra.mxu0 0
    %2013 = vmatprep.mubr.bf16.mxu0 0
    %2014 = vmatmul.mubr.bf16.gmra.mrb[0].mxu0 %v1976
    %v2015 = vpop.f32.mrb[0].mxu0
    %v2016 = vadd.f32 0.0, %v2015
    %v2017 = vpop.f32.mrb[0].mxu0
    %v2018 = vpop.f32.mrb[0].mxu0
    %v2019 = vpop.f32.mrb[0].mxu0
    %2020 = vdwg.mxu0
    %v2022 = vsel %vm1928, %v1898, 0
    %v2025 = vsel %vm1928, %v1914, 0
    %2027 = vmatprep.subr.bf16.mxu0 0
    %2028 = vmatpush1.bf16.xpose.msra.mxu0 %v2025
    %2029 = vmatprep.subr.bf16.mxu0 0
    %2030 = vmatpush1.bf16.xpose.msra.mxu0 0
    %2031 = vmatprep.subr.bf16.mxu0 0
    %2032 = vmatpush1.bf16.xpose.msra.mxu0 0
    %2033 = vmatprep.subr.bf16.mxu0 0
    %2034 = vmatpush1.bf16.xpose.msra.mxu0 0
    %2035 = vmatprep.subr.bf16.mxu0 0
    %2036 = vmatpush1.bf16.xpose.msra.mxu0 0
    %2037 = vmatprep.subr.bf16.mxu0 0
    %2038 = vmatpush1.bf16.xpose.msra.mxu0 0
    %2039 = vmatprep.subr.bf16.mxu0 0
    %2040 = vmatpush1.bf16.xpose.msra.mxu0 0
    %2041 = vmatprep.subr.bf16.mxu0 0
    %2042 = vmatpush1.bf16.xpose.msra.mxu0 0
    %2043 = vmatprep.subr.bf16.mxu0 0
    %2044 = vmatpush1.bf16.xpose.msra.mxu0 0
    %2045 = vmatprep.subr.bf16.mxu0 0
    %2046 = vmatpush1.bf16.xpose.msra.mxu0 0
    %2047 = vmatprep.subr.bf16.mxu0 0
    %2048 = vmatpush1.bf16.xpose.msra.mxu0 0
    %2049 = vmatprep.subr.bf16.mxu0 0
    %2050 = vmatpush1.bf16.xpose.msra.mxu0 0
    %2051 = vmatprep.subr.bf16.mxu0 0
    %2052 = vmatpush1.bf16.xpose.msra.mxu0 0
    %2053 = vmatprep.subr.bf16.mxu0 0
    %2054 = vmatpush1.bf16.xpose.msra.mxu0 0
    %2055 = vmatprep.subr.bf16.mxu0 0
    %2056 = vmatpush1.bf16.xpose.msra.mxu0 0
    %2057 = vmatprep.subr.bf16.mxu0 0
    %2058 = vmatpush1.bf16.xpose.msra.mxu0 0
    %2059 = vmatprep.mubr.bf16.mxu0 0
    %2060 = vmatmul.mubr.bf16.gmra.mrb[0].mxu0 %v2022
    %v2061 = vpop.f32.mrb[0].mxu0
    %v2062 = vadd.f32 0.0, %v2061
    %v2063 = vpop.f32.mrb[0].mxu0
    %v2064 = vpop.f32.mrb[0].mxu0
    %v2065 = vpop.f32.mrb[0].mxu0
    %2066 = vdwg.mxu0
    %v2068 = vsel %vm1928, %v1899, 0
    %v2071 = vsel %vm1928, %v1915, 0
    %2073 = vmatprep.subr.bf16.mxu0 0
    %2074 = vmatpush1.bf16.xpose.msra.mxu0 %v2071
    %2075 = vmatprep.subr.bf16.mxu0 0
    %2076 = vmatpush1.bf16.xpose.msra.mxu0 0
    %2077 = vmatprep.subr.bf16.mxu0 0
    %2078 = vmatpush1.bf16.xpose.msra.mxu0 0
    %2079 = vmatprep.subr.bf16.mxu0 0
    %2080 = vmatpush1.bf16.xpose.msra.mxu0 0
    %2081 = vmatprep.subr.bf16.mxu0 0
    %2082 = vmatpush1.bf16.xpose.msra.mxu0 0
    %2083 = vmatprep.subr.bf16.mxu0 0
    %2084 = vmatpush1.bf16.xpose.msra.mxu0 0
    %2085 = vmatprep.subr.bf16.mxu0 0
    %2086 = vmatpush1.bf16.xpose.msra.mxu0 0
    %2087 = vmatprep.subr.bf16.mxu0 0
    %2088 = vmatpush1.bf16.xpose.msra.mxu0 0
    %2089 = vmatprep.subr.bf16.mxu0 0
    %2090 = vmatpush1.bf16.xpose.msra.mxu0 0
    %2091 = vmatprep.subr.bf16.mxu0 0
    %2092 = vmatpush1.bf16.xpose.msra.mxu0 0
    %2093 = vmatprep.subr.bf16.mxu0 0
    %2094 = vmatpush1.bf16.xpose.msra.mxu0 0
    %2095 = vmatprep.subr.bf16.mxu0 0
    %2096 = vmatpush1.bf16.xpose.msra.mxu0 0
    %2097 = vmatprep.subr.bf16.mxu0 0
    %2098 = vmatpush1.bf16.xpose.msra.mxu0 0
    %2099 = vmatprep.subr.bf16.mxu0 0
    %2100 = vmatpush1.bf16.xpose.msra.mxu0 0
    %2101 = vmatprep.subr.bf16.mxu0 0
    %2102 = vmatpush1.bf16.xpose.msra.mxu0 0
    %2103 = vmatprep.subr.bf16.mxu0 0
    %2104 = vmatpush1.bf16.xpose.msra.mxu0 0
    %2105 = vmatprep.mubr.bf16.mxu0 0
    %2106 = vmatmul.mubr.bf16.gmra.mrb[0].mxu0 %v2068
    %v2107 = vpop.f32.mrb[0].mxu0
    %v2108 = vadd.f32 0.0, %v2107
    %v2109 = vpop.f32.mrb[0].mxu0
    %v2110 = vpop.f32.mrb[0].mxu0
    %v2111 = vpop.f32.mrb[0].mxu0
    %2112 = vdwg.mxu0
    %v2114 = vsel %vm1928, %v1900, 0
    %v2117 = vsel %vm1928, %v1916, 0
    %2119 = vmatprep.subr.bf16.mxu0 0
    %2120 = vmatpush1.bf16.xpose.msra.mxu0 %v2117
    %2121 = vmatprep.subr.bf16.mxu0 0
    %2122 = vmatpush1.bf16.xpose.msra.mxu0 0
    %2123 = vmatprep.subr.bf16.mxu0 0
    %2124 = vmatpush1.bf16.xpose.msra.mxu0 0
    %2125 = vmatprep.subr.bf16.mxu0 0
    %2126 = vmatpush1.bf16.xpose.msra.mxu0 0
    %2127 = vmatprep.subr.bf16.mxu0 0
    %2128 = vmatpush1.bf16.xpose.msra.mxu0 0
    %2129 = vmatprep.subr.bf16.mxu0 0
    %2130 = vmatpush1.bf16.xpose.msra.mxu0 0
    %2131 = vmatprep.subr.bf16.mxu0 0
    %2132 = vmatpush1.bf16.xpose.msra.mxu0 0
    %2133 = vmatprep.subr.bf16.mxu0 0
    %2134 = vmatpush1.bf16.xpose.msra.mxu0 0
    %2135 = vmatprep.subr.bf16.mxu0 0
    %2136 = vmatpush1.bf16.xpose.msra.mxu0 0
    %2137 = vmatprep.subr.bf16.mxu0 0
    %2138 = vmatpush1.bf16.xpose.msra.mxu0 0
    %2139 = vmatprep.subr.bf16.mxu0 0
    %2140 = vmatpush1.bf16.xpose.msra.mxu0 0
    %2141 = vmatprep.subr.bf16.mxu0 0
    %2142 = vmatpush1.bf16.xpose.msra.mxu0 0
    %2143 = vmatprep.subr.bf16.mxu0 0
    %2144 = vmatpush1.bf16.xpose.msra.mxu0 0
    %2145 = vmatprep.subr.bf16.mxu0 0
    %2146 = vmatpush1.bf16.xpose.msra.mxu0 0
    %2147 = vmatprep.subr.bf16.mxu0 0
    %2148 = vmatpush1.bf16.xpose.msra.mxu0 0
    %2149 = vmatprep.subr.bf16.mxu0 0
    %2150 = vmatpush1.bf16.xpose.msra.mxu0 0
    %2151 = vmatprep.mubr.bf16.mxu0 0
    %2152 = vmatmul.mubr.bf16.gmra.mrb[0].mxu0 %v2114
    %v2153 = vpop.f32.mrb[0].mxu0
    %v2154 = vadd.f32 0.0, %v2153
    %v2155 = vpop.f32.mrb[0].mxu0
    %v2156 = vpop.f32.mrb[0].mxu0
    %v2157 = vpop.f32.mrb[0].mxu0
    %2158 = vdwg.mxu0
    %v2160 = vsel %vm1928, %v1901, 0
    %v2163 = vsel %vm1928, %v1917, 0
    %2165 = vmatprep.subr.bf16.mxu0 0
    %2166 = vmatpush1.bf16.xpose.msra.mxu0 %v2163
    %2167 = vmatprep.subr.bf16.mxu0 0
    %2168 = vmatpush1.bf16.xpose.msra.mxu0 0
    %2169 = vmatprep.subr.bf16.mxu0 0
    %2170 = vmatpush1.bf16.xpose.msra.mxu0 0
    %2171 = vmatprep.subr.bf16.mxu0 0
    %2172 = vmatpush1.bf16.xpose.msra.mxu0 0
    %2173 = vmatprep.subr.bf16.mxu0 0
    %2174 = vmatpush1.bf16.xpose.msra.mxu0 0
    %2175 = vmatprep.subr.bf16.mxu0 0
    %2176 = vmatpush1.bf16.xpose.msra.mxu0 0
    %2177 = vmatprep.subr.bf16.mxu0 0
    %2178 = vmatpush1.bf16.xpose.msra.mxu0 0
    %2179 = vmatprep.subr.bf16.mxu0 0
    %2180 = vmatpush1.bf16.xpose.msra.mxu0 0
    %2181 = vmatprep.subr.bf16.mxu0 0
    %2182 = vmatpush1.bf16.xpose.msra.mxu0 0
    %2183 = vmatprep.subr.bf16.mxu0 0
    %2184 = vmatpush1.bf16.xpose.msra.mxu0 0
    %2185 = vmatprep.subr.bf16.mxu0 0
    %2186 = vmatpush1.bf16.xpose.msra.mxu0 0
    %2187 = vmatprep.subr.bf16.mxu0 0
    %2188 = vmatpush1.bf16.xpose.msra.mxu0 0
    %2189 = vmatprep.subr.bf16.mxu0 0
    %2190 = vmatpush1.bf16.xpose.msra.mxu0 0
    %2191 = vmatprep.subr.bf16.mxu0 0
    %2192 = vmatpush1.bf16.xpose.msra.mxu0 0
    %2193 = vmatprep.subr.bf16.mxu0 0
    %2194 = vmatpush1.bf16.xpose.msra.mxu0 0
    %2195 = vmatprep.subr.bf16.mxu0 0
    %2196 = vmatpush1.bf16.xpose.msra.mxu0 0
    %2197 = vmatprep.mubr.bf16.mxu0 0
    %2198 = vmatmul.mubr.bf16.gmra.mrb[0].mxu0 %v2160
    %v2199 = vpop.f32.mrb[0].mxu0
    %v2200 = vadd.f32 0.0, %v2199
    %v2201 = vpop.f32.mrb[0].mxu0
    %v2202 = vpop.f32.mrb[0].mxu0
    %v2203 = vpop.f32.mrb[0].mxu0
    %2204 = vdwg.mxu0
    %v2206 = vsel %vm1928, %v1902, 0
    %v2209 = vsel %vm1928, %v1918, 0
    %2211 = vmatprep.subr.bf16.mxu0 0
    %2212 = vmatpush1.bf16.xpose.msra.mxu0 %v2209
    %2213 = vmatprep.subr.bf16.mxu0 0
    %2214 = vmatpush1.bf16.xpose.msra.mxu0 0
    %2215 = vmatprep.subr.bf16.mxu0 0
    %2216 = vmatpush1.bf16.xpose.msra.mxu0 0
    %2217 = vmatprep.subr.bf16.mxu0 0
    %2218 = vmatpush1.bf16.xpose.msra.mxu0 0
    %2219 = vmatprep.subr.bf16.mxu0 0
    %2220 = vmatpush1.bf16.xpose.msra.mxu0 0
    %2221 = vmatprep.subr.bf16.mxu0 0
    %2222 = vmatpush1.bf16.xpose.msra.mxu0 0
    %2223 = vmatprep.subr.bf16.mxu0 0
    %2224 = vmatpush1.bf16.xpose.msra.mxu0 0
    %2225 = vmatprep.subr.bf16.mxu0 0
    %2226 = vmatpush1.bf16.xpose.msra.mxu0 0
    %2227 = vmatprep.subr.bf16.mxu0 0
    %2228 = vmatpush1.bf16.xpose.msra.mxu0 0
    %2229 = vmatprep.subr.bf16.mxu0 0
    %2230 = vmatpush1.bf16.xpose.msra.mxu0 0
    %2231 = vmatprep.subr.bf16.mxu0 0
    %2232 = vmatpush1.bf16.xpose.msra.mxu0 0
    %2233 = vmatprep.subr.bf16.mxu0 0
    %2234 = vmatpush1.bf16.xpose.msra.mxu0 0
    %2235 = vmatprep.subr.bf16.mxu0 0
    %2236 = vmatpush1.bf16.xpose.msra.mxu0 0
    %2237 = vmatprep.subr.bf16.mxu0 0
    %2238 = vmatpush1.bf16.xpose.msra.mxu0 0
    %2239 = vmatprep.subr.bf16.mxu0 0
    %2240 = vmatpush1.bf16.xpose.msra.mxu0 0
    %2241 = vmatprep.subr.bf16.mxu0 0
    %2242 = vmatpush1.bf16.xpose.msra.mxu0 0
    %2243 = vmatprep.mubr.bf16.mxu0 0
    %2244 = vmatmul.mubr.bf16.gmra.mrb[0].mxu0 %v2206
    %v2245 = vpop.f32.mrb[0].mxu0
    %v2246 = vadd.f32 0.0, %v2245
    %v2247 = vpop.f32.mrb[0].mxu0
    %v2248 = vpop.f32.mrb[0].mxu0
    %v2249 = vpop.f32.mrb[0].mxu0
    %2250 = vdwg.mxu0
    %v2252 = vsel %vm1928, %v1903, 0
    %v2255 = vsel %vm1928, %v1919, 0
    %2257 = vmatprep.subr.bf16.mxu0 0
    %2258 = vmatpush1.bf16.xpose.msra.mxu0 %v2255
    %2259 = vmatprep.subr.bf16.mxu0 0
    %2260 = vmatpush1.bf16.xpose.msra.mxu0 0
    %2261 = vmatprep.subr.bf16.mxu0 0
    %2262 = vmatpush1.bf16.xpose.msra.mxu0 0
    %2263 = vmatprep.subr.bf16.mxu0 0
    %2264 = vmatpush1.bf16.xpose.msra.mxu0 0
    %2265 = vmatprep.subr.bf16.mxu0 0
    %2266 = vmatpush1.bf16.xpose.msra.mxu0 0
    %2267 = vmatprep.subr.bf16.mxu0 0
    %2268 = vmatpush1.bf16.xpose.msra.mxu0 0
    %2269 = vmatprep.subr.bf16.mxu0 0
    %2270 = vmatpush1.bf16.xpose.msra.mxu0 0
    %2271 = vmatprep.subr.bf16.mxu0 0
    %2272 = vmatpush1.bf16.xpose.msra.mxu0 0
    %2273 = vmatprep.subr.bf16.mxu0 0
    %2274 = vmatpush1.bf16.xpose.msra.mxu0 0
    %2275 = vmatprep.subr.bf16.mxu0 0
    %2276 = vmatpush1.bf16.xpose.msra.mxu0 0
    %2277 = vmatprep.subr.bf16.mxu0 0
    %2278 = vmatpush1.bf16.xpose.msra.mxu0 0
    %2279 = vmatprep.subr.bf16.mxu0 0
    %2280 = vmatpush1.bf16.xpose.msra.mxu0 0
    %2281 = vmatprep.subr.bf16.mxu0 0
    %2282 = vmatpush1.bf16.xpose.msra.mxu0 0
    %2283 = vmatprep.subr.bf16.mxu0 0
    %2284 = vmatpush1.bf16.xpose.msra.mxu0 0
    %2285 = vmatprep.subr.bf16.mxu0 0
    %2286 = vmatpush1.bf16.xpose.msra.mxu0 0
    %2287 = vmatprep.subr.bf16.mxu0 0
    %2288 = vmatpush1.bf16.xpose.msra.mxu0 0
    %2289 = vmatprep.mubr.bf16.mxu0 0
    %2290 = vmatmul.mubr.bf16.gmra.mrb[0].mxu0 %v2252
    %v2291 = vpop.f32.mrb[0].mxu0
    %v2292 = vadd.f32 0.0, %v2291
    %v2293 = vpop.f32.mrb[0].mxu0
    %v2294 = vpop.f32.mrb[0].mxu0
    %v2295 = vpop.f32.mrb[0].mxu0
    %2296 = vdwg.mxu0
    %v2298 = vsel %vm1928, %v1904, 0
    %v2301 = vsel %vm1928, %v1920, 0
    %2303 = vmatprep.subr.bf16.mxu0 0
    %2304 = vmatpush1.bf16.xpose.msra.mxu0 %v2301
    %2305 = vmatprep.subr.bf16.mxu0 0
    %2306 = vmatpush1.bf16.xpose.msra.mxu0 0
    %2307 = vmatprep.subr.bf16.mxu0 0
    %2308 = vmatpush1.bf16.xpose.msra.mxu0 0
    %2309 = vmatprep.subr.bf16.mxu0 0
    %2310 = vmatpush1.bf16.xpose.msra.mxu0 0
    %2311 = vmatprep.subr.bf16.mxu0 0
    %2312 = vmatpush1.bf16.xpose.msra.mxu0 0
    %2313 = vmatprep.subr.bf16.mxu0 0
    %2314 = vmatpush1.bf16.xpose.msra.mxu0 0
    %2315 = vmatprep.subr.bf16.mxu0 0
    %2316 = vmatpush1.bf16.xpose.msra.mxu0 0
    %2317 = vmatprep.subr.bf16.mxu0 0
    %2318 = vmatpush1.bf16.xpose.msra.mxu0 0
    %2319 = vmatprep.subr.bf16.mxu0 0
    %2320 = vmatpush1.bf16.xpose.msra.mxu0 0
    %2321 = vmatprep.subr.bf16.mxu0 0
    %2322 = vmatpush1.bf16.xpose.msra.mxu0 0
    %2323 = vmatprep.subr.bf16.mxu0 0
    %2324 = vmatpush1.bf16.xpose.msra.mxu0 0
    %2325 = vmatprep.subr.bf16.mxu0 0
    %2326 = vmatpush1.bf16.xpose.msra.mxu0 0
    %2327 = vmatprep.subr.bf16.mxu0 0
    %2328 = vmatpush1.bf16.xpose.msra.mxu0 0
    %2329 = vmatprep.subr.bf16.mxu0 0
    %2330 = vmatpush1.bf16.xpose.msra.mxu0 0
    %2331 = vmatprep.subr.bf16.mxu0 0
    %2332 = vmatpush1.bf16.xpose.msra.mxu0 0
    %2333 = vmatprep.subr.bf16.mxu0 0
    %2334 = vmatpush1.bf16.xpose.msra.mxu0 0
    %2335 = vmatprep.mubr.bf16.mxu0 0
    %2336 = vmatmul.mubr.bf16.gmra.mrb[0].mxu0 %v2298
    %v2337 = vpop.f32.mrb[0].mxu0
    %v2338 = vadd.f32 0.0, %v2337
    %v2339 = vpop.f32.mrb[0].mxu0
    %v2340 = vpop.f32.mrb[0].mxu0
    %v2341 = vpop.f32.mrb[0].mxu0
    %2342 = vdwg.mxu0
    %v2344 = vsel %vm1928, %v1905, 0
    %v2347 = vsel %vm1928, %v1921, 0
    %2349 = vmatprep.subr.bf16.mxu0 0
    %2350 = vmatpush1.bf16.xpose.msra.mxu0 %v2347
    %2351 = vmatprep.subr.bf16.mxu0 0
    %2352 = vmatpush1.bf16.xpose.msra.mxu0 0
    %2353 = vmatprep.subr.bf16.mxu0 0
    %2354 = vmatpush1.bf16.xpose.msra.mxu0 0
    %2355 = vmatprep.subr.bf16.mxu0 0
    %2356 = vmatpush1.bf16.xpose.msra.mxu0 0
    %2357 = vmatprep.subr.bf16.mxu0 0
    %2358 = vmatpush1.bf16.xpose.msra.mxu0 0
    %2359 = vmatprep.subr.bf16.mxu0 0
    %2360 = vmatpush1.bf16.xpose.msra.mxu0 0
    %2361 = vmatprep.subr.bf16.mxu0 0
    %2362 = vmatpush1.bf16.xpose.msra.mxu0 0
    %2363 = vmatprep.subr.bf16.mxu0 0
    %2364 = vmatpush1.bf16.xpose.msra.mxu0 0
    %2365 = vmatprep.subr.bf16.mxu0 0
    %2366 = vmatpush1.bf16.xpose.msra.mxu0 0
    %2367 = vmatprep.subr.bf16.mxu0 0
    %2368 = vmatpush1.bf16.xpose.msra.mxu0 0
    %2369 = vmatprep.subr.bf16.mxu0 0
    %2370 = vmatpush1.bf16.xpose.msra.mxu0 0
    %2371 = vmatprep.subr.bf16.mxu0 0
    %2372 = vmatpush1.bf16.xpose.msra.mxu0 0
    %2373 = vmatprep.subr.bf16.mxu0 0
    %2374 = vmatpush1.bf16.xpose.msra.mxu0 0
    %2375 = vmatprep.subr.bf16.mxu0 0
    %2376 = vmatpush1.bf16.xpose.msra.mxu0 0
    %2377 = vmatprep.subr.bf16.mxu0 0
    %2378 = vmatpush1.bf16.xpose.msra.mxu0 0
    %2379 = vmatprep.subr.bf16.mxu0 0
    %2380 = vmatpush1.bf16.xpose.msra.mxu0 0
    %2381 = vmatprep.mubr.bf16.mxu0 0
    %2382 = vmatmul.mubr.bf16.gmra.mrb[0].mxu0 %v2344
    %v2383 = vpop.f32.mrb[0].mxu0
    %v2384 = vadd.f32 0.0, %v2383
    %v2385 = vpop.f32.mrb[0].mxu0
    %v2386 = vpop.f32.mrb[0].mxu0
    %v2387 = vpop.f32.mrb[0].mxu0
    %2388 = vdwg.mxu0
    %v2390 = vsel %vm1928, %v1906, 0
    %v2393 = vsel %vm1928, %v1922, 0
    %2395 = vmatprep.subr.bf16.mxu0 0
    %2396 = vmatpush1.bf16.xpose.msra.mxu0 %v2393
    %2397 = vmatprep.subr.bf16.mxu0 0
    %2398 = vmatpush1.bf16.xpose.msra.mxu0 0
    %2399 = vmatprep.subr.bf16.mxu0 0
    %2400 = vmatpush1.bf16.xpose.msra.mxu0 0
    %2401 = vmatprep.subr.bf16.mxu0 0
    %2402 = vmatpush1.bf16.xpose.msra.mxu0 0
    %2403 = vmatprep.subr.bf16.mxu0 0
    %2404 = vmatpush1.bf16.xpose.msra.mxu0 0
    %2405 = vmatprep.subr.bf16.mxu0 0
    %2406 = vmatpush1.bf16.xpose.msra.mxu0 0
    %2407 = vmatprep.subr.bf16.mxu0 0
    %2408 = vmatpush1.bf16.xpose.msra.mxu0 0
    %2409 = vmatprep.subr.bf16.mxu0 0
    %2410 = vmatpush1.bf16.xpose.msra.mxu0 0
    %2411 = vmatprep.subr.bf16.mxu0 0
    %2412 = vmatpush1.bf16.xpose.msra.mxu0 0
    %2413 = vmatprep.subr.bf16.mxu0 0
    %2414 = vmatpush1.bf16.xpose.msra.mxu0 0
    %2415 = vmatprep.subr.bf16.mxu0 0
    %2416 = vmatpush1.bf16.xpose.msra.mxu0 0
    %2417 = vmatprep.subr.bf16.mxu0 0
    %2418 = vmatpush1.bf16.xpose.msra.mxu0 0
    %2419 = vmatprep.subr.bf16.mxu0 0
    %2420 = vmatpush1.bf16.xpose.msra.mxu0 0
    %2421 = vmatprep.subr.bf16.mxu0 0
    %2422 = vmatpush1.bf16.xpose.msra.mxu0 0
    %2423 = vmatprep.subr.bf16.mxu0 0
    %2424 = vmatpush1.bf16.xpose.msra.mxu0 0
    %2425 = vmatprep.subr.bf16.mxu0 0
    %2426 = vmatpush1.bf16.xpose.msra.mxu0 0
    %2427 = vmatprep.mubr.bf16.mxu0 0
    %2428 = vmatmul.mubr.bf16.gmra.mrb[0].mxu0 %v2390
    %v2429 = vpop.f32.mrb[0].mxu0
    %v2430 = vadd.f32 0.0, %v2429
    %v2431 = vpop.f32.mrb[0].mxu0
    %v2432 = vpop.f32.mrb[0].mxu0
    %v2433 = vpop.f32.mrb[0].mxu0
    %2434 = vdwg.mxu0
    %v2436 = vsel %vm1928, %v1907, 0
    %v2439 = vsel %vm1928, %v1923, 0
    %2441 = vmatprep.subr.bf16.mxu0 0
    %2442 = vmatpush1.bf16.xpose.msra.mxu0 %v2439
    %2443 = vmatprep.subr.bf16.mxu0 0
    %2444 = vmatpush1.bf16.xpose.msra.mxu0 0
    %2445 = vmatprep.subr.bf16.mxu0 0
    %2446 = vmatpush1.bf16.xpose.msra.mxu0 0
    %2447 = vmatprep.subr.bf16.mxu0 0
    %2448 = vmatpush1.bf16.xpose.msra.mxu0 0
    %2449 = vmatprep.subr.bf16.mxu0 0
    %2450 = vmatpush1.bf16.xpose.msra.mxu0 0
    %2451 = vmatprep.subr.bf16.mxu0 0
    %2452 = vmatpush1.bf16.xpose.msra.mxu0 0
    %2453 = vmatprep.subr.bf16.mxu0 0
    %2454 = vmatpush1.bf16.xpose.msra.mxu0 0
    %2455 = vmatprep.subr.bf16.mxu0 0
    %2456 = vmatpush1.bf16.xpose.msra.mxu0 0
    %2457 = vmatprep.subr.bf16.mxu0 0
    %2458 = vmatpush1.bf16.xpose.msra.mxu0 0
    %2459 = vmatprep.subr.bf16.mxu0 0
    %2460 = vmatpush1.bf16.xpose.msra.mxu0 0
    %2461 = vmatprep.subr.bf16.mxu0 0
    %2462 = vmatpush1.bf16.xpose.msra.mxu0 0
    %2463 = vmatprep.subr.bf16.mxu0 0
    %2464 = vmatpush1.bf16.xpose.msra.mxu0 0
    %2465 = vmatprep.subr.bf16.mxu0 0
    %2466 = vmatpush1.bf16.xpose.msra.mxu0 0
    %2467 = vmatprep.subr.bf16.mxu0 0
    %2468 = vmatpush1.bf16.xpose.msra.mxu0 0
    %2469 = vmatprep.subr.bf16.mxu0 0
    %2470 = vmatpush1.bf16.xpose.msra.mxu0 0
    %2471 = vmatprep.subr.bf16.mxu0 0
    %2472 = vmatpush1.bf16.xpose.msra.mxu0 0
    %2473 = vmatprep.mubr.bf16.mxu0 0
    %2474 = vmatmul.mubr.bf16.gmra.mrb[0].mxu0 %v2436
    %v2475 = vpop.f32.mrb[0].mxu0
    %v2476 = vadd.f32 0.0, %v2475
    %v2477 = vpop.f32.mrb[0].mxu0
    %v2478 = vpop.f32.mrb[0].mxu0
    %v2479 = vpop.f32.mrb[0].mxu0
    %2480 = vdwg.mxu0
    %v2482 = vsel %vm1928, %v1908, 0
    %v2485 = vsel %vm1928, %v1924, 0
    %2487 = vmatprep.subr.bf16.mxu0 0
    %2488 = vmatpush1.bf16.xpose.msra.mxu0 %v2485
    %2489 = vmatprep.subr.bf16.mxu0 0
    %2490 = vmatpush1.bf16.xpose.msra.mxu0 0
    %2491 = vmatprep.subr.bf16.mxu0 0
    %2492 = vmatpush1.bf16.xpose.msra.mxu0 0
    %2493 = vmatprep.subr.bf16.mxu0 0
    %2494 = vmatpush1.bf16.xpose.msra.mxu0 0
    %2495 = vmatprep.subr.bf16.mxu0 0
    %2496 = vmatpush1.bf16.xpose.msra.mxu0 0
    %2497 = vmatprep.subr.bf16.mxu0 0
    %2498 = vmatpush1.bf16.xpose.msra.mxu0 0
    %2499 = vmatprep.subr.bf16.mxu0 0
    %2500 = vmatpush1.bf16.xpose.msra.mxu0 0
    %2501 = vmatprep.subr.bf16.mxu0 0
    %2502 = vmatpush1.bf16.xpose.msra.mxu0 0
    %2503 = vmatprep.subr.bf16.mxu0 0
    %2504 = vmatpush1.bf16.xpose.msra.mxu0 0
    %2505 = vmatprep.subr.bf16.mxu0 0
    %2506 = vmatpush1.bf16.xpose.msra.mxu0 0
    %2507 = vmatprep.subr.bf16.mxu0 0
    %2508 = vmatpush1.bf16.xpose.msra.mxu0 0
    %2509 = vmatprep.subr.bf16.mxu0 0
    %2510 = vmatpush1.bf16.xpose.msra.mxu0 0
    %2511 = vmatprep.subr.bf16.mxu0 0
    %2512 = vmatpush1.bf16.xpose.msra.mxu0 0
    %2513 = vmatprep.subr.bf16.mxu0 0
    %2514 = vmatpush1.bf16.xpose.msra.mxu0 0
    %2515 = vmatprep.subr.bf16.mxu0 0
    %2516 = vmatpush1.bf16.xpose.msra.mxu0 0
    %2517 = vmatprep.subr.bf16.mxu0 0
    %2518 = vmatpush1.bf16.xpose.msra.mxu0 0
    %2519 = vmatprep.mubr.bf16.mxu0 0
    %2520 = vmatmul.mubr.bf16.gmra.mrb[0].mxu0 %v2482
    %v2521 = vpop.f32.mrb[0].mxu0
    %v2522 = vadd.f32 0.0, %v2521
    %v2523 = vpop.f32.mrb[0].mxu0
    %v2524 = vpop.f32.mrb[0].mxu0
    %v2525 = vpop.f32.mrb[0].mxu0
    %2526 = vdwg.mxu0
    %v2528 = vsel %vm1928, %v1909, 0
    %v2531 = vsel %vm1928, %v1925, 0
    %2533 = vmatprep.subr.bf16.mxu0 0
    %2534 = vmatpush1.bf16.xpose.msra.mxu0 %v2531
    %2535 = vmatprep.subr.bf16.mxu0 0
    %2536 = vmatpush1.bf16.xpose.msra.mxu0 0
    %2537 = vmatprep.subr.bf16.mxu0 0
    %2538 = vmatpush1.bf16.xpose.msra.mxu0 0
    %2539 = vmatprep.subr.bf16.mxu0 0
    %2540 = vmatpush1.bf16.xpose.msra.mxu0 0
    %2541 = vmatprep.subr.bf16.mxu0 0
    %2542 = vmatpush1.bf16.xpose.msra.mxu0 0
    %2543 = vmatprep.subr.bf16.mxu0 0
    %2544 = vmatpush1.bf16.xpose.msra.mxu0 0
    %2545 = vmatprep.subr.bf16.mxu0 0
    %2546 = vmatpush1.bf16.xpose.msra.mxu0 0
    %2547 = vmatprep.subr.bf16.mxu0 0
    %2548 = vmatpush1.bf16.xpose.msra.mxu0 0
    %2549 = vmatprep.subr.bf16.mxu0 0
    %2550 = vmatpush1.bf16.xpose.msra.mxu0 0
    %2551 = vmatprep.subr.bf16.mxu0 0
    %2552 = vmatpush1.bf16.xpose.msra.mxu0 0
    %2553 = vmatprep.subr.bf16.mxu0 0
    %2554 = vmatpush1.bf16.xpose.msra.mxu0 0
    %2555 = vmatprep.subr.bf16.mxu0 0
    %2556 = vmatpush1.bf16.xpose.msra.mxu0 0
    %2557 = vmatprep.subr.bf16.mxu0 0
    %2558 = vmatpush1.bf16.xpose.msra.mxu0 0
    %2559 = vmatprep.subr.bf16.mxu0 0
    %2560 = vmatpush1.bf16.xpose.msra.mxu0 0
    %2561 = vmatprep.subr.bf16.mxu0 0
    %2562 = vmatpush1.bf16.xpose.msra.mxu0 0
    %2563 = vmatprep.subr.bf16.mxu0 0
    %2564 = vmatpush1.bf16.xpose.msra.mxu0 0
    %2565 = vmatprep.mubr.bf16.mxu0 0
    %2566 = vmatmul.mubr.bf16.gmra.mrb[0].mxu0 %v2528
    %v2567 = vpop.f32.mrb[0].mxu0
    %v2568 = vadd.f32 0.0, %v2567
    %v2569 = vpop.f32.mrb[0].mxu0
    %v2570 = vpop.f32.mrb[0].mxu0
    %v2571 = vpop.f32.mrb[0].mxu0
    %2572 = vdwg.mxu0
    %v2574 = vsel %vm1928, %v1910, 0
    %v2577 = vsel %vm1928, %v1926, 0
    %2579 = vmatprep.subr.bf16.mxu0 0
    %2580 = vmatpush1.bf16.xpose.msra.mxu0 %v2577
    %2581 = vmatprep.subr.bf16.mxu0 0
    %2582 = vmatpush1.bf16.xpose.msra.mxu0 0
    %2583 = vmatprep.subr.bf16.mxu0 0
    %2584 = vmatpush1.bf16.xpose.msra.mxu0 0
    %2585 = vmatprep.subr.bf16.mxu0 0
    %2586 = vmatpush1.bf16.xpose.msra.mxu0 0
    %2587 = vmatprep.subr.bf16.mxu0 0
    %2588 = vmatpush1.bf16.xpose.msra.mxu0 0
    %2589 = vmatprep.subr.bf16.mxu0 0
    %2590 = vmatpush1.bf16.xpose.msra.mxu0 0
    %2591 = vmatprep.subr.bf16.mxu0 0
    %2592 = vmatpush1.bf16.xpose.msra.mxu0 0
    %2593 = vmatprep.subr.bf16.mxu0 0
    %2594 = vmatpush1.bf16.xpose.msra.mxu0 0
    %2595 = vmatprep.subr.bf16.mxu0 0
    %2596 = vmatpush1.bf16.xpose.msra.mxu0 0
    %2597 = vmatprep.subr.bf16.mxu0 0
    %2598 = vmatpush1.bf16.xpose.msra.mxu0 0
    %2599 = vmatprep.subr.bf16.mxu0 0
    %2600 = vmatpush1.bf16.xpose.msra.mxu0 0
    %2601 = vmatprep.subr.bf16.mxu0 0
    %2602 = vmatpush1.bf16.xpose.msra.mxu0 0
    %2603 = vmatprep.subr.bf16.mxu0 0
    %2604 = vmatpush1.bf16.xpose.msra.mxu0 0
    %2605 = vmatprep.subr.bf16.mxu0 0
    %2606 = vmatpush1.bf16.xpose.msra.mxu0 0
    %2607 = vmatprep.subr.bf16.mxu0 0
    %2608 = vmatpush1.bf16.xpose.msra.mxu0 0
    %2609 = vmatprep.subr.bf16.mxu0 0
    %2610 = vmatpush1.bf16.xpose.msra.mxu0 0
    %2611 = vmatprep.mubr.bf16.mxu0 0
    %2612 = vmatmul.mubr.bf16.gmra.mrb[0].mxu0 %v2574
    %v2613 = vpop.f32.mrb[0].mxu0
    %v2614 = vadd.f32 0.0, %v2613
    %v2615 = vpop.f32.mrb[0].mxu0
    %v2616 = vpop.f32.mrb[0].mxu0
    %v2617 = vpop.f32.mrb[0].mxu0
    %2618 = vdwg.mxu0
    %v2620 = vsel %vm1928, %v1911, 0
    %v2623 = vsel %vm1928, %v1927, 0
    %2625 = vmatprep.subr.bf16.mxu0 0
    %2626 = vmatpush1.bf16.xpose.msra.mxu0 %v2623
    %2627 = vmatprep.subr.bf16.mxu0 0
    %2628 = vmatpush1.bf16.xpose.msra.mxu0 0
    %2629 = vmatprep.subr.bf16.mxu0 0
    %2630 = vmatpush1.bf16.xpose.msra.mxu0 0
    %2631 = vmatprep.subr.bf16.mxu0 0
    %2632 = vmatpush1.bf16.xpose.msra.mxu0 0
    %2633 = vmatprep.subr.bf16.mxu0 0
    %2634 = vmatpush1.bf16.xpose.msra.mxu0 0
    %2635 = vmatprep.subr.bf16.mxu0 0
    %2636 = vmatpush1.bf16.xpose.msra.mxu0 0
    %2637 = vmatprep.subr.bf16.mxu0 0
    %2638 = vmatpush1.bf16.xpose.msra.mxu0 0
    %2639 = vmatprep.subr.bf16.mxu0 0
    %2640 = vmatpush1.bf16.xpose.msra.mxu0 0
    %2641 = vmatprep.subr.bf16.mxu0 0
    %2642 = vmatpush1.bf16.xpose.msra.mxu0 0
    %2643 = vmatprep.subr.bf16.mxu0 0
    %2644 = vmatpush1.bf16.xpose.msra.mxu0 0
    %2645 = vmatprep.subr.bf16.mxu0 0
    %2646 = vmatpush1.bf16.xpose.msra.mxu0 0
    %2647 = vmatprep.subr.bf16.mxu0 0
    %2648 = vmatpush1.bf16.xpose.msra.mxu0 0
    %2649 = vmatprep.subr.bf16.mxu0 0
    %2650 = vmatpush1.bf16.xpose.msra.mxu0 0
    %2651 = vmatprep.subr.bf16.mxu0 0
    %2652 = vmatpush1.bf16.xpose.msra.mxu0 0
    %2653 = vmatprep.subr.bf16.mxu0 0
    %2654 = vmatpush1.bf16.xpose.msra.mxu0 0
    %2655 = vmatprep.subr.bf16.mxu0 0
    %2656 = vmatpush1.bf16.xpose.msra.mxu0 0
    %2657 = vmatprep.mubr.bf16.mxu0 0
    %2658 = vmatmul.mubr.bf16.gmra.mrb[0].mxu0 %v2620
    %v2659 = vpop.f32.mrb[0].mxu0
    %v2660 = vadd.f32 0.0, %v2659
    %v2661 = vpop.f32.mrb[0].mxu0
    %v2662 = vpop.f32.mrb[0].mxu0
    %v2663 = vpop.f32.mrb[0].mxu0
    %2664 = vdwg.mxu0
    %vm2665 = vcmask 64512
    %v2666 = vsel %vm2665, %v1970, -inf
    %2667 = vmax.xlane.f32.xlu0 %v2666
    %v2668 = vpop.xlane.xlu0 %2667
    %v2669 = vsel %vm2665, %v2016, -inf
    %2670 = vmax.xlane.f32.xlu0 %v2669
    %v2671 = vpop.xlane.xlu0 %2670
    %v2672 = vsel %vm2665, %v2062, -inf
    %2673 = vmax.xlane.f32.xlu0 %v2672
    %v2674 = vpop.xlane.xlu0 %2673
    %v2675 = vsel %vm2665, %v2108, -inf
    %2676 = vmax.xlane.f32.xlu0 %v2675
    %v2677 = vpop.xlane.xlu0 %2676
    %v2678 = vsel %vm2665, %v2154, -inf
    %2679 = vmax.xlane.f32.xlu0 %v2678
    %v2680 = vpop.xlane.xlu0 %2679
    %v2681 = vsel %vm2665, %v2200, -inf
    %2682 = vmax.xlane.f32.xlu0 %v2681
    %v2683 = vpop.xlane.xlu0 %2682
    %v2684 = vsel %vm2665, %v2246, -inf
    %2685 = vmax.xlane.f32.xlu0 %v2684
    %v2686 = vpop.xlane.xlu0 %2685
    %v2687 = vsel %vm2665, %v2292, -inf
    %2688 = vmax.xlane.f32.xlu0 %v2687
    %v2689 = vpop.xlane.xlu0 %2688
    %v2690 = vsel %vm2665, %v2338, -inf
    %2691 = vmax.xlane.f32.xlu0 %v2690
    %v2692 = vpop.xlane.xlu0 %2691
    %v2693 = vsel %vm2665, %v2384, -inf
    %2694 = vmax.xlane.f32.xlu0 %v2693
    %v2695 = vpop.xlane.xlu0 %2694
    %v2696 = vsel %vm2665, %v2430, -inf
    %2697 = vmax.xlane.f32.xlu0 %v2696
    %v2698 = vpop.xlane.xlu0 %2697
    %v2699 = vsel %vm2665, %v2476, -inf
    %2700 = vmax.xlane.f32.xlu0 %v2699
    %v2701 = vpop.xlane.xlu0 %2700
    %v2702 = vsel %vm2665, %v2522, -inf
    %2703 = vmax.xlane.f32.xlu0 %v2702
    %v2704 = vpop.xlane.xlu0 %2703
    %v2705 = vsel %vm2665, %v2568, -inf
    %2706 = vmax.xlane.f32.xlu0 %v2705
    %v2707 = vpop.xlane.xlu0 %2706
    %v2708 = vsel %vm2665, %v2614, -inf
    %2709 = vmax.xlane.f32.xlu0 %v2708
    %v2710 = vpop.xlane.xlu0 %2709
    %v2711 = vsel %vm2665, %v2660, -inf
    %2712 = vmax.xlane.f32.xlu0 %v2711
    %v2713 = vpop.xlane.xlu0 %2712
    %v2714 = vsub.f32 %v1970, %v2668
    %v2715 = vsub.f32 %v2016, %v2671
    %v2716 = vsub.f32 %v2062, %v2674
    %v2717 = vsub.f32 %v2108, %v2677
    %v2718 = vsub.f32 %v2154, %v2680
    %v2719 = vsub.f32 %v2200, %v2683
    %v2720 = vsub.f32 %v2246, %v2686
    %v2721 = vsub.f32 %v2292, %v2689
    %v2722 = vsub.f32 %v2338, %v2692
    %v2723 = vsub.f32 %v2384, %v2695
    %v2724 = vsub.f32 %v2430, %v2698
    %v2725 = vsub.f32 %v2476, %v2701
    %v2726 = vsub.f32 %v2522, %v2704
    %v2727 = vsub.f32 %v2568, %v2707
    %v2728 = vsub.f32 %v2614, %v2710
    %v2729 = vsub.f32 %v2660, %v2713
    %v2730 = vmul.f32 %v2714, 1.442695
    %v2731 = vpow.pop %v2730
    %v2732 = vmul.f32 %v2715, 1.442695
    %v2733 = vpow.pop %v2732
    %v2734 = vmul.f32 %v2716, 1.442695
    %v2735 = vpow.pop %v2734
    %v2736 = vmul.f32 %v2717, 1.442695
    %v2737 = vpow.pop %v2736
    %v2738 = vmul.f32 %v2718, 1.442695
    %v2739 = vpow.pop %v2738
    %v2740 = vmul.f32 %v2719, 1.442695
    %v2741 = vpow.pop %v2740
    %v2742 = vmul.f32 %v2720, 1.442695
    %v2743 = vpow.pop %v2742
    %v2744 = vmul.f32 %v2721, 1.442695
    %v2745 = vpow.pop %v2744
    %v2746 = vmul.f32 %v2722, 1.442695
    %v2747 = vpow.pop %v2746
    %v2748 = vmul.f32 %v2723, 1.442695
    %v2749 = vpow.pop %v2748
    %v2750 = vmul.f32 %v2724, 1.442695
    %v2751 = vpow.pop %v2750
    %v2752 = vmul.f32 %v2725, 1.442695
    %v2753 = vpow.pop %v2752
    %v2754 = vmul.f32 %v2726, 1.442695
    %v2755 = vpow.pop %v2754
    %v2756 = vmul.f32 %v2727, 1.442695
    %v2757 = vpow.pop %v2756
    %v2758 = vmul.f32 %v2728, 1.442695
    %v2759 = vpow.pop %v2758
    %v2760 = vmul.f32 %v2729, 1.442695
    %v2761 = vpow.pop %v2760
    %v2762 = vsel %vm2665, %v2731, 0.0
    %2763 = vadd.xlane.f32.xlu0 %v2762
    %v2764 = vpop.xlane.xlu0 %2763
    %v2765 = vsel %vm2665, %v2733, 0.0
    %2766 = vadd.xlane.f32.xlu0 %v2765
    %v2767 = vpop.xlane.xlu0 %2766
    %v2768 = vsel %vm2665, %v2735, 0.0
    %2769 = vadd.xlane.f32.xlu0 %v2768
    %v2770 = vpop.xlane.xlu0 %2769
    %v2771 = vsel %vm2665, %v2737, 0.0
    %2772 = vadd.xlane.f32.xlu0 %v2771
    %v2773 = vpop.xlane.xlu0 %2772
    %v2774 = vsel %vm2665, %v2739, 0.0
    %2775 = vadd.xlane.f32.xlu0 %v2774
    %v2776 = vpop.xlane.xlu0 %2775
    %v2777 = vsel %vm2665, %v2741, 0.0
    %2778 = vadd.xlane.f32.xlu0 %v2777
    %v2779 = vpop.xlane.xlu0 %2778
    %v2780 = vsel %vm2665, %v2743, 0.0
    %2781 = vadd.xlane.f32.xlu0 %v2780
    %v2782 = vpop.xlane.xlu0 %2781
    %v2783 = vsel %vm2665, %v2745, 0.0
    %2784 = vadd.xlane.f32.xlu0 %v2783
    %v2785 = vpop.xlane.xlu0 %2784
    %v2786 = vsel %vm2665, %v2747, 0.0
    %2787 = vadd.xlane.f32.xlu0 %v2786
    %v2788 = vpop.xlane.xlu0 %2787
    %v2789 = vsel %vm2665, %v2749, 0.0
    %2790 = vadd.xlane.f32.xlu0 %v2789
    %v2791 = vpop.xlane.xlu0 %2790
    %v2792 = vsel %vm2665, %v2751, 0.0
    %2793 = vadd.xlane.f32.xlu0 %v2792
    %v2794 = vpop.xlane.xlu0 %2793
    %v2795 = vsel %vm2665, %v2753, 0.0
    %2796 = vadd.xlane.f32.xlu0 %v2795
    %v2797 = vpop.xlane.xlu0 %2796
    %v2798 = vsel %vm2665, %v2755, 0.0
    %2799 = vadd.xlane.f32.xlu0 %v2798
    %v2800 = vpop.xlane.xlu0 %2799
    %v2801 = vsel %vm2665, %v2757, 0.0
    %2802 = vadd.xlane.f32.xlu0 %v2801
    %v2803 = vpop.xlane.xlu0 %2802
    %v2804 = vsel %vm2665, %v2759, 0.0
    %2805 = vadd.xlane.f32.xlu0 %v2804
    %v2806 = vpop.xlane.xlu0 %2805
    %v2807 = vsel %vm2665, %v2761, 0.0
    %2808 = vadd.xlane.f32.xlu0 %v2807
    %v2809 = vpop.xlane.xlu0 %2808
    %v2810 = vrcp.pop %v2764
    %v2811 = vrcp.pop %v2767
    %v2812 = vrcp.pop %v2770
    %v2813 = vrcp.pop %v2773
    %v2814 = vrcp.pop %v2776
    %v2815 = vrcp.pop %v2779
    %v2816 = vrcp.pop %v2782
    %v2817 = vrcp.pop %v2785
    %v2818 = vrcp.pop %v2788
    %v2819 = vrcp.pop %v2791
    %v2820 = vrcp.pop %v2794
    %v2821 = vrcp.pop %v2797
    %v2822 = vrcp.pop %v2800
    %v2823 = vrcp.pop %v2803
    %v2824 = vrcp.pop %v2806
    %v2825 = vrcp.pop %v2809
    %v2826 = vmul.f32 %v2731, %v2810
    %v2827 = vmul.f32 %v2733, %v2811
    %v2828 = vmul.f32 %v2735, %v2812
    %v2829 = vmul.f32 %v2737, %v2813
    %v2830 = vmul.f32 %v2739, %v2814
    %v2831 = vmul.f32 %v2741, %v2815
    %v2832 = vmul.f32 %v2743, %v2816
    %v2833 = vmul.f32 %v2745, %v2817
    %v2834 = vmul.f32 %v2747, %v2818
    %v2835 = vmul.f32 %v2749, %v2819
    %v2836 = vmul.f32 %v2751, %v2820
    %v2837 = vmul.f32 %v2753, %v2821
    %v2838 = vmul.f32 %v2755, %v2822
    %v2839 = vmul.f32 %v2757, %v2823
    %v2840 = vmul.f32 %v2759, %v2824
    %v2841 = vmul.f32 %v2761, %v2825
    %v2842 = vpack.c.bf16 %v2826, %v2826
    %v2843 = vpack.c.bf16 %v2827, %v2827
    %v2844 = vpack.c.bf16 %v2828, %v2828
    %v2845 = vpack.c.bf16 %v2829, %v2829
    %v2846 = vpack.c.bf16 %v2830, %v2830
    %v2847 = vpack.c.bf16 %v2831, %v2831
    %v2848 = vpack.c.bf16 %v2832, %v2832
    %v2849 = vpack.c.bf16 %v2833, %v2833
    %v2850 = vpack.c.bf16 %v2834, %v2834
    %v2851 = vpack.c.bf16 %v2835, %v2835
    %v2852 = vpack.c.bf16 %v2836, %v2836
    %v2853 = vpack.c.bf16 %v2837, %v2837
    %v2854 = vpack.c.bf16 %v2838, %v2838
    %v2855 = vpack.c.bf16 %v2839, %v2839
    %v2856 = vpack.c.bf16 %v2840, %v2840
    %v2857 = vpack.c.bf16 %v2841, %v2841
    %v2858 = vpack.c.bf16 %v1752, %v1752
    %v2859 = vpack.c.bf16 %v1753, %v1753
    %v2860 = vpack.c.bf16 %v1754, %v1754
    %v2861 = vpack.c.bf16 %v1755, %v1755
    %v2862 = vpack.c.bf16 %v1756, %v1756
    %v2863 = vpack.c.bf16 %v1757, %v1757
    %v2864 = vpack.c.bf16 %v1758, %v1758
    %v2865 = vpack.c.bf16 %v1759, %v1759
    %v2866 = vpack.c.bf16 %v1888, %v1888
    %v2867 = vpack.c.bf16 %v1889, %v1889
    %v2868 = vpack.c.bf16 %v1890, %v1890
    %v2869 = vpack.c.bf16 %v1891, %v1891
    %v2870 = vpack.c.bf16 %v1892, %v1892
    %v2871 = vpack.c.bf16 %v1893, %v1893
    %v2872 = vpack.c.bf16 %v1894, %v1894
    %v2873 = vpack.c.bf16 %v1895, %v1895
    %v2875 = vsel %vm2665, %v2842, 0
    %vm2877 = vcmask 1043456
    %v2879 = vsel %vm2877, %v2858, 0
    %2881 = vmatprep.subr.bf16.mxu0 0
    %2882 = vmatpush1.bf16.msra.mxu0 %v2879
    %2883 = vmatprep.subr.bf16.mxu0 0
    %2884 = vmatpush1.bf16.msra.mxu0 0
    %2885 = vmatprep.subr.bf16.mxu0 0
    %2886 = vmatpush1.bf16.msra.mxu0 0
    %2887 = vmatprep.subr.bf16.mxu0 0
    %2888 = vmatpush1.bf16.msra.mxu0 0
    %2889 = vmatprep.subr.bf16.mxu0 0
    %2890 = vmatpush1.bf16.msra.mxu0 0
    %2891 = vmatprep.subr.bf16.mxu0 0
    %2892 = vmatpush1.bf16.msra.mxu0 0
    %2893 = vmatprep.subr.bf16.mxu0 0
    %2894 = vmatpush1.bf16.msra.mxu0 0
    %2895 = vmatprep.subr.bf16.mxu0 0
    %2896 = vmatpush1.bf16.msra.mxu0 0
    %2897 = vmatprep.subr.bf16.mxu0 0
    %2898 = vmatpush1.bf16.msra.mxu0 0
    %2899 = vmatprep.subr.bf16.mxu0 0
    %2900 = vmatpush1.bf16.msra.mxu0 0
    %2901 = vmatprep.subr.bf16.mxu0 0
    %2902 = vmatpush1.bf16.msra.mxu0 0
    %2903 = vmatprep.subr.bf16.mxu0 0
    %2904 = vmatpush1.bf16.msra.mxu0 0
    %2905 = vmatprep.subr.bf16.mxu0 0
    %2906 = vmatpush1.bf16.msra.mxu0 0
    %2907 = vmatprep.subr.bf16.mxu0 0
    %2908 = vmatpush1.bf16.msra.mxu0 0
    %2909 = vmatprep.subr.bf16.mxu0 0
    %2910 = vmatpush1.bf16.msra.mxu0 0
    %2911 = vmatprep.subr.bf16.mxu0 0
    %2912 = vmatpush1.bf16.msra.mxu0 0
    %2913 = vmatprep.mubr.bf16.mxu0 0
    %2914 = vmatmul.mubr.bf16.gmra.mrb[0].mxu0 %v2875
    %v2915 = vpop.f32.mrb[0].mxu0
    %v2916 = vadd.f32 0.0, %v2915
    %v2917 = vpop.f32.mrb[0].mxu0
    %v2918 = vpop.f32.mrb[0].mxu0
    %v2919 = vpop.f32.mrb[0].mxu0
    %2920 = vdwg.mxu0
    %v2922 = vsel %vm2665, %v2843, 0
    %v2925 = vsel %vm2877, %v2859, 0
    %2927 = vmatprep.subr.bf16.mxu0 0
    %2928 = vmatpush1.bf16.msra.mxu0 %v2925
    %2929 = vmatprep.subr.bf16.mxu0 0
    %2930 = vmatpush1.bf16.msra.mxu0 0
    %2931 = vmatprep.subr.bf16.mxu0 0
    %2932 = vmatpush1.bf16.msra.mxu0 0
    %2933 = vmatprep.subr.bf16.mxu0 0
    %2934 = vmatpush1.bf16.msra.mxu0 0
    %2935 = vmatprep.subr.bf16.mxu0 0
    %2936 = vmatpush1.bf16.msra.mxu0 0
    %2937 = vmatprep.subr.bf16.mxu0 0
    %2938 = vmatpush1.bf16.msra.mxu0 0
    %2939 = vmatprep.subr.bf16.mxu0 0
    %2940 = vmatpush1.bf16.msra.mxu0 0
    %2941 = vmatprep.subr.bf16.mxu0 0
    %2942 = vmatpush1.bf16.msra.mxu0 0
    %2943 = vmatprep.subr.bf16.mxu0 0
    %2944 = vmatpush1.bf16.msra.mxu0 0
    %2945 = vmatprep.subr.bf16.mxu0 0
    %2946 = vmatpush1.bf16.msra.mxu0 0
    %2947 = vmatprep.subr.bf16.mxu0 0
    %2948 = vmatpush1.bf16.msra.mxu0 0
    %2949 = vmatprep.subr.bf16.mxu0 0
    %2950 = vmatpush1.bf16.msra.mxu0 0
    %2951 = vmatprep.subr.bf16.mxu0 0
    %2952 = vmatpush1.bf16.msra.mxu0 0
    %2953 = vmatprep.subr.bf16.mxu0 0
    %2954 = vmatpush1.bf16.msra.mxu0 0
    %2955 = vmatprep.subr.bf16.mxu0 0
    %2956 = vmatpush1.bf16.msra.mxu0 0
    %2957 = vmatprep.subr.bf16.mxu0 0
    %2958 = vmatpush1.bf16.msra.mxu0 0
    %2959 = vmatprep.mubr.bf16.mxu0 0
    %2960 = vmatmul.mubr.bf16.gmra.mrb[0].mxu0 %v2922
    %v2961 = vpop.f32.mrb[0].mxu0
    %v2962 = vadd.f32 0.0, %v2961
    %v2963 = vpop.f32.mrb[0].mxu0
    %v2964 = vpop.f32.mrb[0].mxu0
    %v2965 = vpop.f32.mrb[0].mxu0
    %2966 = vdwg.mxu0
    %v2968 = vsel %vm2665, %v2844, 0
    %v2971 = vsel %vm2877, %v2860, 0
    %2973 = vmatprep.subr.bf16.mxu0 0
    %2974 = vmatpush1.bf16.msra.mxu0 %v2971
    %2975 = vmatprep.subr.bf16.mxu0 0
    %2976 = vmatpush1.bf16.msra.mxu0 0
    %2977 = vmatprep.subr.bf16.mxu0 0
    %2978 = vmatpush1.bf16.msra.mxu0 0
    %2979 = vmatprep.subr.bf16.mxu0 0
    %2980 = vmatpush1.bf16.msra.mxu0 0
    %2981 = vmatprep.subr.bf16.mxu0 0
    %2982 = vmatpush1.bf16.msra.mxu0 0
    %2983 = vmatprep.subr.bf16.mxu0 0
    %2984 = vmatpush1.bf16.msra.mxu0 0
    %2985 = vmatprep.subr.bf16.mxu0 0
    %2986 = vmatpush1.bf16.msra.mxu0 0
    %2987 = vmatprep.subr.bf16.mxu0 0
    %2988 = vmatpush1.bf16.msra.mxu0 0
    %2989 = vmatprep.subr.bf16.mxu0 0
    %2990 = vmatpush1.bf16.msra.mxu0 0
    %2991 = vmatprep.subr.bf16.mxu0 0
    %2992 = vmatpush1.bf16.msra.mxu0 0
    %2993 = vmatprep.subr.bf16.mxu0 0
    %2994 = vmatpush1.bf16.msra.mxu0 0
    %2995 = vmatprep.subr.bf16.mxu0 0
    %2996 = vmatpush1.bf16.msra.mxu0 0
    %2997 = vmatprep.subr.bf16.mxu0 0
    %2998 = vmatpush1.bf16.msra.mxu0 0
    %2999 = vmatprep.subr.bf16.mxu0 0
    %3000 = vmatpush1.bf16.msra.mxu0 0
    %3001 = vmatprep.subr.bf16.mxu0 0
    %3002 = vmatpush1.bf16.msra.mxu0 0
    %3003 = vmatprep.subr.bf16.mxu0 0
    %3004 = vmatpush1.bf16.msra.mxu0 0
    %3005 = vmatprep.mubr.bf16.mxu0 0
    %3006 = vmatmul.mubr.bf16.gmra.mrb[0].mxu0 %v2968
    %v3007 = vpop.f32.mrb[0].mxu0
    %v3008 = vadd.f32 0.0, %v3007
    %v3009 = vpop.f32.mrb[0].mxu0
    %v3010 = vpop.f32.mrb[0].mxu0
    %v3011 = vpop.f32.mrb[0].mxu0
    %3012 = vdwg.mxu0
    %v3014 = vsel %vm2665, %v2845, 0
    %v3017 = vsel %vm2877, %v2861, 0
    %3019 = vmatprep.subr.bf16.mxu0 0
    %3020 = vmatpush1.bf16.msra.mxu0 %v3017
    %3021 = vmatprep.subr.bf16.mxu0 0
    %3022 = vmatpush1.bf16.msra.mxu0 0
    %3023 = vmatprep.subr.bf16.mxu0 0
    %3024 = vmatpush1.bf16.msra.mxu0 0
    %3025 = vmatprep.subr.bf16.mxu0 0
    %3026 = vmatpush1.bf16.msra.mxu0 0
    %3027 = vmatprep.subr.bf16.mxu0 0
    %3028 = vmatpush1.bf16.msra.mxu0 0
    %3029 = vmatprep.subr.bf16.mxu0 0
    %3030 = vmatpush1.bf16.msra.mxu0 0
    %3031 = vmatprep.subr.bf16.mxu0 0
    %3032 = vmatpush1.bf16.msra.mxu0 0
    %3033 = vmatprep.subr.bf16.mxu0 0
    %3034 = vmatpush1.bf16.msra.mxu0 0
    %3035 = vmatprep.subr.bf16.mxu0 0
    %3036 = vmatpush1.bf16.msra.mxu0 0
    %3037 = vmatprep.subr.bf16.mxu0 0
    %3038 = vmatpush1.bf16.msra.mxu0 0
    %3039 = vmatprep.subr.bf16.mxu0 0
    %3040 = vmatpush1.bf16.msra.mxu0 0
    %3041 = vmatprep.subr.bf16.mxu0 0
    %3042 = vmatpush1.bf16.msra.mxu0 0
    %3043 = vmatprep.subr.bf16.mxu0 0
    %3044 = vmatpush1.bf16.msra.mxu0 0
    %3045 = vmatprep.subr.bf16.mxu0 0
    %3046 = vmatpush1.bf16.msra.mxu0 0
    %3047 = vmatprep.subr.bf16.mxu0 0
    %3048 = vmatpush1.bf16.msra.mxu0 0
    %3049 = vmatprep.subr.bf16.mxu0 0
    %3050 = vmatpush1.bf16.msra.mxu0 0
    %3051 = vmatprep.mubr.bf16.mxu0 0
    %3052 = vmatmul.mubr.bf16.gmra.mrb[0].mxu0 %v3014
    %v3053 = vpop.f32.mrb[0].mxu0
    %v3054 = vadd.f32 0.0, %v3053
    %v3055 = vpop.f32.mrb[0].mxu0
    %v3056 = vpop.f32.mrb[0].mxu0
    %v3057 = vpop.f32.mrb[0].mxu0
    %3058 = vdwg.mxu0
    %v3060 = vsel %vm2665, %v2846, 0
    %v3063 = vsel %vm2877, %v2862, 0
    %3065 = vmatprep.subr.bf16.mxu0 0
    %3066 = vmatpush1.bf16.msra.mxu0 %v3063
    %3067 = vmatprep.subr.bf16.mxu0 0
    %3068 = vmatpush1.bf16.msra.mxu0 0
    %3069 = vmatprep.subr.bf16.mxu0 0
    %3070 = vmatpush1.bf16.msra.mxu0 0
    %3071 = vmatprep.subr.bf16.mxu0 0
    %3072 = vmatpush1.bf16.msra.mxu0 0
    %3073 = vmatprep.subr.bf16.mxu0 0
    %3074 = vmatpush1.bf16.msra.mxu0 0
    %3075 = vmatprep.subr.bf16.mxu0 0
    %3076 = vmatpush1.bf16.msra.mxu0 0
    %3077 = vmatprep.subr.bf16.mxu0 0
    %3078 = vmatpush1.bf16.msra.mxu0 0
    %3079 = vmatprep.subr.bf16.mxu0 0
    %3080 = vmatpush1.bf16.msra.mxu0 0
    %3081 = vmatprep.subr.bf16.mxu0 0
    %3082 = vmatpush1.bf16.msra.mxu0 0
    %3083 = vmatprep.subr.bf16.mxu0 0
    %3084 = vmatpush1.bf16.msra.mxu0 0
    %3085 = vmatprep.subr.bf16.mxu0 0
    %3086 = vmatpush1.bf16.msra.mxu0 0
    %3087 = vmatprep.subr.bf16.mxu0 0
    %3088 = vmatpush1.bf16.msra.mxu0 0
    %3089 = vmatprep.subr.bf16.mxu0 0
    %3090 = vmatpush1.bf16.msra.mxu0 0
    %3091 = vmatprep.subr.bf16.mxu0 0
    %3092 = vmatpush1.bf16.msra.mxu0 0
    %3093 = vmatprep.subr.bf16.mxu0 0
    %3094 = vmatpush1.bf16.msra.mxu0 0
    %3095 = vmatprep.subr.bf16.mxu0 0
    %3096 = vmatpush1.bf16.msra.mxu0 0
    %3097 = vmatprep.mubr.bf16.mxu0 0
    %3098 = vmatmul.mubr.bf16.gmra.mrb[0].mxu0 %v3060
    %v3099 = vpop.f32.mrb[0].mxu0
    %v3100 = vadd.f32 0.0, %v3099
    %v3101 = vpop.f32.mrb[0].mxu0
    %v3102 = vpop.f32.mrb[0].mxu0
    %v3103 = vpop.f32.mrb[0].mxu0
    %3104 = vdwg.mxu0
    %v3106 = vsel %vm2665, %v2847, 0
    %v3109 = vsel %vm2877, %v2863, 0
    %3111 = vmatprep.subr.bf16.mxu0 0
    %3112 = vmatpush1.bf16.msra.mxu0 %v3109
    %3113 = vmatprep.subr.bf16.mxu0 0
    %3114 = vmatpush1.bf16.msra.mxu0 0
    %3115 = vmatprep.subr.bf16.mxu0 0
    %3116 = vmatpush1.bf16.msra.mxu0 0
    %3117 = vmatprep.subr.bf16.mxu0 0
    %3118 = vmatpush1.bf16.msra.mxu0 0
    %3119 = vmatprep.subr.bf16.mxu0 0
    %3120 = vmatpush1.bf16.msra.mxu0 0
    %3121 = vmatprep.subr.bf16.mxu0 0
    %3122 = vmatpush1.bf16.msra.mxu0 0
    %3123 = vmatprep.subr.bf16.mxu0 0
    %3124 = vmatpush1.bf16.msra.mxu0 0
    %3125 = vmatprep.subr.bf16.mxu0 0
    %3126 = vmatpush1.bf16.msra.mxu0 0
    %3127 = vmatprep.subr.bf16.mxu0 0
    %3128 = vmatpush1.bf16.msra.mxu0 0
    %3129 = vmatprep.subr.bf16.mxu0 0
    %3130 = vmatpush1.bf16.msra.mxu0 0
    %3131 = vmatprep.subr.bf16.mxu0 0
    %3132 = vmatpush1.bf16.msra.mxu0 0
    %3133 = vmatprep.subr.bf16.mxu0 0
    %3134 = vmatpush1.bf16.msra.mxu0 0
    %3135 = vmatprep.subr.bf16.mxu0 0
    %3136 = vmatpush1.bf16.msra.mxu0 0
    %3137 = vmatprep.subr.bf16.mxu0 0
    %3138 = vmatpush1.bf16.msra.mxu0 0
    %3139 = vmatprep.subr.bf16.mxu0 0
    %3140 = vmatpush1.bf16.msra.mxu0 0
    %3141 = vmatprep.subr.bf16.mxu0 0
    %3142 = vmatpush1.bf16.msra.mxu0 0
    %3143 = vmatprep.mubr.bf16.mxu0 0
    %3144 = vmatmul.mubr.bf16.gmra.mrb[0].mxu0 %v3106
    %v3145 = vpop.f32.mrb[0].mxu0
    %v3146 = vadd.f32 0.0, %v3145
    %v3147 = vpop.f32.mrb[0].mxu0
    %v3148 = vpop.f32.mrb[0].mxu0
    %v3149 = vpop.f32.mrb[0].mxu0
    %3150 = vdwg.mxu0
    %v3152 = vsel %vm2665, %v2848, 0
    %v3155 = vsel %vm2877, %v2864, 0
    %3157 = vmatprep.subr.bf16.mxu0 0
    %3158 = vmatpush1.bf16.msra.mxu0 %v3155
    %3159 = vmatprep.subr.bf16.mxu0 0
    %3160 = vmatpush1.bf16.msra.mxu0 0
    %3161 = vmatprep.subr.bf16.mxu0 0
    %3162 = vmatpush1.bf16.msra.mxu0 0
    %3163 = vmatprep.subr.bf16.mxu0 0
    %3164 = vmatpush1.bf16.msra.mxu0 0
    %3165 = vmatprep.subr.bf16.mxu0 0
    %3166 = vmatpush1.bf16.msra.mxu0 0
    %3167 = vmatprep.subr.bf16.mxu0 0
    %3168 = vmatpush1.bf16.msra.mxu0 0
    %3169 = vmatprep.subr.bf16.mxu0 0
    %3170 = vmatpush1.bf16.msra.mxu0 0
    %3171 = vmatprep.subr.bf16.mxu0 0
    %3172 = vmatpush1.bf16.msra.mxu0 0
    %3173 = vmatprep.subr.bf16.mxu0 0
    %3174 = vmatpush1.bf16.msra.mxu0 0
    %3175 = vmatprep.subr.bf16.mxu0 0
    %3176 = vmatpush1.bf16.msra.mxu0 0
    %3177 = vmatprep.subr.bf16.mxu0 0
    %3178 = vmatpush1.bf16.msra.mxu0 0
    %3179 = vmatprep.subr.bf16.mxu0 0
    %3180 = vmatpush1.bf16.msra.mxu0 0
    %3181 = vmatprep.subr.bf16.mxu0 0
    %3182 = vmatpush1.bf16.msra.mxu0 0
    %3183 = vmatprep.subr.bf16.mxu0 0
    %3184 = vmatpush1.bf16.msra.mxu0 0
    %3185 = vmatprep.subr.bf16.mxu0 0
    %3186 = vmatpush1.bf16.msra.mxu0 0
    %3187 = vmatprep.subr.bf16.mxu0 0
    %3188 = vmatpush1.bf16.msra.mxu0 0
    %3189 = vmatprep.mubr.bf16.mxu0 0
    %3190 = vmatmul.mubr.bf16.gmra.mrb[0].mxu0 %v3152
    %v3191 = vpop.f32.mrb[0].mxu0
    %v3192 = vadd.f32 0.0, %v3191
    %v3193 = vpop.f32.mrb[0].mxu0
    %v3194 = vpop.f32.mrb[0].mxu0
    %v3195 = vpop.f32.mrb[0].mxu0
    %3196 = vdwg.mxu0
    %v3198 = vsel %vm2665, %v2849, 0
    %v3201 = vsel %vm2877, %v2865, 0
    %3203 = vmatprep.subr.bf16.mxu0 0
    %3204 = vmatpush1.bf16.msra.mxu0 %v3201
    %3205 = vmatprep.subr.bf16.mxu0 0
    %3206 = vmatpush1.bf16.msra.mxu0 0
    %3207 = vmatprep.subr.bf16.mxu0 0
    %3208 = vmatpush1.bf16.msra.mxu0 0
    %3209 = vmatprep.subr.bf16.mxu0 0
    %3210 = vmatpush1.bf16.msra.mxu0 0
    %3211 = vmatprep.subr.bf16.mxu0 0
    %3212 = vmatpush1.bf16.msra.mxu0 0
    %3213 = vmatprep.subr.bf16.mxu0 0
    %3214 = vmatpush1.bf16.msra.mxu0 0
    %3215 = vmatprep.subr.bf16.mxu0 0
    %3216 = vmatpush1.bf16.msra.mxu0 0
    %3217 = vmatprep.subr.bf16.mxu0 0
    %3218 = vmatpush1.bf16.msra.mxu0 0
    %3219 = vmatprep.subr.bf16.mxu0 0
    %3220 = vmatpush1.bf16.msra.mxu0 0
    %3221 = vmatprep.subr.bf16.mxu0 0
    %3222 = vmatpush1.bf16.msra.mxu0 0
    %3223 = vmatprep.subr.bf16.mxu0 0
    %3224 = vmatpush1.bf16.msra.mxu0 0
    %3225 = vmatprep.subr.bf16.mxu0 0
    %3226 = vmatpush1.bf16.msra.mxu0 0
    %3227 = vmatprep.subr.bf16.mxu0 0
    %3228 = vmatpush1.bf16.msra.mxu0 0
    %3229 = vmatprep.subr.bf16.mxu0 0
    %3230 = vmatpush1.bf16.msra.mxu0 0
    %3231 = vmatprep.subr.bf16.mxu0 0
    %3232 = vmatpush1.bf16.msra.mxu0 0
    %3233 = vmatprep.subr.bf16.mxu0 0
    %3234 = vmatpush1.bf16.msra.mxu0 0
    %3235 = vmatprep.mubr.bf16.mxu0 0
    %3236 = vmatmul.mubr.bf16.gmra.mrb[0].mxu0 %v3198
    %v3237 = vpop.f32.mrb[0].mxu0
    %v3238 = vadd.f32 0.0, %v3237
    %v3239 = vpop.f32.mrb[0].mxu0
    %v3240 = vpop.f32.mrb[0].mxu0
    %v3241 = vpop.f32.mrb[0].mxu0
    %3242 = vdwg.mxu0
    %v3244 = vsel %vm2665, %v2850, 0
    %v3247 = vsel %vm2877, %v2866, 0
    %3249 = vmatprep.subr.bf16.mxu0 0
    %3250 = vmatpush1.bf16.msra.mxu0 %v3247
    %3251 = vmatprep.subr.bf16.mxu0 0
    %3252 = vmatpush1.bf16.msra.mxu0 0
    %3253 = vmatprep.subr.bf16.mxu0 0
    %3254 = vmatpush1.bf16.msra.mxu0 0
    %3255 = vmatprep.subr.bf16.mxu0 0
    %3256 = vmatpush1.bf16.msra.mxu0 0
    %3257 = vmatprep.subr.bf16.mxu0 0
    %3258 = vmatpush1.bf16.msra.mxu0 0
    %3259 = vmatprep.subr.bf16.mxu0 0
    %3260 = vmatpush1.bf16.msra.mxu0 0
    %3261 = vmatprep.subr.bf16.mxu0 0
    %3262 = vmatpush1.bf16.msra.mxu0 0
    %3263 = vmatprep.subr.bf16.mxu0 0
    %3264 = vmatpush1.bf16.msra.mxu0 0
    %3265 = vmatprep.subr.bf16.mxu0 0
    %3266 = vmatpush1.bf16.msra.mxu0 0
    %3267 = vmatprep.subr.bf16.mxu0 0
    %3268 = vmatpush1.bf16.msra.mxu0 0
    %3269 = vmatprep.subr.bf16.mxu0 0
    %3270 = vmatpush1.bf16.msra.mxu0 0
    %3271 = vmatprep.subr.bf16.mxu0 0
    %3272 = vmatpush1.bf16.msra.mxu0 0
    %3273 = vmatprep.subr.bf16.mxu0 0
    %3274 = vmatpush1.bf16.msra.mxu0 0
    %3275 = vmatprep.subr.bf16.mxu0 0
    %3276 = vmatpush1.bf16.msra.mxu0 0
    %3277 = vmatprep.subr.bf16.mxu0 0
    %3278 = vmatpush1.bf16.msra.mxu0 0
    %3279 = vmatprep.subr.bf16.mxu0 0
    %3280 = vmatpush1.bf16.msra.mxu0 0
    %3281 = vmatprep.mubr.bf16.mxu0 0
    %3282 = vmatmul.mubr.bf16.gmra.mrb[0].mxu0 %v3244
    %v3283 = vpop.f32.mrb[0].mxu0
    %v3284 = vadd.f32 0.0, %v3283
    %v3285 = vpop.f32.mrb[0].mxu0
    %v3286 = vpop.f32.mrb[0].mxu0
    %v3287 = vpop.f32.mrb[0].mxu0
    %3288 = vdwg.mxu0
    %v3290 = vsel %vm2665, %v2851, 0
    %v3293 = vsel %vm2877, %v2867, 0
    %3295 = vmatprep.subr.bf16.mxu0 0
    %3296 = vmatpush1.bf16.msra.mxu0 %v3293
    %3297 = vmatprep.subr.bf16.mxu0 0
    %3298 = vmatpush1.bf16.msra.mxu0 0
    %3299 = vmatprep.subr.bf16.mxu0 0
    %3300 = vmatpush1.bf16.msra.mxu0 0
    %3301 = vmatprep.subr.bf16.mxu0 0
    %3302 = vmatpush1.bf16.msra.mxu0 0
    %3303 = vmatprep.subr.bf16.mxu0 0
    %3304 = vmatpush1.bf16.msra.mxu0 0
    %3305 = vmatprep.subr.bf16.mxu0 0
    %3306 = vmatpush1.bf16.msra.mxu0 0
    %3307 = vmatprep.subr.bf16.mxu0 0
    %3308 = vmatpush1.bf16.msra.mxu0 0
    %3309 = vmatprep.subr.bf16.mxu0 0
    %3310 = vmatpush1.bf16.msra.mxu0 0
    %3311 = vmatprep.subr.bf16.mxu0 0
    %3312 = vmatpush1.bf16.msra.mxu0 0
    %3313 = vmatprep.subr.bf16.mxu0 0
    %3314 = vmatpush1.bf16.msra.mxu0 0
    %3315 = vmatprep.subr.bf16.mxu0 0
    %3316 = vmatpush1.bf16.msra.mxu0 0
    %3317 = vmatprep.subr.bf16.mxu0 0
    %3318 = vmatpush1.bf16.msra.mxu0 0
    %3319 = vmatprep.subr.bf16.mxu0 0
    %3320 = vmatpush1.bf16.msra.mxu0 0
    %3321 = vmatprep.subr.bf16.mxu0 0
    %3322 = vmatpush1.bf16.msra.mxu0 0
    %3323 = vmatprep.subr.bf16.mxu0 0
    %3324 = vmatpush1.bf16.msra.mxu0 0
    %3325 = vmatprep.subr.bf16.mxu0 0
    %3326 = vmatpush1.bf16.msra.mxu0 0
    %3327 = vmatprep.mubr.bf16.mxu0 0
    %3328 = vmatmul.mubr.bf16.gmra.mrb[0].mxu0 %v3290
    %v3329 = vpop.f32.mrb[0].mxu0
    %v3330 = vadd.f32 0.0, %v3329
    %v3331 = vpop.f32.mrb[0].mxu0
    %v3332 = vpop.f32.mrb[0].mxu0
    %v3333 = vpop.f32.mrb[0].mxu0
    %3334 = vdwg.mxu0
    %v3336 = vsel %vm2665, %v2852, 0
    %v3339 = vsel %vm2877, %v2868, 0
    %3341 = vmatprep.subr.bf16.mxu0 0
    %3342 = vmatpush1.bf16.msra.mxu0 %v3339
    %3343 = vmatprep.subr.bf16.mxu0 0
    %3344 = vmatpush1.bf16.msra.mxu0 0
    %3345 = vmatprep.subr.bf16.mxu0 0
    %3346 = vmatpush1.bf16.msra.mxu0 0
    %3347 = vmatprep.subr.bf16.mxu0 0
    %3348 = vmatpush1.bf16.msra.mxu0 0
    %3349 = vmatprep.subr.bf16.mxu0 0
    %3350 = vmatpush1.bf16.msra.mxu0 0
    %3351 = vmatprep.subr.bf16.mxu0 0
    %3352 = vmatpush1.bf16.msra.mxu0 0
    %3353 = vmatprep.subr.bf16.mxu0 0
    %3354 = vmatpush1.bf16.msra.mxu0 0
    %3355 = vmatprep.subr.bf16.mxu0 0
    %3356 = vmatpush1.bf16.msra.mxu0 0
    %3357 = vmatprep.subr.bf16.mxu0 0
    %3358 = vmatpush1.bf16.msra.mxu0 0
    %3359 = vmatprep.subr.bf16.mxu0 0
    %3360 = vmatpush1.bf16.msra.mxu0 0
    %3361 = vmatprep.subr.bf16.mxu0 0
    %3362 = vmatpush1.bf16.msra.mxu0 0
    %3363 = vmatprep.subr.bf16.mxu0 0
    %3364 = vmatpush1.bf16.msra.mxu0 0
    %3365 = vmatprep.subr.bf16.mxu0 0
    %3366 = vmatpush1.bf16.msra.mxu0 0
    %3367 = vmatprep.subr.bf16.mxu0 0
    %3368 = vmatpush1.bf16.msra.mxu0 0
    %3369 = vmatprep.subr.bf16.mxu0 0
    %3370 = vmatpush1.bf16.msra.mxu0 0
    %3371 = vmatprep.subr.bf16.mxu0 0
    %3372 = vmatpush1.bf16.msra.mxu0 0
    %3373 = vmatprep.mubr.bf16.mxu0 0
    %3374 = vmatmul.mubr.bf16.gmra.mrb[0].mxu0 %v3336
    %v3375 = vpop.f32.mrb[0].mxu0
    %v3376 = vadd.f32 0.0, %v3375
    %v3377 = vpop.f32.mrb[0].mxu0
    %v3378 = vpop.f32.mrb[0].mxu0
    %v3379 = vpop.f32.mrb[0].mxu0
    %3380 = vdwg.mxu0
    %v3382 = vsel %vm2665, %v2853, 0
    %v3385 = vsel %vm2877, %v2869, 0
    %3387 = vmatprep.subr.bf16.mxu0 0
    %3388 = vmatpush1.bf16.msra.mxu0 %v3385
    %3389 = vmatprep.subr.bf16.mxu0 0
    %3390 = vmatpush1.bf16.msra.mxu0 0
    %3391 = vmatprep.subr.bf16.mxu0 0
    %3392 = vmatpush1.bf16.msra.mxu0 0
    %3393 = vmatprep.subr.bf16.mxu0 0
    %3394 = vmatpush1.bf16.msra.mxu0 0
    %3395 = vmatprep.subr.bf16.mxu0 0
    %3396 = vmatpush1.bf16.msra.mxu0 0
    %3397 = vmatprep.subr.bf16.mxu0 0
    %3398 = vmatpush1.bf16.msra.mxu0 0
    %3399 = vmatprep.subr.bf16.mxu0 0
    %3400 = vmatpush1.bf16.msra.mxu0 0
    %3401 = vmatprep.subr.bf16.mxu0 0
    %3402 = vmatpush1.bf16.msra.mxu0 0
    %3403 = vmatprep.subr.bf16.mxu0 0
    %3404 = vmatpush1.bf16.msra.mxu0 0
    %3405 = vmatprep.subr.bf16.mxu0 0
    %3406 = vmatpush1.bf16.msra.mxu0 0
    %3407 = vmatprep.subr.bf16.mxu0 0
    %3408 = vmatpush1.bf16.msra.mxu0 0
    %3409 = vmatprep.subr.bf16.mxu0 0
    %3410 = vmatpush1.bf16.msra.mxu0 0
    %3411 = vmatprep.subr.bf16.mxu0 0
    %3412 = vmatpush1.bf16.msra.mxu0 0
    %3413 = vmatprep.subr.bf16.mxu0 0
    %3414 = vmatpush1.bf16.msra.mxu0 0
    %3415 = vmatprep.subr.bf16.mxu0 0
    %3416 = vmatpush1.bf16.msra.mxu0 0
    %3417 = vmatprep.subr.bf16.mxu0 0
    %3418 = vmatpush1.bf16.msra.mxu0 0
    %3419 = vmatprep.mubr.bf16.mxu0 0
    %3420 = vmatmul.mubr.bf16.gmra.mrb[0].mxu0 %v3382
    %v3421 = vpop.f32.mrb[0].mxu0
    %v3422 = vadd.f32 0.0, %v3421
    %v3423 = vpop.f32.mrb[0].mxu0
    %v3424 = vpop.f32.mrb[0].mxu0
    %v3425 = vpop.f32.mrb[0].mxu0
    %3426 = vdwg.mxu0
    %v3428 = vsel %vm2665, %v2854, 0
    %v3431 = vsel %vm2877, %v2870, 0
    %3433 = vmatprep.subr.bf16.mxu0 0
    %3434 = vmatpush1.bf16.msra.mxu0 %v3431
    %3435 = vmatprep.subr.bf16.mxu0 0
    %3436 = vmatpush1.bf16.msra.mxu0 0
    %3437 = vmatprep.subr.bf16.mxu0 0
    %3438 = vmatpush1.bf16.msra.mxu0 0
    %3439 = vmatprep.subr.bf16.mxu0 0
    %3440 = vmatpush1.bf16.msra.mxu0 0
    %3441 = vmatprep.subr.bf16.mxu0 0
    %3442 = vmatpush1.bf16.msra.mxu0 0
    %3443 = vmatprep.subr.bf16.mxu0 0
    %3444 = vmatpush1.bf16.msra.mxu0 0
    %3445 = vmatprep.subr.bf16.mxu0 0
    %3446 = vmatpush1.bf16.msra.mxu0 0
    %3447 = vmatprep.subr.bf16.mxu0 0
    %3448 = vmatpush1.bf16.msra.mxu0 0
    %3449 = vmatprep.subr.bf16.mxu0 0
    %3450 = vmatpush1.bf16.msra.mxu0 0
    %3451 = vmatprep.subr.bf16.mxu0 0
    %3452 = vmatpush1.bf16.msra.mxu0 0
    %3453 = vmatprep.subr.bf16.mxu0 0
    %3454 = vmatpush1.bf16.msra.mxu0 0
    %3455 = vmatprep.subr.bf16.mxu0 0
    %3456 = vmatpush1.bf16.msra.mxu0 0
    %3457 = vmatprep.subr.bf16.mxu0 0
    %3458 = vmatpush1.bf16.msra.mxu0 0
    %3459 = vmatprep.subr.bf16.mxu0 0
    %3460 = vmatpush1.bf16.msra.mxu0 0
    %3461 = vmatprep.subr.bf16.mxu0 0
    %3462 = vmatpush1.bf16.msra.mxu0 0
    %3463 = vmatprep.subr.bf16.mxu0 0
    %3464 = vmatpush1.bf16.msra.mxu0 0
    %3465 = vmatprep.mubr.bf16.mxu0 0
    %3466 = vmatmul.mubr.bf16.gmra.mrb[0].mxu0 %v3428
    %v3467 = vpop.f32.mrb[0].mxu0
    %v3468 = vadd.f32 0.0, %v3467
    %v3469 = vpop.f32.mrb[0].mxu0
    %v3470 = vpop.f32.mrb[0].mxu0
    %v3471 = vpop.f32.mrb[0].mxu0
    %3472 = vdwg.mxu0
    %v3474 = vsel %vm2665, %v2855, 0
    %v3477 = vsel %vm2877, %v2871, 0
    %3479 = vmatprep.subr.bf16.mxu0 0
    %3480 = vmatpush1.bf16.msra.mxu0 %v3477
    %3481 = vmatprep.subr.bf16.mxu0 0
    %3482 = vmatpush1.bf16.msra.mxu0 0
    %3483 = vmatprep.subr.bf16.mxu0 0
    %3484 = vmatpush1.bf16.msra.mxu0 0
    %3485 = vmatprep.subr.bf16.mxu0 0
    %3486 = vmatpush1.bf16.msra.mxu0 0
    %3487 = vmatprep.subr.bf16.mxu0 0
    %3488 = vmatpush1.bf16.msra.mxu0 0
    %3489 = vmatprep.subr.bf16.mxu0 0
    %3490 = vmatpush1.bf16.msra.mxu0 0
    %3491 = vmatprep.subr.bf16.mxu0 0
    %3492 = vmatpush1.bf16.msra.mxu0 0
    %3493 = vmatprep.subr.bf16.mxu0 0
    %3494 = vmatpush1.bf16.msra.mxu0 0
    %3495 = vmatprep.subr.bf16.mxu0 0
    %3496 = vmatpush1.bf16.msra.mxu0 0
    %3497 = vmatprep.subr.bf16.mxu0 0
    %3498 = vmatpush1.bf16.msra.mxu0 0
    %3499 = vmatprep.subr.bf16.mxu0 0
    %3500 = vmatpush1.bf16.msra.mxu0 0
    %3501 = vmatprep.subr.bf16.mxu0 0
    %3502 = vmatpush1.bf16.msra.mxu0 0
    %3503 = vmatprep.subr.bf16.mxu0 0
    %3504 = vmatpush1.bf16.msra.mxu0 0
    %3505 = vmatprep.subr.bf16.mxu0 0
    %3506 = vmatpush1.bf16.msra.mxu0 0
    %3507 = vmatprep.subr.bf16.mxu0 0
    %3508 = vmatpush1.bf16.msra.mxu0 0
    %3509 = vmatprep.subr.bf16.mxu0 0
    %3510 = vmatpush1.bf16.msra.mxu0 0
    %3511 = vmatprep.mubr.bf16.mxu0 0
    %3512 = vmatmul.mubr.bf16.gmra.mrb[0].mxu0 %v3474
    %v3513 = vpop.f32.mrb[0].mxu0
    %v3514 = vadd.f32 0.0, %v3513
    %v3515 = vpop.f32.mrb[0].mxu0
    %v3516 = vpop.f32.mrb[0].mxu0
    %v3517 = vpop.f32.mrb[0].mxu0
    %3518 = vdwg.mxu0
    %v3520 = vsel %vm2665, %v2856, 0
    %v3523 = vsel %vm2877, %v2872, 0
    %3525 = vmatprep.subr.bf16.mxu0 0
    %3526 = vmatpush1.bf16.msra.mxu0 %v3523
    %3527 = vmatprep.subr.bf16.mxu0 0
    %3528 = vmatpush1.bf16.msra.mxu0 0
    %3529 = vmatprep.subr.bf16.mxu0 0
    %3530 = vmatpush1.bf16.msra.mxu0 0
    %3531 = vmatprep.subr.bf16.mxu0 0
    %3532 = vmatpush1.bf16.msra.mxu0 0
    %3533 = vmatprep.subr.bf16.mxu0 0
    %3534 = vmatpush1.bf16.msra.mxu0 0
    %3535 = vmatprep.subr.bf16.mxu0 0
    %3536 = vmatpush1.bf16.msra.mxu0 0
    %3537 = vmatprep.subr.bf16.mxu0 0
    %3538 = vmatpush1.bf16.msra.mxu0 0
    %3539 = vmatprep.subr.bf16.mxu0 0
    %3540 = vmatpush1.bf16.msra.mxu0 0
    %3541 = vmatprep.subr.bf16.mxu0 0
    %3542 = vmatpush1.bf16.msra.mxu0 0
    %3543 = vmatprep.subr.bf16.mxu0 0
    %3544 = vmatpush1.bf16.msra.mxu0 0
    %3545 = vmatprep.subr.bf16.mxu0 0
    %3546 = vmatpush1.bf16.msra.mxu0 0
    %3547 = vmatprep.subr.bf16.mxu0 0
    %3548 = vmatpush1.bf16.msra.mxu0 0
    %3549 = vmatprep.subr.bf16.mxu0 0
    %3550 = vmatpush1.bf16.msra.mxu0 0
    %3551 = vmatprep.subr.bf16.mxu0 0
    %3552 = vmatpush1.bf16.msra.mxu0 0
    %3553 = vmatprep.subr.bf16.mxu0 0
    %3554 = vmatpush1.bf16.msra.mxu0 0
    %3555 = vmatprep.subr.bf16.mxu0 0
    %3556 = vmatpush1.bf16.msra.mxu0 0
    %3557 = vmatprep.mubr.bf16.mxu0 0
    %3558 = vmatmul.mubr.bf16.gmra.mrb[0].mxu0 %v3520
    %v3559 = vpop.f32.mrb[0].mxu0
    %v3560 = vadd.f32 0.0, %v3559
    %v3561 = vpop.f32.mrb[0].mxu0
    %v3562 = vpop.f32.mrb[0].mxu0
    %v3563 = vpop.f32.mrb[0].mxu0
    %3564 = vdwg.mxu0
    %v3566 = vsel %vm2665, %v2857, 0
    %v3569 = vsel %vm2877, %v2873, 0
    %3571 = vmatprep.subr.bf16.mxu0 0
    %3572 = vmatpush1.bf16.msra.mxu0 %v3569
    %3573 = vmatprep.subr.bf16.mxu0 0
    %3574 = vmatpush1.bf16.msra.mxu0 0
    %3575 = vmatprep.subr.bf16.mxu0 0
    %3576 = vmatpush1.bf16.msra.mxu0 0
    %3577 = vmatprep.subr.bf16.mxu0 0
    %3578 = vmatpush1.bf16.msra.mxu0 0
    %3579 = vmatprep.subr.bf16.mxu0 0
    %3580 = vmatpush1.bf16.msra.mxu0 0
    %3581 = vmatprep.subr.bf16.mxu0 0
    %3582 = vmatpush1.bf16.msra.mxu0 0
    %3583 = vmatprep.subr.bf16.mxu0 0
    %3584 = vmatpush1.bf16.msra.mxu0 0
    %3585 = vmatprep.subr.bf16.mxu0 0
    %3586 = vmatpush1.bf16.msra.mxu0 0
    %3587 = vmatprep.subr.bf16.mxu0 0
    %3588 = vmatpush1.bf16.msra.mxu0 0
    %3589 = vmatprep.subr.bf16.mxu0 0
    %3590 = vmatpush1.bf16.msra.mxu0 0
    %3591 = vmatprep.subr.bf16.mxu0 0
    %3592 = vmatpush1.bf16.msra.mxu0 0
    %3593 = vmatprep.subr.bf16.mxu0 0
    %3594 = vmatpush1.bf16.msra.mxu0 0
    %3595 = vmatprep.subr.bf16.mxu0 0
    %3596 = vmatpush1.bf16.msra.mxu0 0
    %3597 = vmatprep.subr.bf16.mxu0 0
    %3598 = vmatpush1.bf16.msra.mxu0 0
    %3599 = vmatprep.subr.bf16.mxu0 0
    %3600 = vmatpush1.bf16.msra.mxu0 0
    %3601 = vmatprep.subr.bf16.mxu0 0
    %3602 = vmatpush1.bf16.msra.mxu0 0
    %3603 = vmatprep.mubr.bf16.mxu0 0
    %3604 = vmatmul.mubr.bf16.gmra.mrb[0].mxu0 %v3566
    %v3605 = vpop.f32.mrb[0].mxu0
    %v3606 = vadd.f32 0.0, %v3605
    %v3607 = vpop.f32.mrb[0].mxu0
    %v3608 = vpop.f32.mrb[0].mxu0
    %v3609 = vpop.f32.mrb[0].mxu0
    %3610 = vdwg.mxu0
    %v3611 = vcombine.low %v2916, %v3008
    %v3612 = vcombine.high %v2916, %v3008
    %v3614 = vunpack.c.l.s4 1983009808
    %v3615 = vunpack.c.0.s8 %v3614
    %v3616 = vlaneseq
    %v3617 = vshrl.u32 %v3616, 7
    %v3618 = vsub.s32 %v3615, %v3617
    %v3619 = vrot.slane %v3611, %v3618
    %v3621 = vunpack.c.l.s4 1983009808
    %v3622 = vunpack.c.0.s8 %v3621
    %v3623 = vlaneseq
    %v3624 = vshrl.u32 %v3623, 7
    %v3625 = vsub.s32 %v3622, %v3624
    %v3626 = vrot.slane %v3612, %v3625
    %v3627 = vcombine.low %v2962, %v3054
    %v3628 = vcombine.high %v2962, %v3054
    %v3630 = vunpack.c.l.s4 1983009808
    %v3631 = vunpack.c.0.s8 %v3630
    %v3632 = vlaneseq
    %v3633 = vshrl.u32 %v3632, 7
    %v3634 = vsub.s32 %v3631, %v3633
    %v3635 = vrot.slane %v3627, %v3634
    %v3637 = vunpack.c.l.s4 1983009808
    %v3638 = vunpack.c.0.s8 %v3637
    %v3639 = vlaneseq
    %v3640 = vshrl.u32 %v3639, 7
    %v3641 = vsub.s32 %v3638, %v3640
    %v3642 = vrot.slane %v3628, %v3641
    %v3643 = vcombine.low %v3100, %v3192
    %v3644 = vcombine.high %v3100, %v3192
    %v3646 = vunpack.c.l.s4 1983009808
    %v3647 = vunpack.c.0.s8 %v3646
    %v3648 = vlaneseq
    %v3649 = vshrl.u32 %v3648, 7
    %v3650 = vsub.s32 %v3647, %v3649
    %v3651 = vrot.slane %v3643, %v3650
    %v3653 = vunpack.c.l.s4 1983009808
    %v3654 = vunpack.c.0.s8 %v3653
    %v3655 = vlaneseq
    %v3656 = vshrl.u32 %v3655, 7
    %v3657 = vsub.s32 %v3654, %v3656
    %v3658 = vrot.slane %v3644, %v3657
    %v3659 = vcombine.low %v3146, %v3238
    %v3660 = vcombine.high %v3146, %v3238
    %v3662 = vunpack.c.l.s4 1983009808
    %v3663 = vunpack.c.0.s8 %v3662
    %v3664 = vlaneseq
    %v3665 = vshrl.u32 %v3664, 7
    %v3666 = vsub.s32 %v3663, %v3665
    %v3667 = vrot.slane %v3659, %v3666
    %v3669 = vunpack.c.l.s4 1983009808
    %v3670 = vunpack.c.0.s8 %v3669
    %v3671 = vlaneseq
    %v3672 = vshrl.u32 %v3671, 7
    %v3673 = vsub.s32 %v3670, %v3672
    %v3674 = vrot.slane %v3660, %v3673
    %v3675 = vcombine.low %v3619, %v3635
    %v3676 = vcombine.high %v3619, %v3635
    %v3678 = vunpack.c.l.s4 1934713408
    %v3679 = vunpack.c.0.s8 %v3678
    %v3680 = vlaneseq
    %v3681 = vshrl.u32 %v3680, 7
    %v3682 = vsub.s32 %v3679, %v3681
    %v3683 = vrot.slane %v3675, %v3682
    %v3685 = vunpack.c.l.s4 1934713408
    %v3686 = vunpack.c.0.s8 %v3685
    %v3687 = vlaneseq
    %v3688 = vshrl.u32 %v3687, 7
    %v3689 = vsub.s32 %v3686, %v3688
    %v3690 = vrot.slane %v3676, %v3689
    %v3691 = vcombine.low %v3626, %v3642
    %v3692 = vcombine.high %v3626, %v3642
    %v3694 = vunpack.c.l.s4 1934713408
    %v3695 = vunpack.c.0.s8 %v3694
    %v3696 = vlaneseq
    %v3697 = vshrl.u32 %v3696, 7
    %v3698 = vsub.s32 %v3695, %v3697
    %v3699 = vrot.slane %v3691, %v3698
    %v3701 = vunpack.c.l.s4 1934713408
    %v3702 = vunpack.c.0.s8 %v3701
    %v3703 = vlaneseq
    %v3704 = vshrl.u32 %v3703, 7
    %v3705 = vsub.s32 %v3702, %v3704
    %v3706 = vrot.slane %v3692, %v3705
    %v3707 = vcombine.low %v3651, %v3667
    %v3708 = vcombine.high %v3651, %v3667
    %v3710 = vunpack.c.l.s4 1934713408
    %v3711 = vunpack.c.0.s8 %v3710
    %v3712 = vlaneseq
    %v3713 = vshrl.u32 %v3712, 7
    %v3714 = vsub.s32 %v3711, %v3713
    %v3715 = vrot.slane %v3707, %v3714
    %v3717 = vunpack.c.l.s4 1934713408
    %v3718 = vunpack.c.0.s8 %v3717
    %v3719 = vlaneseq
    %v3720 = vshrl.u32 %v3719, 7
    %v3721 = vsub.s32 %v3718, %v3720
    %v3722 = vrot.slane %v3708, %v3721
    %v3723 = vcombine.low %v3658, %v3674
    %v3724 = vcombine.high %v3658, %v3674
    %v3726 = vunpack.c.l.s4 1934713408
    %v3727 = vunpack.c.0.s8 %v3726
    %v3728 = vlaneseq
    %v3729 = vshrl.u32 %v3728, 7
    %v3730 = vsub.s32 %v3727, %v3729
    %v3731 = vrot.slane %v3723, %v3730
    %v3733 = vunpack.c.l.s4 1934713408
    %v3734 = vunpack.c.0.s8 %v3733
    %v3735 = vlaneseq
    %v3736 = vshrl.u32 %v3735, 7
    %v3737 = vsub.s32 %v3734, %v3736
    %v3738 = vrot.slane %v3724, %v3737
    %v3739 = vcombine.low %v3683, %v3715
    %v3740 = vcombine.high %v3683, %v3715
    %v3741 = vcombine.low %v3690, %v3722
    %v3742 = vcombine.high %v3690, %v3722
    %v3743 = vcombine.low %v3699, %v3731
    %v3744 = vcombine.high %v3699, %v3731
    %v3745 = vcombine.low %v3706, %v3738
    %v3746 = vcombine.high %v3706, %v3738
    %v3747 = vcombine.low %v3284, %v3376
    %v3748 = vcombine.high %v3284, %v3376
    %v3750 = vunpack.c.l.s4 1983009808
    %v3751 = vunpack.c.0.s8 %v3750
    %v3752 = vlaneseq
    %v3753 = vshrl.u32 %v3752, 7
    %v3754 = vsub.s32 %v3751, %v3753
    %v3755 = vrot.slane %v3747, %v3754
    %v3757 = vunpack.c.l.s4 1983009808
    %v3758 = vunpack.c.0.s8 %v3757
    %v3759 = vlaneseq
    %v3760 = vshrl.u32 %v3759, 7
    %v3761 = vsub.s32 %v3758, %v3760
    %v3762 = vrot.slane %v3748, %v3761
    %v3763 = vcombine.low %v3330, %v3422
    %v3764 = vcombine.high %v3330, %v3422
    %v3766 = vunpack.c.l.s4 1983009808
    %v3767 = vunpack.c.0.s8 %v3766
    %v3768 = vlaneseq
    %v3769 = vshrl.u32 %v3768, 7
    %v3770 = vsub.s32 %v3767, %v3769
    %v3771 = vrot.slane %v3763, %v3770
    %v3773 = vunpack.c.l.s4 1983009808
    %v3774 = vunpack.c.0.s8 %v3773
    %v3775 = vlaneseq
    %v3776 = vshrl.u32 %v3775, 7
    %v3777 = vsub.s32 %v3774, %v3776
    %v3778 = vrot.slane %v3764, %v3777
    %v3779 = vcombine.low %v3468, %v3560
    %v3780 = vcombine.high %v3468, %v3560
    %v3782 = vunpack.c.l.s4 1983009808
    %v3783 = vunpack.c.0.s8 %v3782
    %v3784 = vlaneseq
    %v3785 = vshrl.u32 %v3784, 7
    %v3786 = vsub.s32 %v3783, %v3785
    %v3787 = vrot.slane %v3779, %v3786
    %v3789 = vunpack.c.l.s4 1983009808
    %v3790 = vunpack.c.0.s8 %v3789
    %v3791 = vlaneseq
    %v3792 = vshrl.u32 %v3791, 7
    %v3793 = vsub.s32 %v3790, %v3792
    %v3794 = vrot.slane %v3780, %v3793
    %v3795 = vcombine.low %v3514, %v3606
    %v3796 = vcombine.high %v3514, %v3606
    %v3798 = vunpack.c.l.s4 1983009808
    %v3799 = vunpack.c.0.s8 %v3798
    %v3800 = vlaneseq
    %v3801 = vshrl.u32 %v3800, 7
    %v3802 = vsub.s32 %v3799, %v3801
    %v3803 = vrot.slane %v3795, %v3802
    %v3805 = vunpack.c.l.s4 1983009808
    %v3806 = vunpack.c.0.s8 %v3805
    %v3807 = vlaneseq
    %v3808 = vshrl.u32 %v3807, 7
    %v3809 = vsub.s32 %v3806, %v3808
    %v3810 = vrot.slane %v3796, %v3809
    %v3811 = vcombine.low %v3755, %v3771
    %v3812 = vcombine.high %v3755, %v3771
    %v3814 = vunpack.c.l.s4 1934713408
    %v3815 = vunpack.c.0.s8 %v3814
    %v3816 = vlaneseq
    %v3817 = vshrl.u32 %v3816, 7
    %v3818 = vsub.s32 %v3815, %v3817
    %v3819 = vrot.slane %v3811, %v3818
    %v3821 = vunpack.c.l.s4 1934713408
    %v3822 = vunpack.c.0.s8 %v3821
    %v3823 = vlaneseq
    %v3824 = vshrl.u32 %v3823, 7
    %v3825 = vsub.s32 %v3822, %v3824
    %v3826 = vrot.slane %v3812, %v3825
    %v3827 = vcombine.low %v3762, %v3778
    %v3828 = vcombine.high %v3762, %v3778
    %v3830 = vunpack.c.l.s4 1934713408
    %v3831 = vunpack.c.0.s8 %v3830
    %v3832 = vlaneseq
    %v3833 = vshrl.u32 %v3832, 7
    %v3834 = vsub.s32 %v3831, %v3833
    %v3835 = vrot.slane %v3827, %v3834
    %v3837 = vunpack.c.l.s4 1934713408
    %v3838 = vunpack.c.0.s8 %v3837
    %v3839 = vlaneseq
    %v3840 = vshrl.u32 %v3839, 7
    %v3841 = vsub.s32 %v3838, %v3840
    %v3842 = vrot.slane %v3828, %v3841
    %v3843 = vcombine.low %v3787, %v3803
    %v3844 = vcombine.high %v3787, %v3803
    %v3846 = vunpack.c.l.s4 1934713408
    %v3847 = vunpack.c.0.s8 %v3846
    %v3848 = vlaneseq
    %v3849 = vshrl.u32 %v3848, 7
    %v3850 = vsub.s32 %v3847, %v3849
    %v3851 = vrot.slane %v3843, %v3850
    %v3853 = vunpack.c.l.s4 1934713408
    %v3854 = vunpack.c.0.s8 %v3853
    %v3855 = vlaneseq
    %v3856 = vshrl.u32 %v3855, 7
    %v3857 = vsub.s32 %v3854, %v3856
    %v3858 = vrot.slane %v3844, %v3857
    %v3859 = vcombine.low %v3794, %v3810
    %v3860 = vcombine.high %v3794, %v3810
    %v3862 = vunpack.c.l.s4 1934713408
    %v3863 = vunpack.c.0.s8 %v3862
    %v3864 = vlaneseq
    %v3865 = vshrl.u32 %v3864, 7
    %v3866 = vsub.s32 %v3863, %v3865
    %v3867 = vrot.slane %v3859, %v3866
    %v3869 = vunpack.c.l.s4 1934713408
    %v3870 = vunpack.c.0.s8 %v3869
    %v3871 = vlaneseq
    %v3872 = vshrl.u32 %v3871, 7
    %v3873 = vsub.s32 %v3870, %v3872
    %v3874 = vrot.slane %v3860, %v3873
    %v3875 = vcombine.low %v3819, %v3851
    %v3876 = vcombine.high %v3819, %v3851
    %v3877 = vcombine.low %v3826, %v3858
    %v3878 = vcombine.high %v3826, %v3858
    %v3879 = vcombine.low %v3835, %v3867
    %v3880 = vcombine.high %v3835, %v3867
    %v3881 = vcombine.low %v3842, %v3874
    %v3882 = vcombine.high %v3842, %v3874
    %v3883 = vcombine.low %v3739, %v3741
    %v3884 = vcombine.high %v3739, %v3741
    %v3886 = vunpack.c.l.s4 1983009808
    %v3887 = vunpack.c.0.s8 %v3886
    %v3888 = vlaneseq
    %v3889 = vshrl.u32 %v3888, 7
    %v3890 = vsub.s32 %v3887, %v3889
    %v3891 = vrot.slane %v3883, %v3890
    %v3893 = vunpack.c.l.s4 1983009808
    %v3894 = vunpack.c.0.s8 %v3893
    %v3895 = vlaneseq
    %v3896 = vshrl.u32 %v3895, 7
    %v3897 = vsub.s32 %v3894, %v3896
    %v3898 = vrot.slane %v3884, %v3897
    %v3899 = vcombine.low %v3740, %v3742
    %v3900 = vcombine.high %v3740, %v3742
    %v3902 = vunpack.c.l.s4 1983009808
    %v3903 = vunpack.c.0.s8 %v3902
    %v3904 = vlaneseq
    %v3905 = vshrl.u32 %v3904, 7
    %v3906 = vsub.s32 %v3903, %v3905
    %v3907 = vrot.slane %v3899, %v3906
    %v3909 = vunpack.c.l.s4 1983009808
    %v3910 = vunpack.c.0.s8 %v3909
    %v3911 = vlaneseq
    %v3912 = vshrl.u32 %v3911, 7
    %v3913 = vsub.s32 %v3910, %v3912
    %v3914 = vrot.slane %v3900, %v3913
    %v3915 = vcombine.low %v3743, %v3745
    %v3916 = vcombine.high %v3743, %v3745
    %v3918 = vunpack.c.l.s4 1983009808
    %v3919 = vunpack.c.0.s8 %v3918
    %v3920 = vlaneseq
    %v3921 = vshrl.u32 %v3920, 7
    %v3922 = vsub.s32 %v3919, %v3921
    %v3923 = vrot.slane %v3915, %v3922
    %v3925 = vunpack.c.l.s4 1983009808
    %v3926 = vunpack.c.0.s8 %v3925
    %v3927 = vlaneseq
    %v3928 = vshrl.u32 %v3927, 7
    %v3929 = vsub.s32 %v3926, %v3928
    %v3930 = vrot.slane %v3916, %v3929
    %v3931 = vcombine.low %v3744, %v3746
    %v3932 = vcombine.high %v3744, %v3746
    %v3934 = vunpack.c.l.s4 1983009808
    %v3935 = vunpack.c.0.s8 %v3934
    %v3936 = vlaneseq
    %v3937 = vshrl.u32 %v3936, 7
    %v3938 = vsub.s32 %v3935, %v3937
    %v3939 = vrot.slane %v3931, %v3938
    %v3941 = vunpack.c.l.s4 1983009808
    %v3942 = vunpack.c.0.s8 %v3941
    %v3943 = vlaneseq
    %v3944 = vshrl.u32 %v3943, 7
    %v3945 = vsub.s32 %v3942, %v3944
    %v3946 = vrot.slane %v3932, %v3945
    %v3947 = vcombine.low %v3891, %v3907
    %v3948 = vcombine.high %v3891, %v3907
    %v3950 = vunpack.c.l.s4 1934713408
    %v3951 = vunpack.c.0.s8 %v3950
    %v3952 = vlaneseq
    %v3953 = vshrl.u32 %v3952, 7
    %v3954 = vsub.s32 %v3951, %v3953
    %v3955 = vrot.slane %v3947, %v3954
    %v3957 = vunpack.c.l.s4 1934713408
    %v3958 = vunpack.c.0.s8 %v3957
    %v3959 = vlaneseq
    %v3960 = vshrl.u32 %v3959, 7
    %v3961 = vsub.s32 %v3958, %v3960
    %v3962 = vrot.slane %v3948, %v3961
    %v3963 = vcombine.low %v3898, %v3914
    %v3964 = vcombine.high %v3898, %v3914
    %v3966 = vunpack.c.l.s4 1934713408
    %v3967 = vunpack.c.0.s8 %v3966
    %v3968 = vlaneseq
    %v3969 = vshrl.u32 %v3968, 7
    %v3970 = vsub.s32 %v3967, %v3969
    %v3971 = vrot.slane %v3963, %v3970
    %v3973 = vunpack.c.l.s4 1934713408
    %v3974 = vunpack.c.0.s8 %v3973
    %v3975 = vlaneseq
    %v3976 = vshrl.u32 %v3975, 7
    %v3977 = vsub.s32 %v3974, %v3976
    %v3978 = vrot.slane %v3964, %v3977
    %v3979 = vcombine.low %v3923, %v3939
    %v3980 = vcombine.high %v3923, %v3939
    %v3982 = vunpack.c.l.s4 1934713408
    %v3983 = vunpack.c.0.s8 %v3982
    %v3984 = vlaneseq
    %v3985 = vshrl.u32 %v3984, 7
    %v3986 = vsub.s32 %v3983, %v3985
    %v3987 = vrot.slane %v3979, %v3986
    %v3989 = vunpack.c.l.s4 1934713408
    %v3990 = vunpack.c.0.s8 %v3989
    %v3991 = vlaneseq
    %v3992 = vshrl.u32 %v3991, 7
    %v3993 = vsub.s32 %v3990, %v3992
    %v3994 = vrot.slane %v3980, %v3993
    %v3995 = vcombine.low %v3930, %v3946
    %v3996 = vcombine.high %v3930, %v3946
    %v3998 = vunpack.c.l.s4 1934713408
    %v3999 = vunpack.c.0.s8 %v3998
    %v4000 = vlaneseq
    %v4001 = vshrl.u32 %v4000, 7
    %v4002 = vsub.s32 %v3999, %v4001
    %v4003 = vrot.slane %v3995, %v4002
    %v4005 = vunpack.c.l.s4 1934713408
    %v4006 = vunpack.c.0.s8 %v4005
    %v4007 = vlaneseq
    %v4008 = vshrl.u32 %v4007, 7
    %v4009 = vsub.s32 %v4006, %v4008
    %v4010 = vrot.slane %v3996, %v4009
    %v4011 = vcombine.low %v3955, %v3987
    %v4012 = vcombine.high %v3955, %v3987
    %v4013 = vcombine.low %v3962, %v3994
    %v4014 = vcombine.high %v3962, %v3994
    %v4015 = vcombine.low %v3971, %v4003
    %v4016 = vcombine.high %v3971, %v4003
    %v4017 = vcombine.low %v3978, %v4010
    %v4018 = vcombine.high %v3978, %v4010
    %v4019 = vcombine.low %v3875, %v3877
    %v4020 = vcombine.high %v3875, %v3877
    %v4022 = vunpack.c.l.s4 1983009808
    %v4023 = vunpack.c.0.s8 %v4022
    %v4024 = vlaneseq
    %v4025 = vshrl.u32 %v4024, 7
    %v4026 = vsub.s32 %v4023, %v4025
    %v4027 = vrot.slane %v4019, %v4026
    %v4029 = vunpack.c.l.s4 1983009808
    %v4030 = vunpack.c.0.s8 %v4029
    %v4031 = vlaneseq
    %v4032 = vshrl.u32 %v4031, 7
    %v4033 = vsub.s32 %v4030, %v4032
    %v4034 = vrot.slane %v4020, %v4033
    %v4035 = vcombine.low %v3876, %v3878
    %v4036 = vcombine.high %v3876, %v3878
    %v4038 = vunpack.c.l.s4 1983009808
    %v4039 = vunpack.c.0.s8 %v4038
    %v4040 = vlaneseq
    %v4041 = vshrl.u32 %v4040, 7
    %v4042 = vsub.s32 %v4039, %v4041
    %v4043 = vrot.slane %v4035, %v4042
    %v4045 = vunpack.c.l.s4 1983009808
    %v4046 = vunpack.c.0.s8 %v4045
    %v4047 = vlaneseq
    %v4048 = vshrl.u32 %v4047, 7
    %v4049 = vsub.s32 %v4046, %v4048
    %v4050 = vrot.slane %v4036, %v4049
    %v4051 = vcombine.low %v3879, %v3881
    %v4052 = vcombine.high %v3879, %v3881
    %v4054 = vunpack.c.l.s4 1983009808
    %v4055 = vunpack.c.0.s8 %v4054
    %v4056 = vlaneseq
    %v4057 = vshrl.u32 %v4056, 7
    %v4058 = vsub.s32 %v4055, %v4057
    %v4059 = vrot.slane %v4051, %v4058
    %v4061 = vunpack.c.l.s4 1983009808
    %v4062 = vunpack.c.0.s8 %v4061
    %v4063 = vlaneseq
    %v4064 = vshrl.u32 %v4063, 7
    %v4065 = vsub.s32 %v4062, %v4064
    %v4066 = vrot.slane %v4052, %v4065
    %v4067 = vcombine.low %v3880, %v3882
    %v4068 = vcombine.high %v3880, %v3882
    %v4070 = vunpack.c.l.s4 1983009808
    %v4071 = vunpack.c.0.s8 %v4070
    %v4072 = vlaneseq
    %v4073 = vshrl.u32 %v4072, 7
    %v4074 = vsub.s32 %v4071, %v4073
    %v4075 = vrot.slane %v4067, %v4074
    %v4077 = vunpack.c.l.s4 1983009808
    %v4078 = vunpack.c.0.s8 %v4077
    %v4079 = vlaneseq
    %v4080 = vshrl.u32 %v4079, 7
    %v4081 = vsub.s32 %v4078, %v4080
    %v4082 = vrot.slane %v4068, %v4081
    %v4083 = vcombine.low %v4027, %v4043
    %v4084 = vcombine.high %v4027, %v4043
    %v4086 = vunpack.c.l.s4 1934713408
    %v4087 = vunpack.c.0.s8 %v4086
    %v4088 = vlaneseq
    %v4089 = vshrl.u32 %v4088, 7
    %v4090 = vsub.s32 %v4087, %v4089
    %v4091 = vrot.slane %v4083, %v4090
    %v4093 = vunpack.c.l.s4 1934713408
    %v4094 = vunpack.c.0.s8 %v4093
    %v4095 = vlaneseq
    %v4096 = vshrl.u32 %v4095, 7
    %v4097 = vsub.s32 %v4094, %v4096
    %v4098 = vrot.slane %v4084, %v4097
    %v4099 = vcombine.low %v4034, %v4050
    %v4100 = vcombine.high %v4034, %v4050
    %v4102 = vunpack.c.l.s4 1934713408
    %v4103 = vunpack.c.0.s8 %v4102
    %v4104 = vlaneseq
    %v4105 = vshrl.u32 %v4104, 7
    %v4106 = vsub.s32 %v4103, %v4105
    %v4107 = vrot.slane %v4099, %v4106
    %v4109 = vunpack.c.l.s4 1934713408
    %v4110 = vunpack.c.0.s8 %v4109
    %v4111 = vlaneseq
    %v4112 = vshrl.u32 %v4111, 7
    %v4113 = vsub.s32 %v4110, %v4112
    %v4114 = vrot.slane %v4100, %v4113
    %v4115 = vcombine.low %v4059, %v4075
    %v4116 = vcombine.high %v4059, %v4075
    %v4118 = vunpack.c.l.s4 1934713408
    %v4119 = vunpack.c.0.s8 %v4118
    %v4120 = vlaneseq
    %v4121 = vshrl.u32 %v4120, 7
    %v4122 = vsub.s32 %v4119, %v4121
    %v4123 = vrot.slane %v4115, %v4122
    %v4125 = vunpack.c.l.s4 1934713408
    %v4126 = vunpack.c.0.s8 %v4125
    %v4127 = vlaneseq
    %v4128 = vshrl.u32 %v4127, 7
    %v4129 = vsub.s32 %v4126, %v4128
    %v4130 = vrot.slane %v4116, %v4129
    %v4131 = vcombine.low %v4066, %v4082
    %v4132 = vcombine.high %v4066, %v4082
    %v4134 = vunpack.c.l.s4 1934713408
    %v4135 = vunpack.c.0.s8 %v4134
    %v4136 = vlaneseq
    %v4137 = vshrl.u32 %v4136, 7
    %v4138 = vsub.s32 %v4135, %v4137
    %v4139 = vrot.slane %v4131, %v4138
    %v4141 = vunpack.c.l.s4 1934713408
    %v4142 = vunpack.c.0.s8 %v4141
    %v4143 = vlaneseq
    %v4144 = vshrl.u32 %v4143, 7
    %v4145 = vsub.s32 %v4142, %v4144
    %v4146 = vrot.slane %v4132, %v4145
    %v4147 = vcombine.low %v4091, %v4123
    %v4148 = vcombine.high %v4091, %v4123
    %v4149 = vcombine.low %v4098, %v4130
    %v4150 = vcombine.high %v4098, %v4130
    %v4151 = vcombine.low %v4107, %v4139
    %v4152 = vcombine.high %v4107, %v4139
    %v4153 = vcombine.low %v4114, %v4146
    %v4154 = vcombine.high %v4114, %v4146
    %4157 = vrot.lane.b32.xlu0 %v4012, 4
    %v4158 = vpop.permute.xlu0 %4157
    %4159 = vrot.lane.b32.xlu0 %v4148, 4
    %v4160 = vpop.permute.xlu0 %4159
    %4165 = vrot.lane.b32.xlu0 %v4013, 8
    %v4166 = vpop.permute.xlu0 %4165
    %4167 = vrot.lane.b32.xlu0 %v4149, 8
    %v4168 = vpop.permute.xlu0 %4167
    %4173 = vrot.lane.b32.xlu0 %v4014, 12
    %v4174 = vpop.permute.xlu0 %4173
    %4175 = vrot.lane.b32.xlu0 %v4150, 12
    %v4176 = vpop.permute.xlu0 %4175
    %4181 = vrot.lane.b32.xlu0 %v4015, 16
    %v4182 = vpop.permute.xlu0 %4181
    %4183 = vrot.lane.b32.xlu0 %v4151, 16
    %v4184 = vpop.permute.xlu0 %4183
    %4189 = vrot.lane.b32.xlu0 %v4016, 20
    %v4190 = vpop.permute.xlu0 %4189
    %4191 = vrot.lane.b32.xlu0 %v4152, 20
    %v4192 = vpop.permute.xlu0 %4191
    %4197 = vrot.lane.b32.xlu0 %v4017, 24
    %v4198 = vpop.permute.xlu0 %4197
    %4199 = vrot.lane.b32.xlu0 %v4153, 24
    %v4200 = vpop.permute.xlu0 %4199
    %4205 = vrot.lane.b32.xlu0 %v4018, 28
    %v4206 = vpop.permute.xlu0 %4205
    %4207 = vrot.lane.b32.xlu0 %v4154, 28
    %v4208 = vpop.permute.xlu0 %4207
    %v4211 = vsel %vm1928, %v4011, %v4158
    %v4212 = vsel %vm1928, %v4147, %v4160
    %v4213 = vsel %vm2665, %v4211, %v4166
    %v4214 = vsel %vm2665, %v4212, %v4168
    %vm4215 = vcmask 97280
    %v4216 = vsel %vm4215, %v4213, %v4174
    %v4217 = vsel %vm4215, %v4214, %v4176
    %vm4218 = vcmask 130048
    %v4219 = vsel %vm4218, %v4216, %v4182
    %v4220 = vsel %vm4218, %v4217, %v4184
    %vm4221 = vcmask 162816
    %v4222 = vsel %vm4221, %v4219, %v4190
    %v4223 = vsel %vm4221, %v4220, %v4192
    %vm4224 = vcmask 195584
    %v4225 = vsel %vm4224, %v4222, %v4198
    %v4226 = vsel %vm4224, %v4223, %v4200
    %vm4227 = vcmask 228352
    %v4228 = vsel %vm4227, %v4225, %v4206
    %v4229 = vsel %vm4227, %v4226, %v4208
    %v4230 = vpack.c.bf16 %v4229, %v4228
    %v4231 = vld [vmem:[#allocation7] sm:$0xf]
    %v4232 = vld [vmem:[#allocation7 + $0x4] sm:$0xf]
    %v4233 = vld [vmem:[#allocation7 + $0x8] sm:$0xf]
    %v4234 = vld [vmem:[#allocation7 + $0xc] sm:$0xf]
    %v4235 = vld [vmem:[%s3] sm:$0x1]
    %v4237 = vlaneseq
    %v4238 = vshrl.u32 %v4237, 7
    %v4239 = vsub.s32 0, %v4238
    %v4240 = vrot.slane %v4235, %v4239
    %v4246 = vunpack.c.l.b16 %v4231
    %v4247 = vunpack.c.l.b16 %v4232
    %v4248 = vunpack.c.l.b16 %v4233
    %v4249 = vunpack.c.l.b16 %v4234
    %v4250 = vpack.c.b16 %v4247, %v4246
    %v4251 = vpack.c.b16 %v4249, %v4248
    %v4255 = vsel %vm79, %v4230, 0
    %4257 = vmatprep.subr.bf16.mxu0 0
    %4258 = vmatpush1.bf16.msra.mxu0 %v4250
    %4259 = vmatprep.subr.bf16.mxu0 0
    %4260 = vmatpush1.bf16.msra.mxu0 %v4251
    %4261 = vmatprep.subr.bf16.mxu0 0
    %4262 = vmatpush1.bf16.msra.mxu0 0
    %4263 = vmatprep.subr.bf16.mxu0 0
    %4264 = vmatpush1.bf16.msra.mxu0 0
    %4265 = vmatprep.subr.bf16.mxu0 0
    %4266 = vmatpush1.bf16.msra.mxu0 0
    %4267 = vmatprep.subr.bf16.mxu0 0
    %4268 = vmatpush1.bf16.msra.mxu0 0
    %4269 = vmatprep.subr.bf16.mxu0 0
    %4270 = vmatpush1.bf16.msra.mxu0 0
    %4271 = vmatprep.subr.bf16.mxu0 0
    %4272 = vmatpush1.bf16.msra.mxu0 0
    %4273 = vmatprep.subr.bf16.mxu0 0
    %4274 = vmatpush1.bf16.msra.mxu0 0
    %4275 = vmatprep.subr.bf16.mxu0 0
    %4276 = vmatpush1.bf16.msra.mxu0 0
    %4277 = vmatprep.subr.bf16.mxu0 0
    %4278 = vmatpush1.bf16.msra.mxu0 0
    %4279 = vmatprep.subr.bf16.mxu0 0
    %4280 = vmatpush1.bf16.msra.mxu0 0
    %4281 = vmatprep.subr.bf16.mxu0 0
    %4282 = vmatpush1.bf16.msra.mxu0 0
    %4283 = vmatprep.subr.bf16.mxu0 0
    %4284 = vmatpush1.bf16.msra.mxu0 0
    %4285 = vmatprep.subr.bf16.mxu0 0
    %4286 = vmatpush1.bf16.msra.mxu0 0
    %4287 = vmatprep.subr.bf16.mxu0 0
    %4288 = vmatpush1.bf16.msra.mxu0 0
    %4289 = vmatprep.mubr.bf16.mxu0 0
    %4290 = vmatmul.mubr.bf16.gmra.mrb[0].mxu0 %v4255
    %v4291 = vpop.f32.mrb[0].mxu0
    %v4292 = vadd.f32 %v4240, %v4291
    %v4293 = vpop.f32.mrb[0].mxu0
    %v4294 = vpop.f32.mrb[0].mxu0
    %v4295 = vadd.f32 %v4240, %v4294
    %v4296 = vpop.f32.mrb[0].mxu0
    %4297 = vdwg.mxu0
    %4298 = vst.msk [vmem:[#allocation8] sm:$0xff] %vm79, %v4292
    %4299 = vst.msk [vmem:[#allocation8 + $0x8] sm:$0xff] %vm79, %v4295
    // Predicated region
    $region30: #{tpu_custom_call.1} parent=1 // pred_check
      _
    $region31: #{tpu_custom_call.1} parent=1 // pred_check_branch
      %4301 = sbr.rel (0) target = $region33
    $region32: #{tpu_custom_call.1} parent=1 // pred_region
      %s4303 = ssub.s32 256, 256
      %4304 = vsyncadd [#allocation4], %s4303
      %s4305 = sshll.u32 [#allocation8], 4
      %s4306 = int_to_ptr.vmem [resolvable:$true] %s4305
      %4311 = dma.vmem_to_hbm [thread:$0]  %s4306, 256, %s4, [#allocation4], 128, 128, 8
    $region33: #{tpu_custom_call.1} parent=1 // pred_fallthru
      _
    // Predicated region
    $region34: #{tpu_custom_call.1} parent=1 // pred_check
      _
    $region35: #{tpu_custom_call.1} parent=1 // pred_check_branch
      %4313 = sbr.rel (0) target = $region37
    $region36: #{tpu_custom_call.1} parent=1 // pred_region
      %4314 = dma.done [#allocation4], 256
    $region37: #{tpu_custom_call.1} parent=1 // pred_fallthru
      _
    %4315 = vsyncpa [#allocation3], 1
    %4316 = vsyncpa [#allocation6], 1
    %4317 = vsyncpa [#allocation4], 1

</llo_original>
